<compile_context>
chip_gen: v5e
topology: v5e:2x2
jax: 0.10.0
libtpu: 0.0.40
codegen_flags: <defaults>
</compile_context>

<pallas_src>
import functools

import jax
import jax.numpy as jnp
from jax.experimental import pallas as pl
from jax.experimental.pallas import tpu as pltpu

C_PAD = 128   # all channel dims padded to one full lane width
R_PAD = 8     # SE reduction width (real rd=4, padded to one sublane group)

_PARALLEL = pltpu.CompilerParams(dimension_semantics=("parallel",))


# ---------------------------------------------------------------------------
# in-kernel helpers
# ---------------------------------------------------------------------------

def _silu(x):
    return x * jax.nn.sigmoid(x)


def _se_gate(y, se1_wt, se1_b, se2_w, se2_b):
    """Squeeze-excite gate on VPU/XLU only. y: (M, C) f32 -> gate (1, C)."""
    pooled = jnp.mean(y, axis=0, keepdims=True)                     # (1, C)
    s1 = jnp.sum(se1_wt * pooled, axis=1, keepdims=True) + se1_b    # (R, 1) lane-reduce
    s1 = _silu(s1)
    gate = jnp.sum(se2_w * s1, axis=0, keepdims=True) + se2_b       # (1, C) sublane-reduce
    return jax.nn.sigmoid(gate)


# ---------------------------------------------------------------------------
# fully fused kernel: stem -> MBConv1 -> MBConv2(s2) -> head -> pool -> classifier
# ---------------------------------------------------------------------------

def _effnet_fused_kernel(
        p_ref,
        stem_w_ref, stem_b_ref,
        b1_dw_w_ref, b1_dw_s_ref, b1_dw_b_ref,
        b1_se1_wt_ref, b1_se1_b_ref, b1_se2_w_ref, b1_se2_b_ref,
        b1_proj_w_ref, b1_proj_b_ref,
        b2_exp_w_ref, b2_exp_b_ref,
        b2_dw_w_ref, b2_dw_s_ref, b2_dw_b_ref,
        b2_se1_wt_ref, b2_se1_b_ref, b2_se2_w_ref, b2_se2_b_ref,
        b2_proj_w_ref, b2_proj_b_ref,
        head_w_ref, head_b_ref, cls_w_ref, cls_b_ref,
        o_ref,
        hpad_ref, *, H, W):
    C = C_PAD
    stride = 2
    Ho, Wo = H // stride, W // stride

    # ---- stem 3x3/s2 conv as a single MXU matmul over lane-padded taps, + SiLU
    p = p_ref[0].reshape(H * W, C)                                   # bf16 (64, 128)
    h = jnp.dot(p, stem_w_ref[...], preferred_element_type=jnp.float32)
    h = _silu(h + stem_b_ref[...])                                   # f32 (64, 128)

    # ---- zero the padded depthwise scratch ONCE; both blocks overwrite only its
    #      interior, so the halo stays zero for the second block as well.
    hpad_ref[...] = jnp.zeros((H + 2, W + 2, C), jnp.float32)

    # ======================= MBConv block 1 (expand=1, k3 s1, SE, residual) =======
    hpad_ref[1:1 + H, 1:1 + W, :] = h.reshape(H, W, C)
    w1 = b1_dw_w_ref[...]                                            # (9, C), loaded once
    acc = jnp.zeros((H, W, C), jnp.float32)
    for di in range(3):
        for dj in range(3):
            k = 3 * di + dj
            acc = acc + hpad_ref[di:di + H, dj:dj + W, :] * w1[k:k + 1, :]
    y = _silu(acc.reshape(H * W, C) * b1_dw_s_ref[...] + b1_dw_b_ref[...])
    y = y * _se_gate(y, b1_se1_wt_ref[...], b1_se1_b_ref[...],
                     b1_se2_w_ref[...], b1_se2_b_ref[...])
    # 1x1 projection (bf16 x bf16 -> f32 on MXU) + residual (stride 1, Cin == Cout)
    x1 = jnp.dot(y.astype(jnp.bfloat16), b1_proj_w_ref[...],
                 preferred_element_type=jnp.float32) + b1_proj_b_ref[...] + h

    # ======================= MBConv block 2 (expand=6, k3 s2, SE) =================
    h2 = jnp.dot(x1.astype(jnp.bfloat16), b2_exp_w_ref[...],
                 preferred_element_type=jnp.float32)
    h2 = _silu(h2 + b2_exp_b_ref[...])                               # f32 (64, 128)

    hpad_ref[1:1 + H, 1:1 + W, :] = h2.reshape(H, W, C)
    w2 = b2_dw_w_ref[...]                                            # (9, C)
    rows = []
    for oh in range(Ho):
        racc = jnp.zeros((1, Wo, C), jnp.float32)
        for di in range(3):
            r = stride * oh + di
            for dj in range(3):
                k = 3 * di + dj
                tap = hpad_ref[r:r + 1, pl.ds(dj, Wo, stride=stride), :]   # (1, Wo, C)
                racc = racc + tap * w2[k:k + 1, :]
        rows.append(racc)
    y2 = jnp.concatenate(rows, axis=0).reshape(Ho * Wo, C)
    y2 = _silu(y2 * b2_dw_s_ref[...] + b2_dw_b_ref[...])
    y2 = y2 * _se_gate(y2, b2_se1_wt_ref[...], b2_se1_b_ref[...],
                       b2_se2_w_ref[...], b2_se2_b_ref[...])
    # 1x1 projection (no residual: stride 2 / channel change)
    x2 = jnp.dot(y2.astype(jnp.bfloat16), b2_proj_w_ref[...],
                 preferred_element_type=jnp.float32) + b2_proj_b_ref[...]

    # ======================= head 1x1 conv + SiLU, global pool, classifier ========
    hh = jnp.dot(x2.astype(jnp.bfloat16), head_w_ref[...],
                 preferred_element_type=jnp.float32)
    hh = _silu(hh + head_b_ref[...])
    pooled = jnp.mean(hh, axis=0, keepdims=True)                     # (1, C)
    logits = jnp.dot(pooled.astype(jnp.bfloat16), cls_w_ref[...],
                     preferred_element_type=jnp.float32) + cls_b_ref[...]
    o_ref[...] = logits.reshape(1, 1, C).astype(o_ref.dtype)


# ---------------------------------------------------------------------------
# pallas_call wrapper
# ---------------------------------------------------------------------------

def _w_spec(a):
    idx = (0,) * a.ndim
    return pl.BlockSpec(a.shape, lambda n, _i=idx: _i)


def efficientnet_fused(patches, params):
    N, H, W, C = patches.shape
    b1, b2 = params["b1"], params["b2"]
    args = [patches,
            params["stem_w"], params["stem_b"],
            b1["dw_w"], b1["dw_s"], b1["dw_b"],
            b1["se1_wt"], b1["se1_b"], b1["se2_w"], b1["se2_b"],
            b1["proj_w"], b1["proj_b"],
            b2["exp_w"], b2["exp_b"],
            b2["dw_w"], b2["dw_s"], b2["dw_b"],
            b2["se1_wt"], b2["se1_b"], b2["se2_w"], b2["se2_b"],
            b2["proj_w"], b2["proj_b"],
            params["head_w"], params["head_b"],
            params["cls_w"], params["cls_b"]]
    in_specs = [pl.BlockSpec((1, H, W, C), lambda n: (n, 0, 0, 0))] + \
               [_w_spec(a) for a in args[1:]]
    return pl.pallas_call(
        functools.partial(_effnet_fused_kernel, H=H, W=W),
        grid=(N,),
        out_shape=jax.ShapeDtypeStruct((N, 1, C_PAD), jnp.float32),
        in_specs=in_specs,
        out_specs=pl.BlockSpec((1, 1, C_PAD), lambda n: (n, 0, 0)),
        scratch_shapes=[pltpu.VMEM((H + 2, W + 2, C_PAD), jnp.float32)],
        compiler_params=_PARALLEL,
    )(*args)


# ---------------------------------------------------------------------------
# JAX glue: stem im2col (3-channel input only -> tiny, lane-padded to 128)
# ---------------------------------------------------------------------------

def _stem_patches(x, ksize=3, stride=2, pad=1):
    N, H, W, C = x.shape
    xp = jnp.pad(x, ((0, 0), (pad, pad), (pad, pad), (0, 0)))
    Ho = (H + 2 * pad - ksize) // stride + 1
    Wo = (W + 2 * pad - ksize) // stride + 1
    taps = []
    for i in range(ksize):
        for j in range(ksize):
            taps.append(xp[:, i:i + stride * Ho:stride, j:j + stride * Wo:stride, :])
    p = jnp.stack(taps, axis=3).reshape(N, Ho, Wo, ksize * ksize * C)
    p = jnp.pad(p, ((0, 0), (0, 0), (0, 0), (0, C_PAD - ksize * ksize * C)))
    return p.astype(jnp.bfloat16)


def efficientnet_forward(x_nchw, params, num_classes=10):
    x = jnp.transpose(x_nchw, (0, 2, 3, 1)).astype(jnp.float32)      # NCHW -> NHWC
    patches = _stem_patches(x)                                       # (N, 8, 8, 128) bf16
    logits = efficientnet_fused(patches, params)                     # (N, 1, 128) f32
    return logits[:, 0, :num_classes]


# ---------------------------------------------------------------------------
# Deterministic parameter init (synthetic, BN folded, zero-padded to 128 lanes)
# ---------------------------------------------------------------------------

def init_params(key, num_classes=10):
    Cin, C0, C1, Ce, C2, Ch, rd = 3, 16, 16, 96, 24, 64, 4   # real (unpadded) widths
    ks = jax.random.split(key, 12)

    def w(k, real_shape, pad_shape, dtype=jnp.bfloat16):
        full = jax.random.normal(k, real_shape, jnp.float32) * 0.1
        full = jnp.pad(full, [(0, t - s) for s, t in zip(real_shape, pad_shape)])
        return full.astype(dtype)

    def zeros(shape):
        return jnp.zeros(shape, jnp.float32)

    def block(k_dw, k_se1, k_se2, k_proj, c_mid, c_out):
        return {
            "dw_w": w(k_dw, (9, c_mid), (9, C_PAD), jnp.float32),
            "dw_s": jnp.ones((1, C_PAD), jnp.float32),
            "dw_b": zeros((1, C_PAD)),
            "se1_wt": w(k_se1, (rd, c_mid), (R_PAD, C_PAD), jnp.float32),  # stored (R, C)
            "se1_b": zeros((R_PAD, 1)),
            "se2_w": w(k_se2, (rd, c_mid), (R_PAD, C_PAD), jnp.float32),   # stored (R, C)
            "se2_b": zeros((1, C_PAD)),
            "proj_w": w(k_proj, (c_mid, c_out), (C_PAD, C_PAD)),
            "proj_b": zeros((1, C_PAD)),
        }

    params = {
        "stem_w": w(ks[0], (9 * Cin, C0), (C_PAD, C_PAD)),
        "stem_b": zeros((1, C_PAD)),
        "b1": block(ks[1], ks[2], ks[3], ks[4], C0, C1),
        "b2": {
            "exp_w": w(ks[5], (C1, Ce), (C_PAD, C_PAD)),
            "exp_b": zeros((1, C_PAD)),
            **block(ks[6], ks[7], ks[8], ks[9], Ce, C2),
        },
        "head_w": w(ks[10], (C2, Ch), (C_PAD, C_PAD)),
        "head_b": zeros((1, C_PAD)),
        "cls_w": w(ks[11], (Ch, num_classes), (C_PAD, C_PAD)),
        "cls_b": zeros((1, C_PAD)),
    }
    return params


if __name__ == "__main__":
    key = jax.random.PRNGKey(0)
    kx, kp = jax.random.split(key)
    # PyTorch-style NCHW input, small shapes: batch=2, channels=3, spatial=16
    x = jax.random.normal(kx, (2, 3, 16, 16), jnp.float32)
    params = init_params(kp, num_classes=10)

    fwd = jax.jit(lambda xx: efficientnet_forward(xx, params))
    logits = fwd(x)
    jax.block_until_ready(logits)
    assert logits.shape == (2, 10) and logits.dtype == jnp.float32
    print("KERNEL_OK")
</pallas_src>

<mosaic_0001>
module attributes {stable_mosaic.version = 11 : i64} {
  func.func @_effnet_fused_kernel(%arg0: i32, %arg1: memref<1x8x8x128xbf16, #tpu.memory_space<vmem>>, %arg2: memref<128x128xbf16, #tpu.memory_space<vmem>>, %arg3: memref<1x128xf32, #tpu.memory_space<vmem>>, %arg4: memref<9x128xf32, #tpu.memory_space<vmem>>, %arg5: memref<1x128xf32, #tpu.memory_space<vmem>>, %arg6: memref<1x128xf32, #tpu.memory_space<vmem>>, %arg7: memref<8x128xf32, #tpu.memory_space<vmem>>, %arg8: memref<8x1xf32, #tpu.memory_space<vmem>>, %arg9: memref<8x128xf32, #tpu.memory_space<vmem>>, %arg10: memref<1x128xf32, #tpu.memory_space<vmem>>, %arg11: memref<128x128xbf16, #tpu.memory_space<vmem>>, %arg12: memref<1x128xf32, #tpu.memory_space<vmem>>, %arg13: memref<128x128xbf16, #tpu.memory_space<vmem>>, %arg14: memref<1x128xf32, #tpu.memory_space<vmem>>, %arg15: memref<9x128xf32, #tpu.memory_space<vmem>>, %arg16: memref<1x128xf32, #tpu.memory_space<vmem>>, %arg17: memref<1x128xf32, #tpu.memory_space<vmem>>, %arg18: memref<8x128xf32, #tpu.memory_space<vmem>>, %arg19: memref<8x1xf32, #tpu.memory_space<vmem>>, %arg20: memref<8x128xf32, #tpu.memory_space<vmem>>, %arg21: memref<1x128xf32, #tpu.memory_space<vmem>>, %arg22: memref<128x128xbf16, #tpu.memory_space<vmem>>, %arg23: memref<1x128xf32, #tpu.memory_space<vmem>>, %arg24: memref<128x128xbf16, #tpu.memory_space<vmem>>, %arg25: memref<1x128xf32, #tpu.memory_space<vmem>>, %arg26: memref<128x128xbf16, #tpu.memory_space<vmem>>, %arg27: memref<1x128xf32, #tpu.memory_space<vmem>>, %arg28: memref<1x1x128xf32, #tpu.memory_space<vmem>>, %arg29: memref<10x10x128xf32, #tpu.memory_space<vmem>>) attributes {dimension_semantics = [#tpu.dimension_semantics<parallel>], iteration_bounds = array<i64: 2>, scalar_prefetch = 0 : i64, scratch_operands = 1 : i64, tpu.core_type = #tpu.core_type<tc>, window_params = [{transform_indices = @transform_0, window_bounds = array<i64: 1, 8, 8, 128>}, {pipeline_mode = #tpu.pipeline_mode<synchronous>, transform_indices = @transform_1, window_bounds = array<i64: 128, 128>}, {pipeline_mode = #tpu.pipeline_mode<synchronous>, transform_indices = @transform_2, window_bounds = array<i64: 1, 128>}, {pipeline_mode = #tpu.pipeline_mode<synchronous>, transform_indices = @transform_3, window_bounds = array<i64: 9, 128>}, {pipeline_mode = #tpu.pipeline_mode<synchronous>, transform_indices = @transform_4, window_bounds = array<i64: 1, 128>}, {pipeline_mode = #tpu.pipeline_mode<synchronous>, transform_indices = @transform_5, window_bounds = array<i64: 1, 128>}, {pipeline_mode = #tpu.pipeline_mode<synchronous>, transform_indices = @transform_6, window_bounds = array<i64: 8, 128>}, {pipeline_mode = #tpu.pipeline_mode<synchronous>, transform_indices = @transform_7, window_bounds = array<i64: 8, 1>}, {pipeline_mode = #tpu.pipeline_mode<synchronous>, transform_indices = @transform_8, window_bounds = array<i64: 8, 128>}, {pipeline_mode = #tpu.pipeline_mode<synchronous>, transform_indices = @transform_9, window_bounds = array<i64: 1, 128>}, {pipeline_mode = #tpu.pipeline_mode<synchronous>, transform_indices = @transform_10, window_bounds = array<i64: 128, 128>}, {pipeline_mode = #tpu.pipeline_mode<synchronous>, transform_indices = @transform_11, window_bounds = array<i64: 1, 128>}, {pipeline_mode = #tpu.pipeline_mode<synchronous>, transform_indices = @transform_12, window_bounds = array<i64: 128, 128>}, {pipeline_mode = #tpu.pipeline_mode<synchronous>, transform_indices = @transform_13, window_bounds = array<i64: 1, 128>}, {pipeline_mode = #tpu.pipeline_mode<synchronous>, transform_indices = @transform_14, window_bounds = array<i64: 9, 128>}, {pipeline_mode = #tpu.pipeline_mode<synchronous>, transform_indices = @transform_15, window_bounds = array<i64: 1, 128>}, {pipeline_mode = #tpu.pipeline_mode<synchronous>, transform_indices = @transform_16, window_bounds = array<i64: 1, 128>}, {pipeline_mode = #tpu.pipeline_mode<synchronous>, transform_indices = @transform_17, window_bounds = array<i64: 8, 128>}, {pipeline_mode = #tpu.pipeline_mode<synchronous>, transform_indices = @transform_18, window_bounds = array<i64: 8, 1>}, {pipeline_mode = #tpu.pipeline_mode<synchronous>, transform_indices = @transform_19, window_bounds = array<i64: 8, 128>}, {pipeline_mode = #tpu.pipeline_mode<synchronous>, transform_indices = @transform_20, window_bounds = array<i64: 1, 128>}, {pipeline_mode = #tpu.pipeline_mode<synchronous>, transform_indices = @transform_21, window_bounds = array<i64: 128, 128>}, {pipeline_mode = #tpu.pipeline_mode<synchronous>, transform_indices = @transform_22, window_bounds = array<i64: 1, 128>}, {pipeline_mode = #tpu.pipeline_mode<synchronous>, transform_indices = @transform_23, window_bounds = array<i64: 128, 128>}, {pipeline_mode = #tpu.pipeline_mode<synchronous>, transform_indices = @transform_24, window_bounds = array<i64: 1, 128>}, {pipeline_mode = #tpu.pipeline_mode<synchronous>, transform_indices = @transform_25, window_bounds = array<i64: 128, 128>}, {pipeline_mode = #tpu.pipeline_mode<synchronous>, transform_indices = @transform_26, window_bounds = array<i64: 1, 128>}, {transform_indices = @transform_27, window_bounds = array<i64: 1, 1, 128>}]} {
    %c0 = arith.constant 0 : index
    %c0_0 = arith.constant 0 : index
    %c0_1 = arith.constant 0 : index
    %c0_2 = arith.constant 0 : index
    %0 = vector.load %arg1[%c0, %c0_0, %c0_1, %c0_2] : memref<1x8x8x128xbf16, #tpu.memory_space<vmem>>, vector<1x8x8x128xbf16>
    %1 = vector.shape_cast %0 : vector<1x8x8x128xbf16> to vector<8x8x128xbf16>
    %2 = vector.shape_cast %1 : vector<8x8x128xbf16> to vector<64x128xbf16>
    %c0_3 = arith.constant 0 : index
    %c0_4 = arith.constant 0 : index
    %3 = vector.load %arg2[%c0_3, %c0_4] : memref<128x128xbf16, #tpu.memory_space<vmem>>, vector<128x128xbf16>
    %cst = arith.constant dense<0.000000e+00> : vector<64x128xf32>
    %4 = tpu.matmul %2, %3, %cst {dimension_numbers = #tpu.dot_dimension_numbers<[1], [0], [0], [1], [0, 0, 1, 1], [], []>} : vector<64x128xbf16>, vector<128x128xbf16>, vector<64x128xf32> -> vector<64x128xf32>
    %c0_5 = arith.constant 0 : index
    %c0_6 = arith.constant 0 : index
    %5 = vector.load %arg3[%c0_5, %c0_6] : memref<1x128xf32, #tpu.memory_space<vmem>>, vector<1x128xf32>
    %6 = vector.broadcast %5 : vector<1x128xf32> to vector<64x128xf32>
    %7 = arith.addf %4, %6 : vector<64x128xf32>
    %8 = arith.negf %7 : vector<64x128xf32>
    %9 = math.exp %8 : vector<64x128xf32>
    %cst_7 = arith.constant 1.000000e+00 : f32
    %10 = vector.broadcast %cst_7 : f32 to vector<64x128xf32>
    %11 = arith.addf %10, %9 : vector<64x128xf32>
    %12 = arith.divf %10, %11 : vector<64x128xf32>
    %13 = arith.mulf %7, %12 : vector<64x128xf32>
    %cst_8 = arith.constant 0.000000e+00 : f32
    %14 = vector.broadcast %cst_8 : f32 to vector<10x10x128xf32>
    %c0_9 = arith.constant 0 : index
    %c0_10 = arith.constant 0 : index
    %c0_11 = arith.constant 0 : index
    %15 = vector.load %arg29[%c0_9, %c0_10, %c0_11] : memref<10x10x128xf32, #tpu.memory_space<vmem>>, vector<10x10x128xf32>
    tpu.vector_store %arg29[%c0_9, %c0_10, %c0_11], %14 {strides = array<i32>} : memref<10x10x128xf32, #tpu.memory_space<vmem>>, vector<10x10x128xf32>,
    %16 = vector.shape_cast %13 : vector<64x128xf32> to vector<8x8x128xf32>
    %c1 = arith.constant 1 : index
    %c1_12 = arith.constant 1 : index
    %c0_13 = arith.constant 0 : index
    %17 = vector.load %arg29[%c1, %c1_12, %c0_13] : memref<10x10x128xf32, #tpu.memory_space<vmem>>, vector<8x8x128xf32>
    tpu.vector_store %arg29[%c1, %c1_12, %c0_13], %16 {strides = array<i32>} : memref<10x10x128xf32, #tpu.memory_space<vmem>>, vector<8x8x128xf32>,
    %c0_14 = arith.constant 0 : index
    %c0_15 = arith.constant 0 : index
    %18 = vector.load %arg4[%c0_14, %c0_15] : memref<9x128xf32, #tpu.memory_space<vmem>>, vector<9x128xf32>
    %cst_16 = arith.constant 0.000000e+00 : f32
    %19 = vector.broadcast %cst_16 : f32 to vector<8x8x128xf32>
    %c0_17 = arith.constant 0 : index
    %c0_18 = arith.constant 0 : index
    %c0_19 = arith.constant 0 : index
    %20 = vector.load %arg29[%c0_17, %c0_18, %c0_19] : memref<10x10x128xf32, #tpu.memory_space<vmem>>, vector<8x8x128xf32>
    %21 = vector.extract_strided_slice %18 {offsets = [0, 0], sizes = [1, 128], strides = [1, 1]} : vector<9x128xf32> to vector<1x128xf32>
    %22 = vector.shape_cast %21 : vector<1x128xf32> to vector<1x1x128xf32>
    %23 = vector.broadcast %22 : vector<1x1x128xf32> to vector<8x8x128xf32>
    %24 = arith.mulf %20, %23 : vector<8x8x128xf32>
    %25 = arith.addf %19, %24 : vector<8x8x128xf32>
    %c0_20 = arith.constant 0 : index
    %c1_21 = arith.constant 1 : index
    %c0_22 = arith.constant 0 : index
    %26 = vector.load %arg29[%c0_20, %c1_21, %c0_22] : memref<10x10x128xf32, #tpu.memory_space<vmem>>, vector<8x8x128xf32>
    %27 = vector.extract_strided_slice %18 {offsets = [1, 0], sizes = [1, 128], strides = [1, 1]} : vector<9x128xf32> to vector<1x128xf32>
    %28 = vector.shape_cast %27 : vector<1x128xf32> to vector<1x1x128xf32>
    %29 = vector.broadcast %28 : vector<1x1x128xf32> to vector<8x8x128xf32>
    %30 = arith.mulf %26, %29 : vector<8x8x128xf32>
    %31 = arith.addf %25, %30 : vector<8x8x128xf32>
    %c0_23 = arith.constant 0 : index
    %c2 = arith.constant 2 : index
    %c0_24 = arith.constant 0 : index
    %32 = vector.load %arg29[%c0_23, %c2, %c0_24] : memref<10x10x128xf32, #tpu.memory_space<vmem>>, vector<8x8x128xf32>
    %33 = vector.extract_strided_slice %18 {offsets = [2, 0], sizes = [1, 128], strides = [1, 1]} : vector<9x128xf32> to vector<1x128xf32>
    %34 = vector.shape_cast %33 : vector<1x128xf32> to vector<1x1x128xf32>
    %35 = vector.broadcast %34 : vector<1x1x128xf32> to vector<8x8x128xf32>
    %36 = arith.mulf %32, %35 : vector<8x8x128xf32>
    %37 = arith.addf %31, %36 : vector<8x8x128xf32>
    %c1_25 = arith.constant 1 : index
    %c0_26 = arith.constant 0 : index
    %c0_27 = arith.constant 0 : index
    %38 = vector.load %arg29[%c1_25, %c0_26, %c0_27] : memref<10x10x128xf32, #tpu.memory_space<vmem>>, vector<8x8x128xf32>
    %39 = vector.extract_strided_slice %18 {offsets = [3, 0], sizes = [1, 128], strides = [1, 1]} : vector<9x128xf32> to vector<1x128xf32>
    %40 = vector.shape_cast %39 : vector<1x128xf32> to vector<1x1x128xf32>
    %41 = vector.broadcast %40 : vector<1x1x128xf32> to vector<8x8x128xf32>
    %42 = arith.mulf %38, %41 : vector<8x8x128xf32>
    %43 = arith.addf %37, %42 : vector<8x8x128xf32>
    %c1_28 = arith.constant 1 : index
    %c1_29 = arith.constant 1 : index
    %c0_30 = arith.constant 0 : index
    %44 = vector.load %arg29[%c1_28, %c1_29, %c0_30] : memref<10x10x128xf32, #tpu.memory_space<vmem>>, vector<8x8x128xf32>
    %45 = vector.extract_strided_slice %18 {offsets = [4, 0], sizes = [1, 128], strides = [1, 1]} : vector<9x128xf32> to vector<1x128xf32>
    %46 = vector.shape_cast %45 : vector<1x128xf32> to vector<1x1x128xf32>
    %47 = vector.broadcast %46 : vector<1x1x128xf32> to vector<8x8x128xf32>
    %48 = arith.mulf %44, %47 : vector<8x8x128xf32>
    %49 = arith.addf %43, %48 : vector<8x8x128xf32>
    %c1_31 = arith.constant 1 : index
    %c2_32 = arith.constant 2 : index
    %c0_33 = arith.constant 0 : index
    %50 = vector.load %arg29[%c1_31, %c2_32, %c0_33] : memref<10x10x128xf32, #tpu.memory_space<vmem>>, vector<8x8x128xf32>
    %51 = vector.extract_strided_slice %18 {offsets = [5, 0], sizes = [1, 128], strides = [1, 1]} : vector<9x128xf32> to vector<1x128xf32>
    %52 = vector.shape_cast %51 : vector<1x128xf32> to vector<1x1x128xf32>
    %53 = vector.broadcast %52 : vector<1x1x128xf32> to vector<8x8x128xf32>
    %54 = arith.mulf %50, %53 : vector<8x8x128xf32>
    %55 = arith.addf %49, %54 : vector<8x8x128xf32>
    %c2_34 = arith.constant 2 : index
    %c0_35 = arith.constant 0 : index
    %c0_36 = arith.constant 0 : index
    %56 = vector.load %arg29[%c2_34, %c0_35, %c0_36] : memref<10x10x128xf32, #tpu.memory_space<vmem>>, vector<8x8x128xf32>
    %57 = vector.extract_strided_slice %18 {offsets = [6, 0], sizes = [1, 128], strides = [1, 1]} : vector<9x128xf32> to vector<1x128xf32>
    %58 = vector.shape_cast %57 : vector<1x128xf32> to vector<1x1x128xf32>
    %59 = vector.broadcast %58 : vector<1x1x128xf32> to vector<8x8x128xf32>
    %60 = arith.mulf %56, %59 : vector<8x8x128xf32>
    %61 = arith.addf %55, %60 : vector<8x8x128xf32>
    %c2_37 = arith.constant 2 : index
    %c1_38 = arith.constant 1 : index
    %c0_39 = arith.constant 0 : index
    %62 = vector.load %arg29[%c2_37, %c1_38, %c0_39] : memref<10x10x128xf32, #tpu.memory_space<vmem>>, vector<8x8x128xf32>
    %63 = vector.extract_strided_slice %18 {offsets = [7, 0], sizes = [1, 128], strides = [1, 1]} : vector<9x128xf32> to vector<1x128xf32>
    %64 = vector.shape_cast %63 : vector<1x128xf32> to vector<1x1x128xf32>
    %65 = vector.broadcast %64 : vector<1x1x128xf32> to vector<8x8x128xf32>
    %66 = arith.mulf %62, %65 : vector<8x8x128xf32>
    %67 = arith.addf %61, %66 : vector<8x8x128xf32>
    %c2_40 = arith.constant 2 : index
    %c2_41 = arith.constant 2 : index
    %c0_42 = arith.constant 0 : index
    %68 = vector.load %arg29[%c2_40, %c2_41, %c0_42] : memref<10x10x128xf32, #tpu.memory_space<vmem>>, vector<8x8x128xf32>
    %69 = vector.extract_strided_slice %18 {offsets = [8, 0], sizes = [1, 128], strides = [1, 1]} : vector<9x128xf32> to vector<1x128xf32>
    %70 = vector.shape_cast %69 : vector<1x128xf32> to vector<1x1x128xf32>
    %71 = vector.broadcast %70 : vector<1x1x128xf32> to vector<8x8x128xf32>
    %72 = arith.mulf %68, %71 : vector<8x8x128xf32>
    %73 = arith.addf %67, %72 : vector<8x8x128xf32>
    %74 = vector.shape_cast %73 : vector<8x8x128xf32> to vector<64x128xf32>
    %c0_43 = arith.constant 0 : index
    %c0_44 = arith.constant 0 : index
    %75 = vector.load %arg5[%c0_43, %c0_44] : memref<1x128xf32, #tpu.memory_space<vmem>>, vector<1x128xf32>
    %76 = vector.broadcast %75 : vector<1x128xf32> to vector<64x128xf32>
    %77 = arith.mulf %74, %76 : vector<64x128xf32>
    %c0_45 = arith.constant 0 : index
    %c0_46 = arith.constant 0 : index
    %78 = vector.load %arg6[%c0_45, %c0_46] : memref<1x128xf32, #tpu.memory_space<vmem>>, vector<1x128xf32>
    %79 = vector.broadcast %78 : vector<1x128xf32> to vector<64x128xf32>
    %80 = arith.addf %77, %79 : vector<64x128xf32>
    %81 = arith.negf %80 : vector<64x128xf32>
    %82 = math.exp %81 : vector<64x128xf32>
    %cst_47 = arith.constant 1.000000e+00 : f32
    %83 = vector.broadcast %cst_47 : f32 to vector<64x128xf32>
    %84 = arith.addf %83, %82 : vector<64x128xf32>
    %85 = arith.divf %83, %84 : vector<64x128xf32>
    %86 = arith.mulf %80, %85 : vector<64x128xf32>
    %c0_48 = arith.constant 0 : index
    %c0_49 = arith.constant 0 : index
    %87 = vector.load %arg7[%c0_48, %c0_49] : memref<8x128xf32, #tpu.memory_space<vmem>>, vector<8x128xf32>
    %c0_50 = arith.constant 0 : index
    %c0_51 = arith.constant 0 : index
    %88 = vector.load %arg8[%c0_50, %c0_51] : memref<8x1xf32, #tpu.memory_space<vmem>>, vector<8x1xf32>
    %c0_52 = arith.constant 0 : index
    %c0_53 = arith.constant 0 : index
    %89 = vector.load %arg9[%c0_52, %c0_53] : memref<8x128xf32, #tpu.memory_space<vmem>>, vector<8x128xf32>
    %c0_54 = arith.constant 0 : index
    %c0_55 = arith.constant 0 : index
    %90 = vector.load %arg10[%c0_54, %c0_55] : memref<1x128xf32, #tpu.memory_space<vmem>>, vector<1x128xf32>
    %cst_56 = arith.constant dense<0.000000e+00> : vector<128xf32>
    %91 = vector.multi_reduction <add>, %86, %cst_56 [0] : vector<64x128xf32> to vector<128xf32>
    %92 = vector.shape_cast %91 : vector<128xf32> to vector<1x128xf32>
    %cst_57 = arith.constant 6.400000e+01 : f32
    %93 = vector.broadcast %cst_57 : f32 to vector<1x128xf32>
    %94 = arith.divf %92, %93 : vector<1x128xf32>
    %95 = vector.broadcast %94 : vector<1x128xf32> to vector<8x128xf32>
    %96 = arith.mulf %87, %95 : vector<8x128xf32>
    %cst_58 = arith.constant dense<0.000000e+00> : vector<8xf32>
    %97 = vector.multi_reduction <add>, %96, %cst_58 [1] : vector<8x128xf32> to vector<8xf32>
    %98 = vector.shape_cast %97 : vector<8xf32> to vector<8x1xf32>
    %99 = arith.addf %98, %88 : vector<8x1xf32>
    %100 = arith.negf %99 : vector<8x1xf32>
    %101 = math.exp %100 : vector<8x1xf32>
    %cst_59 = arith.constant 1.000000e+00 : f32
    %102 = vector.broadcast %cst_59 : f32 to vector<8x1xf32>
    %103 = arith.addf %102, %101 : vector<8x1xf32>
    %104 = arith.divf %102, %103 : vector<8x1xf32>
    %105 = arith.mulf %99, %104 : vector<8x1xf32>
    %106 = vector.broadcast %105 : vector<8x1xf32> to vector<8x128xf32>
    %107 = arith.mulf %89, %106 : vector<8x128xf32>
    %cst_60 = arith.constant dense<0.000000e+00> : vector<128xf32>
    %108 = vector.multi_reduction <add>, %107, %cst_60 [0] : vector<8x128xf32> to vector<128xf32>
    %109 = vector.shape_cast %108 : vector<128xf32> to vector<1x128xf32>
    %110 = arith.addf %109, %90 : vector<1x128xf32>
    %111 = arith.negf %110 : vector<1x128xf32>
    %112 = math.exp %111 : vector<1x128xf32>
    %cst_61 = arith.constant 1.000000e+00 : f32
    %113 = vector.broadcast %cst_61 : f32 to vector<1x128xf32>
    %114 = arith.addf %113, %112 : vector<1x128xf32>
    %115 = arith.divf %113, %114 : vector<1x128xf32>
    %116 = vector.broadcast %115 : vector<1x128xf32> to vector<64x128xf32>
    %117 = arith.mulf %86, %116 : vector<64x128xf32>
    %118 = arith.truncf %117 : vector<64x128xf32> to vector<64x128xbf16>
    %c0_62 = arith.constant 0 : index
    %c0_63 = arith.constant 0 : index
    %119 = vector.load %arg11[%c0_62, %c0_63] : memref<128x128xbf16, #tpu.memory_space<vmem>>, vector<128x128xbf16>
    %cst_64 = arith.constant dense<0.000000e+00> : vector<64x128xf32>
    %120 = tpu.matmul %118, %119, %cst_64 {dimension_numbers = #tpu.dot_dimension_numbers<[1], [0], [0], [1], [0, 0, 1, 1], [], []>} : vector<64x128xbf16>, vector<128x128xbf16>, vector<64x128xf32> -> vector<64x128xf32>
    %c0_65 = arith.constant 0 : index
    %c0_66 = arith.constant 0 : index
    %121 = vector.load %arg12[%c0_65, %c0_66] : memref<1x128xf32, #tpu.memory_space<vmem>>, vector<1x128xf32>
    %122 = vector.broadcast %121 : vector<1x128xf32> to vector<64x128xf32>
    %123 = arith.addf %120, %122 : vector<64x128xf32>
    %124 = arith.addf %123, %13 : vector<64x128xf32>
    %125 = arith.truncf %124 : vector<64x128xf32> to vector<64x128xbf16>
    %c0_67 = arith.constant 0 : index
    %c0_68 = arith.constant 0 : index
    %126 = vector.load %arg13[%c0_67, %c0_68] : memref<128x128xbf16, #tpu.memory_space<vmem>>, vector<128x128xbf16>
    %cst_69 = arith.constant dense<0.000000e+00> : vector<64x128xf32>
    %127 = tpu.matmul %125, %126, %cst_69 {dimension_numbers = #tpu.dot_dimension_numbers<[1], [0], [0], [1], [0, 0, 1, 1], [], []>} : vector<64x128xbf16>, vector<128x128xbf16>, vector<64x128xf32> -> vector<64x128xf32>
    %c0_70 = arith.constant 0 : index
    %c0_71 = arith.constant 0 : index
    %128 = vector.load %arg14[%c0_70, %c0_71] : memref<1x128xf32, #tpu.memory_space<vmem>>, vector<1x128xf32>
    %129 = vector.broadcast %128 : vector<1x128xf32> to vector<64x128xf32>
    %130 = arith.addf %127, %129 : vector<64x128xf32>
    %131 = arith.negf %130 : vector<64x128xf32>
    %132 = math.exp %131 : vector<64x128xf32>
    %cst_72 = arith.constant 1.000000e+00 : f32
    %133 = vector.broadcast %cst_72 : f32 to vector<64x128xf32>
    %134 = arith.addf %133, %132 : vector<64x128xf32>
    %135 = arith.divf %133, %134 : vector<64x128xf32>
    %136 = arith.mulf %130, %135 : vector<64x128xf32>
    %137 = vector.shape_cast %136 : vector<64x128xf32> to vector<8x8x128xf32>
    %c1_73 = arith.constant 1 : index
    %c1_74 = arith.constant 1 : index
    %c0_75 = arith.constant 0 : index
    %138 = vector.load %arg29[%c1_73, %c1_74, %c0_75] : memref<10x10x128xf32, #tpu.memory_space<vmem>>, vector<8x8x128xf32>
    tpu.vector_store %arg29[%c1_73, %c1_74, %c0_75], %137 {strides = array<i32>} : memref<10x10x128xf32, #tpu.memory_space<vmem>>, vector<8x8x128xf32>,
    %c0_76 = arith.constant 0 : index
    %c0_77 = arith.constant 0 : index
    %139 = vector.load %arg15[%c0_76, %c0_77] : memref<9x128xf32, #tpu.memory_space<vmem>>, vector<9x128xf32>
    %cst_78 = arith.constant 0.000000e+00 : f32
    %140 = vector.broadcast %cst_78 : f32 to vector<1x4x128xf32>
    %c0_79 = arith.constant 0 : index
    %c0_80 = arith.constant 0 : index
    %c0_81 = arith.constant 0 : index
    %141 = tpu.strided_load %arg29[%c0_79, %c0_80, %c0_81] {strides = array<i32: 1, 2, 1>} : memref<10x10x128xf32, #tpu.memory_space<vmem>>, vector<1x4x128xf32>
    %142 = vector.extract_strided_slice %139 {offsets = [0, 0], sizes = [1, 128], strides = [1, 1]} : vector<9x128xf32> to vector<1x128xf32>
    %143 = vector.shape_cast %142 : vector<1x128xf32> to vector<1x1x128xf32>
    %144 = vector.broadcast %143 : vector<1x1x128xf32> to vector<1x4x128xf32>
    %145 = arith.mulf %141, %144 : vector<1x4x128xf32>
    %146 = arith.addf %140, %145 : vector<1x4x128xf32>
    %c0_82 = arith.constant 0 : index
    %c1_83 = arith.constant 1 : index
    %c0_84 = arith.constant 0 : index
    %147 = tpu.strided_load %arg29[%c0_82, %c1_83, %c0_84] {strides = array<i32: 1, 2, 1>} : memref<10x10x128xf32, #tpu.memory_space<vmem>>, vector<1x4x128xf32>
    %148 = vector.extract_strided_slice %139 {offsets = [1, 0], sizes = [1, 128], strides = [1, 1]} : vector<9x128xf32> to vector<1x128xf32>
    %149 = vector.shape_cast %148 : vector<1x128xf32> to vector<1x1x128xf32>
    %150 = vector.broadcast %149 : vector<1x1x128xf32> to vector<1x4x128xf32>
    %151 = arith.mulf %147, %150 : vector<1x4x128xf32>
    %152 = arith.addf %146, %151 : vector<1x4x128xf32>
    %c0_85 = arith.constant 0 : index
    %c2_86 = arith.constant 2 : index
    %c0_87 = arith.constant 0 : index
    %153 = tpu.strided_load %arg29[%c0_85, %c2_86, %c0_87] {strides = array<i32: 1, 2, 1>} : memref<10x10x128xf32, #tpu.memory_space<vmem>>, vector<1x4x128xf32>
    %154 = vector.extract_strided_slice %139 {offsets = [2, 0], sizes = [1, 128], strides = [1, 1]} : vector<9x128xf32> to vector<1x128xf32>
    %155 = vector.shape_cast %154 : vector<1x128xf32> to vector<1x1x128xf32>
    %156 = vector.broadcast %155 : vector<1x1x128xf32> to vector<1x4x128xf32>
    %157 = arith.mulf %153, %156 : vector<1x4x128xf32>
    %158 = arith.addf %152, %157 : vector<1x4x128xf32>
    %c1_88 = arith.constant 1 : index
    %c0_89 = arith.constant 0 : index
    %c0_90 = arith.constant 0 : index
    %159 = tpu.strided_load %arg29[%c1_88, %c0_89, %c0_90] {strides = array<i32: 1, 2, 1>} : memref<10x10x128xf32, #tpu.memory_space<vmem>>, vector<1x4x128xf32>
    %160 = vector.extract_strided_slice %139 {offsets = [3, 0], sizes = [1, 128], strides = [1, 1]} : vector<9x128xf32> to vector<1x128xf32>
    %161 = vector.shape_cast %160 : vector<1x128xf32> to vector<1x1x128xf32>
    %162 = vector.broadcast %161 : vector<1x1x128xf32> to vector<1x4x128xf32>
    %163 = arith.mulf %159, %162 : vector<1x4x128xf32>
    %164 = arith.addf %158, %163 : vector<1x4x128xf32>
    %c1_91 = arith.constant 1 : index
    %c1_92 = arith.constant 1 : index
    %c0_93 = arith.constant 0 : index
    %165 = tpu.strided_load %arg29[%c1_91, %c1_92, %c0_93] {strides = array<i32: 1, 2, 1>} : memref<10x10x128xf32, #tpu.memory_space<vmem>>, vector<1x4x128xf32>
    %166 = vector.extract_strided_slice %139 {offsets = [4, 0], sizes = [1, 128], strides = [1, 1]} : vector<9x128xf32> to vector<1x128xf32>
    %167 = vector.shape_cast %166 : vector<1x128xf32> to vector<1x1x128xf32>
    %168 = vector.broadcast %167 : vector<1x1x128xf32> to vector<1x4x128xf32>
    %169 = arith.mulf %165, %168 : vector<1x4x128xf32>
    %170 = arith.addf %164, %169 : vector<1x4x128xf32>
    %c1_94 = arith.constant 1 : index
    %c2_95 = arith.constant 2 : index
    %c0_96 = arith.constant 0 : index
    %171 = tpu.strided_load %arg29[%c1_94, %c2_95, %c0_96] {strides = array<i32: 1, 2, 1>} : memref<10x10x128xf32, #tpu.memory_space<vmem>>, vector<1x4x128xf32>
    %172 = vector.extract_strided_slice %139 {offsets = [5, 0], sizes = [1, 128], strides = [1, 1]} : vector<9x128xf32> to vector<1x128xf32>
    %173 = vector.shape_cast %172 : vector<1x128xf32> to vector<1x1x128xf32>
    %174 = vector.broadcast %173 : vector<1x1x128xf32> to vector<1x4x128xf32>
    %175 = arith.mulf %171, %174 : vector<1x4x128xf32>
    %176 = arith.addf %170, %175 : vector<1x4x128xf32>
    %c2_97 = arith.constant 2 : index
    %c0_98 = arith.constant 0 : index
    %c0_99 = arith.constant 0 : index
    %177 = tpu.strided_load %arg29[%c2_97, %c0_98, %c0_99] {strides = array<i32: 1, 2, 1>} : memref<10x10x128xf32, #tpu.memory_space<vmem>>, vector<1x4x128xf32>
    %178 = vector.extract_strided_slice %139 {offsets = [6, 0], sizes = [1, 128], strides = [1, 1]} : vector<9x128xf32> to vector<1x128xf32>
    %179 = vector.shape_cast %178 : vector<1x128xf32> to vector<1x1x128xf32>
    %180 = vector.broadcast %179 : vector<1x1x128xf32> to vector<1x4x128xf32>
    %181 = arith.mulf %177, %180 : vector<1x4x128xf32>
    %182 = arith.addf %176, %181 : vector<1x4x128xf32>
    %c2_100 = arith.constant 2 : index
    %c1_101 = arith.constant 1 : index
    %c0_102 = arith.constant 0 : index
    %183 = tpu.strided_load %arg29[%c2_100, %c1_101, %c0_102] {strides = array<i32: 1, 2, 1>} : memref<10x10x128xf32, #tpu.memory_space<vmem>>, vector<1x4x128xf32>
    %184 = vector.extract_strided_slice %139 {offsets = [7, 0], sizes = [1, 128], strides = [1, 1]} : vector<9x128xf32> to vector<1x128xf32>
    %185 = vector.shape_cast %184 : vector<1x128xf32> to vector<1x1x128xf32>
    %186 = vector.broadcast %185 : vector<1x1x128xf32> to vector<1x4x128xf32>
    %187 = arith.mulf %183, %186 : vector<1x4x128xf32>
    %188 = arith.addf %182, %187 : vector<1x4x128xf32>
    %c2_103 = arith.constant 2 : index
    %c2_104 = arith.constant 2 : index
    %c0_105 = arith.constant 0 : index
    %189 = tpu.strided_load %arg29[%c2_103, %c2_104, %c0_105] {strides = array<i32: 1, 2, 1>} : memref<10x10x128xf32, #tpu.memory_space<vmem>>, vector<1x4x128xf32>
    %190 = vector.extract_strided_slice %139 {offsets = [8, 0], sizes = [1, 128], strides = [1, 1]} : vector<9x128xf32> to vector<1x128xf32>
    %191 = vector.shape_cast %190 : vector<1x128xf32> to vector<1x1x128xf32>
    %192 = vector.broadcast %191 : vector<1x1x128xf32> to vector<1x4x128xf32>
    %193 = arith.mulf %189, %192 : vector<1x4x128xf32>
    %194 = arith.addf %188, %193 : vector<1x4x128xf32>
    %cst_106 = arith.constant 0.000000e+00 : f32
    %195 = vector.broadcast %cst_106 : f32 to vector<1x4x128xf32>
    %c2_107 = arith.constant 2 : index
    %c0_108 = arith.constant 0 : index
    %c0_109 = arith.constant 0 : index
    %196 = tpu.strided_load %arg29[%c2_107, %c0_108, %c0_109] {strides = array<i32: 1, 2, 1>} : memref<10x10x128xf32, #tpu.memory_space<vmem>>, vector<1x4x128xf32>
    %197 = vector.extract_strided_slice %139 {offsets = [0, 0], sizes = [1, 128], strides = [1, 1]} : vector<9x128xf32> to vector<1x128xf32>
    %198 = vector.shape_cast %197 : vector<1x128xf32> to vector<1x1x128xf32>
    %199 = vector.broadcast %198 : vector<1x1x128xf32> to vector<1x4x128xf32>
    %200 = arith.mulf %196, %199 : vector<1x4x128xf32>
    %201 = arith.addf %195, %200 : vector<1x4x128xf32>
    %c2_110 = arith.constant 2 : index
    %c1_111 = arith.constant 1 : index
    %c0_112 = arith.constant 0 : index
    %202 = tpu.strided_load %arg29[%c2_110, %c1_111, %c0_112] {strides = array<i32: 1, 2, 1>} : memref<10x10x128xf32, #tpu.memory_space<vmem>>, vector<1x4x128xf32>
    %203 = vector.extract_strided_slice %139 {offsets = [1, 0], sizes = [1, 128], strides = [1, 1]} : vector<9x128xf32> to vector<1x128xf32>
    %204 = vector.shape_cast %203 : vector<1x128xf32> to vector<1x1x128xf32>
    %205 = vector.broadcast %204 : vector<1x1x128xf32> to vector<1x4x128xf32>
    %206 = arith.mulf %202, %205 : vector<1x4x128xf32>
    %207 = arith.addf %201, %206 : vector<1x4x128xf32>
    %c2_113 = arith.constant 2 : index
    %c2_114 = arith.constant 2 : index
    %c0_115 = arith.constant 0 : index
    %208 = tpu.strided_load %arg29[%c2_113, %c2_114, %c0_115] {strides = array<i32: 1, 2, 1>} : memref<10x10x128xf32, #tpu.memory_space<vmem>>, vector<1x4x128xf32>
    %209 = vector.extract_strided_slice %139 {offsets = [2, 0], sizes = [1, 128], strides = [1, 1]} : vector<9x128xf32> to vector<1x128xf32>
    %210 = vector.shape_cast %209 : vector<1x128xf32> to vector<1x1x128xf32>
    %211 = vector.broadcast %210 : vector<1x1x128xf32> to vector<1x4x128xf32>
    %212 = arith.mulf %208, %211 : vector<1x4x128xf32>
    %213 = arith.addf %207, %212 : vector<1x4x128xf32>
    %c3 = arith.constant 3 : index
    %c0_116 = arith.constant 0 : index
    %c0_117 = arith.constant 0 : index
    %214 = tpu.strided_load %arg29[%c3, %c0_116, %c0_117] {strides = array<i32: 1, 2, 1>} : memref<10x10x128xf32, #tpu.memory_space<vmem>>, vector<1x4x128xf32>
    %215 = vector.extract_strided_slice %139 {offsets = [3, 0], sizes = [1, 128], strides = [1, 1]} : vector<9x128xf32> to vector<1x128xf32>
    %216 = vector.shape_cast %215 : vector<1x128xf32> to vector<1x1x128xf32>
    %217 = vector.broadcast %216 : vector<1x1x128xf32> to vector<1x4x128xf32>
    %218 = arith.mulf %214, %217 : vector<1x4x128xf32>
    %219 = arith.addf %213, %218 : vector<1x4x128xf32>
    %c3_118 = arith.constant 3 : index
    %c1_119 = arith.constant 1 : index
    %c0_120 = arith.constant 0 : index
    %220 = tpu.strided_load %arg29[%c3_118, %c1_119, %c0_120] {strides = array<i32: 1, 2, 1>} : memref<10x10x128xf32, #tpu.memory_space<vmem>>, vector<1x4x128xf32>
    %221 = vector.extract_strided_slice %139 {offsets = [4, 0], sizes = [1, 128], strides = [1, 1]} : vector<9x128xf32> to vector<1x128xf32>
    %222 = vector.shape_cast %221 : vector<1x128xf32> to vector<1x1x128xf32>
    %223 = vector.broadcast %222 : vector<1x1x128xf32> to vector<1x4x128xf32>
    %224 = arith.mulf %220, %223 : vector<1x4x128xf32>
    %225 = arith.addf %219, %224 : vector<1x4x128xf32>
    %c3_121 = arith.constant 3 : index
    %c2_122 = arith.constant 2 : index
    %c0_123 = arith.constant 0 : index
    %226 = tpu.strided_load %arg29[%c3_121, %c2_122, %c0_123] {strides = array<i32: 1, 2, 1>} : memref<10x10x128xf32, #tpu.memory_space<vmem>>, vector<1x4x128xf32>
    %227 = vector.extract_strided_slice %139 {offsets = [5, 0], sizes = [1, 128], strides = [1, 1]} : vector<9x128xf32> to vector<1x128xf32>
    %228 = vector.shape_cast %227 : vector<1x128xf32> to vector<1x1x128xf32>
    %229 = vector.broadcast %228 : vector<1x1x128xf32> to vector<1x4x128xf32>
    %230 = arith.mulf %226, %229 : vector<1x4x128xf32>
    %231 = arith.addf %225, %230 : vector<1x4x128xf32>
    %c4 = arith.constant 4 : index
    %c0_124 = arith.constant 0 : index
    %c0_125 = arith.constant 0 : index
    %232 = tpu.strided_load %arg29[%c4, %c0_124, %c0_125] {strides = array<i32: 1, 2, 1>} : memref<10x10x128xf32, #tpu.memory_space<vmem>>, vector<1x4x128xf32>
    %233 = vector.extract_strided_slice %139 {offsets = [6, 0], sizes = [1, 128], strides = [1, 1]} : vector<9x128xf32> to vector<1x128xf32>
    %234 = vector.shape_cast %233 : vector<1x128xf32> to vector<1x1x128xf32>
    %235 = vector.broadcast %234 : vector<1x1x128xf32> to vector<1x4x128xf32>
    %236 = arith.mulf %232, %235 : vector<1x4x128xf32>
    %237 = arith.addf %231, %236 : vector<1x4x128xf32>
    %c4_126 = arith.constant 4 : index
    %c1_127 = arith.constant 1 : index
    %c0_128 = arith.constant 0 : index
    %238 = tpu.strided_load %arg29[%c4_126, %c1_127, %c0_128] {strides = array<i32: 1, 2, 1>} : memref<10x10x128xf32, #tpu.memory_space<vmem>>, vector<1x4x128xf32>
    %239 = vector.extract_strided_slice %139 {offsets = [7, 0], sizes = [1, 128], strides = [1, 1]} : vector<9x128xf32> to vector<1x128xf32>
    %240 = vector.shape_cast %239 : vector<1x128xf32> to vector<1x1x128xf32>
    %241 = vector.broadcast %240 : vector<1x1x128xf32> to vector<1x4x128xf32>
    %242 = arith.mulf %238, %241 : vector<1x4x128xf32>
    %243 = arith.addf %237, %242 : vector<1x4x128xf32>
    %c4_129 = arith.constant 4 : index
    %c2_130 = arith.constant 2 : index
    %c0_131 = arith.constant 0 : index
    %244 = tpu.strided_load %arg29[%c4_129, %c2_130, %c0_131] {strides = array<i32: 1, 2, 1>} : memref<10x10x128xf32, #tpu.memory_space<vmem>>, vector<1x4x128xf32>
    %245 = vector.extract_strided_slice %139 {offsets = [8, 0], sizes = [1, 128], strides = [1, 1]} : vector<9x128xf32> to vector<1x128xf32>
    %246 = vector.shape_cast %245 : vector<1x128xf32> to vector<1x1x128xf32>
    %247 = vector.broadcast %246 : vector<1x1x128xf32> to vector<1x4x128xf32>
    %248 = arith.mulf %244, %247 : vector<1x4x128xf32>
    %249 = arith.addf %243, %248 : vector<1x4x128xf32>
    %cst_132 = arith.constant 0.000000e+00 : f32
    %250 = vector.broadcast %cst_132 : f32 to vector<1x4x128xf32>
    %c4_133 = arith.constant 4 : index
    %c0_134 = arith.constant 0 : index
    %c0_135 = arith.constant 0 : index
    %251 = tpu.strided_load %arg29[%c4_133, %c0_134, %c0_135] {strides = array<i32: 1, 2, 1>} : memref<10x10x128xf32, #tpu.memory_space<vmem>>, vector<1x4x128xf32>
    %252 = vector.extract_strided_slice %139 {offsets = [0, 0], sizes = [1, 128], strides = [1, 1]} : vector<9x128xf32> to vector<1x128xf32>
    %253 = vector.shape_cast %252 : vector<1x128xf32> to vector<1x1x128xf32>
    %254 = vector.broadcast %253 : vector<1x1x128xf32> to vector<1x4x128xf32>
    %255 = arith.mulf %251, %254 : vector<1x4x128xf32>
    %256 = arith.addf %250, %255 : vector<1x4x128xf32>
    %c4_136 = arith.constant 4 : index
    %c1_137 = arith.constant 1 : index
    %c0_138 = arith.constant 0 : index
    %257 = tpu.strided_load %arg29[%c4_136, %c1_137, %c0_138] {strides = array<i32: 1, 2, 1>} : memref<10x10x128xf32, #tpu.memory_space<vmem>>, vector<1x4x128xf32>
    %258 = vector.extract_strided_slice %139 {offsets = [1, 0], sizes = [1, 128], strides = [1, 1]} : vector<9x128xf32> to vector<1x128xf32>
    %259 = vector.shape_cast %258 : vector<1x128xf32> to vector<1x1x128xf32>
    %260 = vector.broadcast %259 : vector<1x1x128xf32> to vector<1x4x128xf32>
    %261 = arith.mulf %257, %260 : vector<1x4x128xf32>
    %262 = arith.addf %256, %261 : vector<1x4x128xf32>
    %c4_139 = arith.constant 4 : index
    %c2_140 = arith.constant 2 : index
    %c0_141 = arith.constant 0 : index
    %263 = tpu.strided_load %arg29[%c4_139, %c2_140, %c0_141] {strides = array<i32: 1, 2, 1>} : memref<10x10x128xf32, #tpu.memory_space<vmem>>, vector<1x4x128xf32>
    %264 = vector.extract_strided_slice %139 {offsets = [2, 0], sizes = [1, 128], strides = [1, 1]} : vector<9x128xf32> to vector<1x128xf32>
    %265 = vector.shape_cast %264 : vector<1x128xf32> to vector<1x1x128xf32>
    %266 = vector.broadcast %265 : vector<1x1x128xf32> to vector<1x4x128xf32>
    %267 = arith.mulf %263, %266 : vector<1x4x128xf32>
    %268 = arith.addf %262, %267 : vector<1x4x128xf32>
    %c5 = arith.constant 5 : index
    %c0_142 = arith.constant 0 : index
    %c0_143 = arith.constant 0 : index
    %269 = tpu.strided_load %arg29[%c5, %c0_142, %c0_143] {strides = array<i32: 1, 2, 1>} : memref<10x10x128xf32, #tpu.memory_space<vmem>>, vector<1x4x128xf32>
    %270 = vector.extract_strided_slice %139 {offsets = [3, 0], sizes = [1, 128], strides = [1, 1]} : vector<9x128xf32> to vector<1x128xf32>
    %271 = vector.shape_cast %270 : vector<1x128xf32> to vector<1x1x128xf32>
    %272 = vector.broadcast %271 : vector<1x1x128xf32> to vector<1x4x128xf32>
    %273 = arith.mulf %269, %272 : vector<1x4x128xf32>
    %274 = arith.addf %268, %273 : vector<1x4x128xf32>
    %c5_144 = arith.constant 5 : index
    %c1_145 = arith.constant 1 : index
    %c0_146 = arith.constant 0 : index
    %275 = tpu.strided_load %arg29[%c5_144, %c1_145, %c0_146] {strides = array<i32: 1, 2, 1>} : memref<10x10x128xf32, #tpu.memory_space<vmem>>, vector<1x4x128xf32>
    %276 = vector.extract_strided_slice %139 {offsets = [4, 0], sizes = [1, 128], strides = [1, 1]} : vector<9x128xf32> to vector<1x128xf32>
    %277 = vector.shape_cast %276 : vector<1x128xf32> to vector<1x1x128xf32>
    %278 = vector.broadcast %277 : vector<1x1x128xf32> to vector<1x4x128xf32>
    %279 = arith.mulf %275, %278 : vector<1x4x128xf32>
    %280 = arith.addf %274, %279 : vector<1x4x128xf32>
    %c5_147 = arith.constant 5 : index
    %c2_148 = arith.constant 2 : index
    %c0_149 = arith.constant 0 : index
    %281 = tpu.strided_load %arg29[%c5_147, %c2_148, %c0_149] {strides = array<i32: 1, 2, 1>} : memref<10x10x128xf32, #tpu.memory_space<vmem>>, vector<1x4x128xf32>
    %282 = vector.extract_strided_slice %139 {offsets = [5, 0], sizes = [1, 128], strides = [1, 1]} : vector<9x128xf32> to vector<1x128xf32>
    %283 = vector.shape_cast %282 : vector<1x128xf32> to vector<1x1x128xf32>
    %284 = vector.broadcast %283 : vector<1x1x128xf32> to vector<1x4x128xf32>
    %285 = arith.mulf %281, %284 : vector<1x4x128xf32>
    %286 = arith.addf %280, %285 : vector<1x4x128xf32>
    %c6 = arith.constant 6 : index
    %c0_150 = arith.constant 0 : index
    %c0_151 = arith.constant 0 : index
    %287 = tpu.strided_load %arg29[%c6, %c0_150, %c0_151] {strides = array<i32: 1, 2, 1>} : memref<10x10x128xf32, #tpu.memory_space<vmem>>, vector<1x4x128xf32>
    %288 = vector.extract_strided_slice %139 {offsets = [6, 0], sizes = [1, 128], strides = [1, 1]} : vector<9x128xf32> to vector<1x128xf32>
    %289 = vector.shape_cast %288 : vector<1x128xf32> to vector<1x1x128xf32>
    %290 = vector.broadcast %289 : vector<1x1x128xf32> to vector<1x4x128xf32>
    %291 = arith.mulf %287, %290 : vector<1x4x128xf32>
    %292 = arith.addf %286, %291 : vector<1x4x128xf32>
    %c6_152 = arith.constant 6 : index
    %c1_153 = arith.constant 1 : index
    %c0_154 = arith.constant 0 : index
    %293 = tpu.strided_load %arg29[%c6_152, %c1_153, %c0_154] {strides = array<i32: 1, 2, 1>} : memref<10x10x128xf32, #tpu.memory_space<vmem>>, vector<1x4x128xf32>
    %294 = vector.extract_strided_slice %139 {offsets = [7, 0], sizes = [1, 128], strides = [1, 1]} : vector<9x128xf32> to vector<1x128xf32>
    %295 = vector.shape_cast %294 : vector<1x128xf32> to vector<1x1x128xf32>
    %296 = vector.broadcast %295 : vector<1x1x128xf32> to vector<1x4x128xf32>
    %297 = arith.mulf %293, %296 : vector<1x4x128xf32>
    %298 = arith.addf %292, %297 : vector<1x4x128xf32>
    %c6_155 = arith.constant 6 : index
    %c2_156 = arith.constant 2 : index
    %c0_157 = arith.constant 0 : index
    %299 = tpu.strided_load %arg29[%c6_155, %c2_156, %c0_157] {strides = array<i32: 1, 2, 1>} : memref<10x10x128xf32, #tpu.memory_space<vmem>>, vector<1x4x128xf32>
    %300 = vector.extract_strided_slice %139 {offsets = [8, 0], sizes = [1, 128], strides = [1, 1]} : vector<9x128xf32> to vector<1x128xf32>
    %301 = vector.shape_cast %300 : vector<1x128xf32> to vector<1x1x128xf32>
    %302 = vector.broadcast %301 : vector<1x1x128xf32> to vector<1x4x128xf32>
    %303 = arith.mulf %299, %302 : vector<1x4x128xf32>
    %304 = arith.addf %298, %303 : vector<1x4x128xf32>
    %cst_158 = arith.constant 0.000000e+00 : f32
    %305 = vector.broadcast %cst_158 : f32 to vector<1x4x128xf32>
    %c6_159 = arith.constant 6 : index
    %c0_160 = arith.constant 0 : index
    %c0_161 = arith.constant 0 : index
    %306 = tpu.strided_load %arg29[%c6_159, %c0_160, %c0_161] {strides = array<i32: 1, 2, 1>} : memref<10x10x128xf32, #tpu.memory_space<vmem>>, vector<1x4x128xf32>
    %307 = vector.extract_strided_slice %139 {offsets = [0, 0], sizes = [1, 128], strides = [1, 1]} : vector<9x128xf32> to vector<1x128xf32>
    %308 = vector.shape_cast %307 : vector<1x128xf32> to vector<1x1x128xf32>
    %309 = vector.broadcast %308 : vector<1x1x128xf32> to vector<1x4x128xf32>
    %310 = arith.mulf %306, %309 : vector<1x4x128xf32>
    %311 = arith.addf %305, %310 : vector<1x4x128xf32>
    %c6_162 = arith.constant 6 : index
    %c1_163 = arith.constant 1 : index
    %c0_164 = arith.constant 0 : index
    %312 = tpu.strided_load %arg29[%c6_162, %c1_163, %c0_164] {strides = array<i32: 1, 2, 1>} : memref<10x10x128xf32, #tpu.memory_space<vmem>>, vector<1x4x128xf32>
    %313 = vector.extract_strided_slice %139 {offsets = [1, 0], sizes = [1, 128], strides = [1, 1]} : vector<9x128xf32> to vector<1x128xf32>
    %314 = vector.shape_cast %313 : vector<1x128xf32> to vector<1x1x128xf32>
    %315 = vector.broadcast %314 : vector<1x1x128xf32> to vector<1x4x128xf32>
    %316 = arith.mulf %312, %315 : vector<1x4x128xf32>
    %317 = arith.addf %311, %316 : vector<1x4x128xf32>
    %c6_165 = arith.constant 6 : index
    %c2_166 = arith.constant 2 : index
    %c0_167 = arith.constant 0 : index
    %318 = tpu.strided_load %arg29[%c6_165, %c2_166, %c0_167] {strides = array<i32: 1, 2, 1>} : memref<10x10x128xf32, #tpu.memory_space<vmem>>, vector<1x4x128xf32>
    %319 = vector.extract_strided_slice %139 {offsets = [2, 0], sizes = [1, 128], strides = [1, 1]} : vector<9x128xf32> to vector<1x128xf32>
    %320 = vector.shape_cast %319 : vector<1x128xf32> to vector<1x1x128xf32>
    %321 = vector.broadcast %320 : vector<1x1x128xf32> to vector<1x4x128xf32>
    %322 = arith.mulf %318, %321 : vector<1x4x128xf32>
    %323 = arith.addf %317, %322 : vector<1x4x128xf32>
    %c7 = arith.constant 7 : index
    %c0_168 = arith.constant 0 : index
    %c0_169 = arith.constant 0 : index
    %324 = tpu.strided_load %arg29[%c7, %c0_168, %c0_169] {strides = array<i32: 1, 2, 1>} : memref<10x10x128xf32, #tpu.memory_space<vmem>>, vector<1x4x128xf32>
    %325 = vector.extract_strided_slice %139 {offsets = [3, 0], sizes = [1, 128], strides = [1, 1]} : vector<9x128xf32> to vector<1x128xf32>
    %326 = vector.shape_cast %325 : vector<1x128xf32> to vector<1x1x128xf32>
    %327 = vector.broadcast %326 : vector<1x1x128xf32> to vector<1x4x128xf32>
    %328 = arith.mulf %324, %327 : vector<1x4x128xf32>
    %329 = arith.addf %323, %328 : vector<1x4x128xf32>
    %c7_170 = arith.constant 7 : index
    %c1_171 = arith.constant 1 : index
    %c0_172 = arith.constant 0 : index
    %330 = tpu.strided_load %arg29[%c7_170, %c1_171, %c0_172] {strides = array<i32: 1, 2, 1>} : memref<10x10x128xf32, #tpu.memory_space<vmem>>, vector<1x4x128xf32>
    %331 = vector.extract_strided_slice %139 {offsets = [4, 0], sizes = [1, 128], strides = [1, 1]} : vector<9x128xf32> to vector<1x128xf32>
    %332 = vector.shape_cast %331 : vector<1x128xf32> to vector<1x1x128xf32>
    %333 = vector.broadcast %332 : vector<1x1x128xf32> to vector<1x4x128xf32>
    %334 = arith.mulf %330, %333 : vector<1x4x128xf32>
    %335 = arith.addf %329, %334 : vector<1x4x128xf32>
    %c7_173 = arith.constant 7 : index
    %c2_174 = arith.constant 2 : index
    %c0_175 = arith.constant 0 : index
    %336 = tpu.strided_load %arg29[%c7_173, %c2_174, %c0_175] {strides = array<i32: 1, 2, 1>} : memref<10x10x128xf32, #tpu.memory_space<vmem>>, vector<1x4x128xf32>
    %337 = vector.extract_strided_slice %139 {offsets = [5, 0], sizes = [1, 128], strides = [1, 1]} : vector<9x128xf32> to vector<1x128xf32>
    %338 = vector.shape_cast %337 : vector<1x128xf32> to vector<1x1x128xf32>
    %339 = vector.broadcast %338 : vector<1x1x128xf32> to vector<1x4x128xf32>
    %340 = arith.mulf %336, %339 : vector<1x4x128xf32>
    %341 = arith.addf %335, %340 : vector<1x4x128xf32>
    %c8 = arith.constant 8 : index
    %c0_176 = arith.constant 0 : index
    %c0_177 = arith.constant 0 : index
    %342 = tpu.strided_load %arg29[%c8, %c0_176, %c0_177] {strides = array<i32: 1, 2, 1>} : memref<10x10x128xf32, #tpu.memory_space<vmem>>, vector<1x4x128xf32>
    %343 = vector.extract_strided_slice %139 {offsets = [6, 0], sizes = [1, 128], strides = [1, 1]} : vector<9x128xf32> to vector<1x128xf32>
    %344 = vector.shape_cast %343 : vector<1x128xf32> to vector<1x1x128xf32>
    %345 = vector.broadcast %344 : vector<1x1x128xf32> to vector<1x4x128xf32>
    %346 = arith.mulf %342, %345 : vector<1x4x128xf32>
    %347 = arith.addf %341, %346 : vector<1x4x128xf32>
    %c8_178 = arith.constant 8 : index
    %c1_179 = arith.constant 1 : index
    %c0_180 = arith.constant 0 : index
    %348 = tpu.strided_load %arg29[%c8_178, %c1_179, %c0_180] {strides = array<i32: 1, 2, 1>} : memref<10x10x128xf32, #tpu.memory_space<vmem>>, vector<1x4x128xf32>
    %349 = vector.extract_strided_slice %139 {offsets = [7, 0], sizes = [1, 128], strides = [1, 1]} : vector<9x128xf32> to vector<1x128xf32>
    %350 = vector.shape_cast %349 : vector<1x128xf32> to vector<1x1x128xf32>
    %351 = vector.broadcast %350 : vector<1x1x128xf32> to vector<1x4x128xf32>
    %352 = arith.mulf %348, %351 : vector<1x4x128xf32>
    %353 = arith.addf %347, %352 : vector<1x4x128xf32>
    %c8_181 = arith.constant 8 : index
    %c2_182 = arith.constant 2 : index
    %c0_183 = arith.constant 0 : index
    %354 = tpu.strided_load %arg29[%c8_181, %c2_182, %c0_183] {strides = array<i32: 1, 2, 1>} : memref<10x10x128xf32, #tpu.memory_space<vmem>>, vector<1x4x128xf32>
    %355 = vector.extract_strided_slice %139 {offsets = [8, 0], sizes = [1, 128], strides = [1, 1]} : vector<9x128xf32> to vector<1x128xf32>
    %356 = vector.shape_cast %355 : vector<1x128xf32> to vector<1x1x128xf32>
    %357 = vector.broadcast %356 : vector<1x1x128xf32> to vector<1x4x128xf32>
    %358 = arith.mulf %354, %357 : vector<1x4x128xf32>
    %359 = arith.addf %353, %358 : vector<1x4x128xf32>
    %360 = tpu.concatenate %194, %249, %304, %359 in 0 : vector<1x4x128xf32>, vector<1x4x128xf32>, vector<1x4x128xf32>, vector<1x4x128xf32> -> vector<4x4x128xf32>
    %361 = vector.shape_cast %360 : vector<4x4x128xf32> to vector<16x128xf32>
    %c0_184 = arith.constant 0 : index
    %c0_185 = arith.constant 0 : index
    %362 = vector.load %arg16[%c0_184, %c0_185] : memref<1x128xf32, #tpu.memory_space<vmem>>, vector<1x128xf32>
    %363 = vector.broadcast %362 : vector<1x128xf32> to vector<16x128xf32>
    %364 = arith.mulf %361, %363 : vector<16x128xf32>
    %c0_186 = arith.constant 0 : index
    %c0_187 = arith.constant 0 : index
    %365 = vector.load %arg17[%c0_186, %c0_187] : memref<1x128xf32, #tpu.memory_space<vmem>>, vector<1x128xf32>
    %366 = vector.broadcast %365 : vector<1x128xf32> to vector<16x128xf32>
    %367 = arith.addf %364, %366 : vector<16x128xf32>
    %368 = arith.negf %367 : vector<16x128xf32>
    %369 = math.exp %368 : vector<16x128xf32>
    %cst_188 = arith.constant 1.000000e+00 : f32
    %370 = vector.broadcast %cst_188 : f32 to vector<16x128xf32>
    %371 = arith.addf %370, %369 : vector<16x128xf32>
    %372 = arith.divf %370, %371 : vector<16x128xf32>
    %373 = arith.mulf %367, %372 : vector<16x128xf32>
    %c0_189 = arith.constant 0 : index
    %c0_190 = arith.constant 0 : index
    %374 = vector.load %arg18[%c0_189, %c0_190] : memref<8x128xf32, #tpu.memory_space<vmem>>, vector<8x128xf32>
    %c0_191 = arith.constant 0 : index
    %c0_192 = arith.constant 0 : index
    %375 = vector.load %arg19[%c0_191, %c0_192] : memref<8x1xf32, #tpu.memory_space<vmem>>, vector<8x1xf32>
    %c0_193 = arith.constant 0 : index
    %c0_194 = arith.constant 0 : index
    %376 = vector.load %arg20[%c0_193, %c0_194] : memref<8x128xf32, #tpu.memory_space<vmem>>, vector<8x128xf32>
    %c0_195 = arith.constant 0 : index
    %c0_196 = arith.constant 0 : index
    %377 = vector.load %arg21[%c0_195, %c0_196] : memref<1x128xf32, #tpu.memory_space<vmem>>, vector<1x128xf32>
    %cst_197 = arith.constant dense<0.000000e+00> : vector<128xf32>
    %378 = vector.multi_reduction <add>, %373, %cst_197 [0] : vector<16x128xf32> to vector<128xf32>
    %379 = vector.shape_cast %378 : vector<128xf32> to vector<1x128xf32>
    %cst_198 = arith.constant 1.600000e+01 : f32
    %380 = vector.broadcast %cst_198 : f32 to vector<1x128xf32>
    %381 = arith.divf %379, %380 : vector<1x128xf32>
    %382 = vector.broadcast %381 : vector<1x128xf32> to vector<8x128xf32>
    %383 = arith.mulf %374, %382 : vector<8x128xf32>
    %cst_199 = arith.constant dense<0.000000e+00> : vector<8xf32>
    %384 = vector.multi_reduction <add>, %383, %cst_199 [1] : vector<8x128xf32> to vector<8xf32>
    %385 = vector.shape_cast %384 : vector<8xf32> to vector<8x1xf32>
    %386 = arith.addf %385, %375 : vector<8x1xf32>
    %387 = arith.negf %386 : vector<8x1xf32>
    %388 = math.exp %387 : vector<8x1xf32>
    %cst_200 = arith.constant 1.000000e+00 : f32
    %389 = vector.broadcast %cst_200 : f32 to vector<8x1xf32>
    %390 = arith.addf %389, %388 : vector<8x1xf32>
    %391 = arith.divf %389, %390 : vector<8x1xf32>
    %392 = arith.mulf %386, %391 : vector<8x1xf32>
    %393 = vector.broadcast %392 : vector<8x1xf32> to vector<8x128xf32>
    %394 = arith.mulf %376, %393 : vector<8x128xf32>
    %cst_201 = arith.constant dense<0.000000e+00> : vector<128xf32>
    %395 = vector.multi_reduction <add>, %394, %cst_201 [0] : vector<8x128xf32> to vector<128xf32>
    %396 = vector.shape_cast %395 : vector<128xf32> to vector<1x128xf32>
    %397 = arith.addf %396, %377 : vector<1x128xf32>
    %398 = arith.negf %397 : vector<1x128xf32>
    %399 = math.exp %398 : vector<1x128xf32>
    %cst_202 = arith.constant 1.000000e+00 : f32
    %400 = vector.broadcast %cst_202 : f32 to vector<1x128xf32>
    %401 = arith.addf %400, %399 : vector<1x128xf32>
    %402 = arith.divf %400, %401 : vector<1x128xf32>
    %403 = vector.broadcast %402 : vector<1x128xf32> to vector<16x128xf32>
    %404 = arith.mulf %373, %403 : vector<16x128xf32>
    %405 = arith.truncf %404 : vector<16x128xf32> to vector<16x128xbf16>
    %c0_203 = arith.constant 0 : index
    %c0_204 = arith.constant 0 : index
    %406 = vector.load %arg22[%c0_203, %c0_204] : memref<128x128xbf16, #tpu.memory_space<vmem>>, vector<128x128xbf16>
    %cst_205 = arith.constant dense<0.000000e+00> : vector<16x128xf32>
    %407 = tpu.matmul %405, %406, %cst_205 {dimension_numbers = #tpu.dot_dimension_numbers<[1], [0], [0], [1], [0, 0, 1, 1], [], []>} : vector<16x128xbf16>, vector<128x128xbf16>, vector<16x128xf32> -> vector<16x128xf32>
    %c0_206 = arith.constant 0 : index
    %c0_207 = arith.constant 0 : index
    %408 = vector.load %arg23[%c0_206, %c0_207] : memref<1x128xf32, #tpu.memory_space<vmem>>, vector<1x128xf32>
    %409 = vector.broadcast %408 : vector<1x128xf32> to vector<16x128xf32>
    %410 = arith.addf %407, %409 : vector<16x128xf32>
    %411 = arith.truncf %410 : vector<16x128xf32> to vector<16x128xbf16>
    %c0_208 = arith.constant 0 : index
    %c0_209 = arith.constant 0 : index
    %412 = vector.load %arg24[%c0_208, %c0_209] : memref<128x128xbf16, #tpu.memory_space<vmem>>, vector<128x128xbf16>
    %cst_210 = arith.constant dense<0.000000e+00> : vector<16x128xf32>
    %413 = tpu.matmul %411, %412, %cst_210 {dimension_numbers = #tpu.dot_dimension_numbers<[1], [0], [0], [1], [0, 0, 1, 1], [], []>} : vector<16x128xbf16>, vector<128x128xbf16>, vector<16x128xf32> -> vector<16x128xf32>
    %c0_211 = arith.constant 0 : index
    %c0_212 = arith.constant 0 : index
    %414 = vector.load %arg25[%c0_211, %c0_212] : memref<1x128xf32, #tpu.memory_space<vmem>>, vector<1x128xf32>
    %415 = vector.broadcast %414 : vector<1x128xf32> to vector<16x128xf32>
    %416 = arith.addf %413, %415 : vector<16x128xf32>
    %417 = arith.negf %416 : vector<16x128xf32>
    %418 = math.exp %417 : vector<16x128xf32>
    %cst_213 = arith.constant 1.000000e+00 : f32
    %419 = vector.broadcast %cst_213 : f32 to vector<16x128xf32>
    %420 = arith.addf %419, %418 : vector<16x128xf32>
    %421 = arith.divf %419, %420 : vector<16x128xf32>
    %422 = arith.mulf %416, %421 : vector<16x128xf32>
    %cst_214 = arith.constant dense<0.000000e+00> : vector<128xf32>
    %423 = vector.multi_reduction <add>, %422, %cst_214 [0] : vector<16x128xf32> to vector<128xf32>
    %424 = vector.shape_cast %423 : vector<128xf32> to vector<1x128xf32>
    %cst_215 = arith.constant 1.600000e+01 : f32
    %425 = vector.broadcast %cst_215 : f32 to vector<1x128xf32>
    %426 = arith.divf %424, %425 : vector<1x128xf32>
    %427 = arith.truncf %426 : vector<1x128xf32> to vector<1x128xbf16>
    %c0_216 = arith.constant 0 : index
    %c0_217 = arith.constant 0 : index
    %428 = vector.load %arg26[%c0_216, %c0_217] : memref<128x128xbf16, #tpu.memory_space<vmem>>, vector<128x128xbf16>
    %cst_218 = arith.constant dense<0.000000e+00> : vector<1x128xf32>
    %429 = tpu.matmul %427, %428, %cst_218 {dimension_numbers = #tpu.dot_dimension_numbers<[1], [0], [0], [1], [0, 0, 1, 1], [], []>} : vector<1x128xbf16>, vector<128x128xbf16>, vector<1x128xf32> -> vector<1x128xf32>
    %c0_219 = arith.constant 0 : index
    %c0_220 = arith.constant 0 : index
    %430 = vector.load %arg27[%c0_219, %c0_220] : memref<1x128xf32, #tpu.memory_space<vmem>>, vector<1x128xf32>
    %431 = arith.addf %429, %430 : vector<1x128xf32>
    %432 = vector.shape_cast %431 : vector<1x128xf32> to vector<1x1x128xf32>
    %c0_221 = arith.constant 0 : index
    %c0_222 = arith.constant 0 : index
    %c0_223 = arith.constant 0 : index
    %433 = vector.load %arg28[%c0_221, %c0_222, %c0_223] : memref<1x1x128xf32, #tpu.memory_space<vmem>>, vector<1x1x128xf32>
    tpu.vector_store %arg28[%c0_221, %c0_222, %c0_223], %432 {strides = array<i32>} : memref<1x1x128xf32, #tpu.memory_space<vmem>>, vector<1x1x128xf32>,
    return
  }
  func.func @transform_0(%arg0: i32) -> (i32, i32, i32, i32) {
    %c0_i32 = arith.constant 0 : i32
    %c0_i32_0 = arith.constant 0 : i32
    %c0_i32_1 = arith.constant 0 : i32
    %c0_i32_2 = arith.constant 0 : i32
    return %arg0, %c0_i32, %c0_i32_0, %c0_i32_1 : i32, i32, i32, i32
  }
  func.func @transform_1(%arg0: i32) -> (i32, i32) {
    %c0_i32 = arith.constant 0 : i32
    %c0_i32_0 = arith.constant 0 : i32
    %c0_i32_1 = arith.constant 0 : i32
    return %c0_i32, %c0_i32_0 : i32, i32
  }
  func.func @transform_2(%arg0: i32) -> (i32, i32) {
    %c0_i32 = arith.constant 0 : i32
    %c0_i32_0 = arith.constant 0 : i32
    %c0_i32_1 = arith.constant 0 : i32
    return %c0_i32, %c0_i32_0 : i32, i32
  }
  func.func @transform_3(%arg0: i32) -> (i32, i32) {
    %c0_i32 = arith.constant 0 : i32
    %c0_i32_0 = arith.constant 0 : i32
    %c0_i32_1 = arith.constant 0 : i32
    return %c0_i32, %c0_i32_0 : i32, i32
  }
  func.func @transform_4(%arg0: i32) -> (i32, i32) {
    %c0_i32 = arith.constant 0 : i32
    %c0_i32_0 = arith.constant 0 : i32
    %c0_i32_1 = arith.constant 0 : i32
    return %c0_i32, %c0_i32_0 : i32, i32
  }
  func.func @transform_5(%arg0: i32) -> (i32, i32) {
    %c0_i32 = arith.constant 0 : i32
    %c0_i32_0 = arith.constant 0 : i32
    %c0_i32_1 = arith.constant 0 : i32
    return %c0_i32, %c0_i32_0 : i32, i32
  }
  func.func @transform_6(%arg0: i32) -> (i32, i32) {
    %c0_i32 = arith.constant 0 : i32
    %c0_i32_0 = arith.constant 0 : i32
    %c0_i32_1 = arith.constant 0 : i32
    return %c0_i32, %c0_i32_0 : i32, i32
  }
  func.func @transform_7(%arg0: i32) -> (i32, i32) {
    %c0_i32 = arith.constant 0 : i32
    %c0_i32_0 = arith.constant 0 : i32
    %c0_i32_1 = arith.constant 0 : i32
    return %c0_i32, %c0_i32_0 : i32, i32
  }
  func.func @transform_8(%arg0: i32) -> (i32, i32) {
    %c0_i32 = arith.constant 0 : i32
    %c0_i32_0 = arith.constant 0 : i32
    %c0_i32_1 = arith.constant 0 : i32
    return %c0_i32, %c0_i32_0 : i32, i32
  }
  func.func @transform_9(%arg0: i32) -> (i32, i32) {
    %c0_i32 = arith.constant 0 : i32
    %c0_i32_0 = arith.constant 0 : i32
    %c0_i32_1 = arith.constant 0 : i32
    return %c0_i32, %c0_i32_0 : i32, i32
  }
  func.func @transform_10(%arg0: i32) -> (i32, i32) {
    %c0_i32 = arith.constant 0 : i32
    %c0_i32_0 = arith.constant 0 : i32
    %c0_i32_1 = arith.constant 0 : i32
    return %c0_i32, %c0_i32_0 : i32, i32
  }
  func.func @transform_11(%arg0: i32) -> (i32, i32) {
    %c0_i32 = arith.constant 0 : i32
    %c0_i32_0 = arith.constant 0 : i32
    %c0_i32_1 = arith.constant 0 : i32
    return %c0_i32, %c0_i32_0 : i32, i32
  }
  func.func @transform_12(%arg0: i32) -> (i32, i32) {
    %c0_i32 = arith.constant 0 : i32
    %c0_i32_0 = arith.constant 0 : i32
    %c0_i32_1 = arith.constant 0 : i32
    return %c0_i32, %c0_i32_0 : i32, i32
  }
  func.func @transform_13(%arg0: i32) -> (i32, i32) {
    %c0_i32 = arith.constant 0 : i32
    %c0_i32_0 = arith.constant 0 : i32
    %c0_i32_1 = arith.constant 0 : i32
    return %c0_i32, %c0_i32_0 : i32, i32
  }
  func.func @transform_14(%arg0: i32) -> (i32, i32) {
    %c0_i32 = arith.constant 0 : i32
    %c0_i32_0 = arith.constant 0 : i32
    %c0_i32_1 = arith.constant 0 : i32
    return %c0_i32, %c0_i32_0 : i32, i32
  }
  func.func @transform_15(%arg0: i32) -> (i32, i32) {
    %c0_i32 = arith.constant 0 : i32
    %c0_i32_0 = arith.constant 0 : i32
    %c0_i32_1 = arith.constant 0 : i32
    return %c0_i32, %c0_i32_0 : i32, i32
  }
  func.func @transform_16(%arg0: i32) -> (i32, i32) {
    %c0_i32 = arith.constant 0 : i32
    %c0_i32_0 = arith.constant 0 : i32
    %c0_i32_1 = arith.constant 0 : i32
    return %c0_i32, %c0_i32_0 : i32, i32
  }
  func.func @transform_17(%arg0: i32) -> (i32, i32) {
    %c0_i32 = arith.constant 0 : i32
    %c0_i32_0 = arith.constant 0 : i32
    %c0_i32_1 = arith.constant 0 : i32
    return %c0_i32, %c0_i32_0 : i32, i32
  }
  func.func @transform_18(%arg0: i32) -> (i32, i32) {
    %c0_i32 = arith.constant 0 : i32
    %c0_i32_0 = arith.constant 0 : i32
    %c0_i32_1 = arith.constant 0 : i32
    return %c0_i32, %c0_i32_0 : i32, i32
  }
  func.func @transform_19(%arg0: i32) -> (i32, i32) {
    %c0_i32 = arith.constant 0 : i32
    %c0_i32_0 = arith.constant 0 : i32
    %c0_i32_1 = arith.constant 0 : i32
    return %c0_i32, %c0_i32_0 : i32, i32
  }
  func.func @transform_20(%arg0: i32) -> (i32, i32) {
    %c0_i32 = arith.constant 0 : i32
    %c0_i32_0 = arith.constant 0 : i32
    %c0_i32_1 = arith.constant 0 : i32
    return %c0_i32, %c0_i32_0 : i32, i32
  }
  func.func @transform_21(%arg0: i32) -> (i32, i32) {
    %c0_i32 = arith.constant 0 : i32
    %c0_i32_0 = arith.constant 0 : i32
    %c0_i32_1 = arith.constant 0 : i32
    return %c0_i32, %c0_i32_0 : i32, i32
  }
  func.func @transform_22(%arg0: i32) -> (i32, i32) {
    %c0_i32 = arith.constant 0 : i32
    %c0_i32_0 = arith.constant 0 : i32
    %c0_i32_1 = arith.constant 0 : i32
    return %c0_i32, %c0_i32_0 : i32, i32
  }
  func.func @transform_23(%arg0: i32) -> (i32, i32) {
    %c0_i32 = arith.constant 0 : i32
    %c0_i32_0 = arith.constant 0 : i32
    %c0_i32_1 = arith.constant 0 : i32
    return %c0_i32, %c0_i32_0 : i32, i32
  }
  func.func @transform_24(%arg0: i32) -> (i32, i32) {
    %c0_i32 = arith.constant 0 : i32
    %c0_i32_0 = arith.constant 0 : i32
    %c0_i32_1 = arith.constant 0 : i32
    return %c0_i32, %c0_i32_0 : i32, i32
  }
  func.func @transform_25(%arg0: i32) -> (i32, i32) {
    %c0_i32 = arith.constant 0 : i32
    %c0_i32_0 = arith.constant 0 : i32
    %c0_i32_1 = arith.constant 0 : i32
    return %c0_i32, %c0_i32_0 : i32, i32
  }
  func.func @transform_26(%arg0: i32) -> (i32, i32) {
    %c0_i32 = arith.constant 0 : i32
    %c0_i32_0 = arith.constant 0 : i32
    %c0_i32_1 = arith.constant 0 : i32
    return %c0_i32, %c0_i32_0 : i32, i32
  }
  func.func @transform_27(%arg0: i32) -> (i32, i32, i32) {
    %c0_i32 = arith.constant 0 : i32
    %c0_i32_0 = arith.constant 0 : i32
    %c0_i32_1 = arith.constant 0 : i32
    return %arg0, %c0_i32, %c0_i32_0 : i32, i32, i32
  }
}

</mosaic_0001>

<llo_original>
// kernel: _lambda_.1
$region0: #{_lambda_.1}
  #allocation0 [shape = 'u32[]', space=smem, size = 0x4, offset = 0x4, fixed_abs, tag = 'smem constant byte address 0x4 - core index']
  #allocation1 [shape = 'u32[72,128]{1,0:T(1,128)}', space=vmem, size = 0x9000, scoped, tag = 'internal scratch']
  #allocation2 [shape = 'f32[10,10,128]{2,1,0:T(8,128)}', space=vmem, size = 0x14000, scoped, tag = 'scratch operand']
  %s0 = inlined_call_operand.vmem [shape: bf16[2,8,8,128], index: 0, kind: input, shape index: {}]
  %s1 = inlined_call_operand.vmem [shape: bf16[128,128], index: 1, kind: input, shape index: {}]
  %s2 = inlined_call_operand.vmem [shape: f32[1,128], index: 2, kind: input, shape index: {}, may-alias: {2,5,9,11,13,16,20,22,24,26}]
  %s3 = inlined_call_operand.vmem [shape: f32[9,128], index: 3, kind: input, shape index: {}]
  %s4 = inlined_call_operand.vmem [shape: f32[1,128], index: 4, kind: input, shape index: {}, may-alias: {4,15}]
  %s5 = inlined_call_operand.vmem [shape: f32[1,128], index: 5, kind: input, shape index: {}, may-alias: {2,5,9,11,13,16,20,22,24,26}]
  %s6 = inlined_call_operand.vmem [shape: f32[8,128], index: 6, kind: input, shape index: {}]
  %s7 = inlined_call_operand.vmem [shape: f32[8,1], index: 7, kind: input, shape index: {}, may-alias: {7,18}]
  %s8 = inlined_call_operand.vmem [shape: f32[8,128], index: 8, kind: input, shape index: {}]
  %s9 = inlined_call_operand.vmem [shape: f32[1,128], index: 9, kind: input, shape index: {}, may-alias: {2,5,9,11,13,16,20,22,24,26}]
  %s10 = inlined_call_operand.vmem [shape: bf16[128,128], index: 10, kind: input, shape index: {}]
  %s11 = inlined_call_operand.vmem [shape: f32[1,128], index: 11, kind: input, shape index: {}, may-alias: {2,5,9,11,13,16,20,22,24,26}]
  %s12 = inlined_call_operand.vmem [shape: bf16[128,128], index: 12, kind: input, shape index: {}]
  %s13 = inlined_call_operand.vmem [shape: f32[1,128], index: 13, kind: input, shape index: {}, may-alias: {2,5,9,11,13,16,20,22,24,26}]
  %s14 = inlined_call_operand.vmem [shape: f32[9,128], index: 14, kind: input, shape index: {}]
  %s15 = inlined_call_operand.vmem [shape: f32[1,128], index: 15, kind: input, shape index: {}, may-alias: {4,15}]
  %s16 = inlined_call_operand.vmem [shape: f32[1,128], index: 16, kind: input, shape index: {}, may-alias: {2,5,9,11,13,16,20,22,24,26}]
  %s17 = inlined_call_operand.vmem [shape: f32[8,128], index: 17, kind: input, shape index: {}]
  %s18 = inlined_call_operand.vmem [shape: f32[8,1], index: 18, kind: input, shape index: {}, may-alias: {7,18}]
  %s19 = inlined_call_operand.vmem [shape: f32[8,128], index: 19, kind: input, shape index: {}]
  %s20 = inlined_call_operand.vmem [shape: f32[1,128], index: 20, kind: input, shape index: {}, may-alias: {2,5,9,11,13,16,20,22,24,26}]
  %s21 = inlined_call_operand.vmem [shape: bf16[128,128], index: 21, kind: input, shape index: {}]
  %s22 = inlined_call_operand.vmem [shape: f32[1,128], index: 22, kind: input, shape index: {}, may-alias: {2,5,9,11,13,16,20,22,24,26}]
  %s23 = inlined_call_operand.vmem [shape: bf16[128,128], index: 23, kind: input, shape index: {}]
  %s24 = inlined_call_operand.vmem [shape: f32[1,128], index: 24, kind: input, shape index: {}, may-alias: {2,5,9,11,13,16,20,22,24,26}]
  %s25 = inlined_call_operand.vmem [shape: bf16[128,128], index: 25, kind: input, shape index: {}]
  %s26 = inlined_call_operand.vmem [shape: f32[1,128], index: 26, kind: input, shape index: {}, may-alias: {2,5,9,11,13,16,20,22,24,26}]
  %s27 = inlined_call_operand.hbm [shape: f32[2,1,128], index: 27, kind: output, shape index: {}]
  %s28 = sld [smem:[#allocation0]]
  $region141: #{_lambda_.1} parent=0
    _
  %s30 = ssub.s32 1, %s28
  %s31 = scalar_select 0, %s30, %s28
  $region1: #{_lambda_.1} parent=0
    #allocation3 [shape = 'u8[1024]{0}', space=vmem, size = 0x400, scoped, tag = 'output window, operand 0']
    #allocation4 [shape = 's32[2]{0}', space=sflag, size = 0x8, scoped, tag = 'scoped memory for _lambda_.1']
    %32 = vsyncpa [#allocation4], 0
    %s33 = scalar_lea.sflag [#allocation4], 1
    %34 = vsyncpa %s33, 0
    loop: start=0, step=1, limit=4
    $region2: #{_lambda_.1} parent=1 // loop_pre_header
      _
    $region3: #{_lambda_.1} parent=1 // loop_header
      %s36 = sphi 0, %s40
      %p37 = scmp.ge.s32.totalorder %s36, 4
      %s46 = sphi 0, %s48
      %s49 = sphi 0, %s46
      %s50 = sphi 0, %s49
      %s66 = sphi 0, %s50
      %s70 = sphi 0, %s70
      %s72 = sphi 0, %s70
      %s73 = sphi 0, %s72
      %s87 = sphi 0, %s73
      %s91 = sphi 0, %s91
      %s93 = sphi 0, %s91
      %s94 = sphi 0, %s93
      %s108 = sphi 0, %s94
      %s112 = sphi 0, %s112
      %s114 = sphi 0, %s112
      %s115 = sphi 0, %s114
      %s129 = sphi 0, %s115
      %s133 = sphi 0, %s133
      %s135 = sphi 0, %s133
      %s136 = sphi 0, %s135
      %s150 = sphi 0, %s136
      %s154 = sphi 0, %s154
      %s156 = sphi 0, %s154
      %s157 = sphi 0, %s156
      %s171 = sphi 0, %s157
      %s175 = sphi 0, %s175
      %s177 = sphi 0, %s175
      %s178 = sphi 0, %s177
      %s192 = sphi 0, %s178
      %s196 = sphi 0, %s196
      %s198 = sphi 0, %s196
      %s199 = sphi 0, %s198
      %s213 = sphi 0, %s199
      %s217 = sphi 0, %s217
      %s219 = sphi 0, %s217
      %s220 = sphi 0, %s219
      %s234 = sphi 0, %s220
      %s238 = sphi 0, %s238
      %s240 = sphi 0, %s238
      %s241 = sphi 0, %s240
      %s255 = sphi 0, %s241
      %s259 = sphi 0, %s259
      %s261 = sphi 0, %s259
      %s262 = sphi 0, %s261
      %s276 = sphi 0, %s262
      %s280 = sphi 0, %s280
      %s282 = sphi 0, %s280
      %s283 = sphi 0, %s282
      %s297 = sphi 0, %s283
      %s301 = sphi 0, %s301
      %s303 = sphi 0, %s301
      %s304 = sphi 0, %s303
      %s318 = sphi 0, %s304
      %s322 = sphi 0, %s322
      %s324 = sphi 0, %s322
      %s325 = sphi 0, %s324
      %s339 = sphi 0, %s325
      %s343 = sphi 0, %s343
      %s345 = sphi 0, %s343
      %s346 = sphi 0, %s345
      %s360 = sphi 0, %s346
      %s364 = sphi 0, %s364
      %s366 = sphi 0, %s364
      %s367 = sphi 0, %s366
      %s381 = sphi 0, %s367
      %s385 = sphi 0, %s385
      %s387 = sphi 0, %s385
      %s388 = sphi 0, %s387
      %s402 = sphi 0, %s388
      %s406 = sphi 0, %s406
      %s408 = sphi 0, %s406
      %s409 = sphi 0, %s408
      %s423 = sphi 0, %s409
      %s427 = sphi 0, %s427
      %s429 = sphi 0, %s427
      %s430 = sphi 0, %s429
      %s444 = sphi 0, %s430
      %s448 = sphi 0, %s448
      %s450 = sphi 0, %s448
      %s451 = sphi 0, %s450
      %s465 = sphi 0, %s451
      %s469 = sphi 0, %s469
      %s471 = sphi 0, %s469
      %s472 = sphi 0, %s471
      %s486 = sphi 0, %s472
      %s490 = sphi 0, %s490
      %s492 = sphi 0, %s490
      %s493 = sphi 0, %s492
      %s507 = sphi 0, %s493
      %s511 = sphi 0, %s511
      %s513 = sphi 0, %s511
      %s514 = sphi 0, %s513
      %s528 = sphi 0, %s514
      %s532 = sphi 0, %s532
      %s534 = sphi 0, %s532
      %s535 = sphi 0, %s534
      %s549 = sphi 0, %s535
      %s553 = sphi 0, %s553
      %s555 = sphi 0, %s553
      %s556 = sphi 0, %s555
      %s570 = sphi 0, %s556
      %s574 = sphi 0, %s574
      %s576 = sphi 0, %s574
      %s577 = sphi 0, %s576
      %s591 = sphi 0, %s577
      %s595 = sphi 0, %s595
      %s597 = sphi 0, %s595
      %s598 = sphi 0, %s597
      %s612 = sphi 0, %s598
      %s618 = sphi 0, %s620
      %s621 = sphi 0, %s618
      %s622 = sphi 0, %s621
      %s638 = sphi 0, %s622
    $region4: #{_lambda_.1} parent=1 // loop_header_branch
      %39 = sbr.rel (%p37) target = $region8
    $region5: #{_lambda_.1} parent=1 // loop_body
      %s41 = ssub.s32 %s36, 1
      %s42 = ssub.s32 %s36, 2
      %s43 = sadd.s32 %s36, 1
      %s44 = ssub.s32 %s36, %s43
      %p45 = scmp.eq.s32.totalorder %s44, 0
      %s47 = sadd.s32 %s46, 1
      %s48 = scalar_select %p45, %s46, %s47
      %p51 = pneg %p45
      %p52 = scmp.eq.s32.totalorder %s36, 1
      %p53 = por %p51, %p52
      %p54 = scmp.ne.s32.totalorder %s46, %s49
      %p55 = scmp.eq.s32.totalorder %s36, 0
      %p56 = por %p54, %p55
      %p57 = scmp.ne.s32.totalorder %s46, %s49
      %p58 = scmp.eq.s32.totalorder %s41, 1
      %p59 = por %p57, %p58
      %p60 = scmp.ne.s32.totalorder %s49, %s50
      %p61 = scmp.eq.s32.totalorder %s41, 0
      %p62 = por %p60, %p61
      %p63 = scmp.ne.s32.totalorder %s49, %s50
      %p64 = scmp.eq.s32.totalorder %s42, 1
      %p65 = por %p63, %p64
      %p67 = scmp.ne.s32.totalorder %s50, %s66
      %p68 = scmp.eq.s32.totalorder %s42, 0
      %p69 = por %p67, %p68
      %s71 = sadd.s32 %s70, 1
      %p74 = scmp.eq.s32.totalorder %s36, 1
      %p75 = scmp.ne.s32.totalorder %s70, %s72
      %p76 = scmp.eq.s32.totalorder %s36, 0
      %p77 = por %p75, %p76
      %p78 = scmp.ne.s32.totalorder %s70, %s72
      %p79 = scmp.eq.s32.totalorder %s41, 1
      %p80 = por %p78, %p79
      %p81 = scmp.ne.s32.totalorder %s72, %s73
      %p82 = scmp.eq.s32.totalorder %s41, 0
      %p83 = por %p81, %p82
      %p84 = scmp.ne.s32.totalorder %s72, %s73
      %p85 = scmp.eq.s32.totalorder %s42, 1
      %p86 = por %p84, %p85
      %p88 = scmp.ne.s32.totalorder %s73, %s87
      %p89 = scmp.eq.s32.totalorder %s42, 0
      %p90 = por %p88, %p89
      %s92 = sadd.s32 %s91, 1
      %p95 = scmp.eq.s32.totalorder %s36, 1
      %p96 = scmp.ne.s32.totalorder %s91, %s93
      %p97 = scmp.eq.s32.totalorder %s36, 0
      %p98 = por %p96, %p97
      %p99 = scmp.ne.s32.totalorder %s91, %s93
      %p100 = scmp.eq.s32.totalorder %s41, 1
      %p101 = por %p99, %p100
      %p102 = scmp.ne.s32.totalorder %s93, %s94
      %p103 = scmp.eq.s32.totalorder %s41, 0
      %p104 = por %p102, %p103
      %p105 = scmp.ne.s32.totalorder %s93, %s94
      %p106 = scmp.eq.s32.totalorder %s42, 1
      %p107 = por %p105, %p106
      %p109 = scmp.ne.s32.totalorder %s94, %s108
      %p110 = scmp.eq.s32.totalorder %s42, 0
      %p111 = por %p109, %p110
      %s113 = sadd.s32 %s112, 1
      %p116 = scmp.eq.s32.totalorder %s36, 1
      %p117 = scmp.ne.s32.totalorder %s112, %s114
      %p118 = scmp.eq.s32.totalorder %s36, 0
      %p119 = por %p117, %p118
      %p120 = scmp.ne.s32.totalorder %s112, %s114
      %p121 = scmp.eq.s32.totalorder %s41, 1
      %p122 = por %p120, %p121
      %p123 = scmp.ne.s32.totalorder %s114, %s115
      %p124 = scmp.eq.s32.totalorder %s41, 0
      %p125 = por %p123, %p124
      %p126 = scmp.ne.s32.totalorder %s114, %s115
      %p127 = scmp.eq.s32.totalorder %s42, 1
      %p128 = por %p126, %p127
      %p130 = scmp.ne.s32.totalorder %s115, %s129
      %p131 = scmp.eq.s32.totalorder %s42, 0
      %p132 = por %p130, %p131
      %s134 = sadd.s32 %s133, 1
      %p137 = scmp.eq.s32.totalorder %s36, 1
      %p138 = scmp.ne.s32.totalorder %s133, %s135
      %p139 = scmp.eq.s32.totalorder %s36, 0
      %p140 = por %p138, %p139
      %p141 = scmp.ne.s32.totalorder %s133, %s135
      %p142 = scmp.eq.s32.totalorder %s41, 1
      %p143 = por %p141, %p142
      %p144 = scmp.ne.s32.totalorder %s135, %s136
      %p145 = scmp.eq.s32.totalorder %s41, 0
      %p146 = por %p144, %p145
      %p147 = scmp.ne.s32.totalorder %s135, %s136
      %p148 = scmp.eq.s32.totalorder %s42, 1
      %p149 = por %p147, %p148
      %p151 = scmp.ne.s32.totalorder %s136, %s150
      %p152 = scmp.eq.s32.totalorder %s42, 0
      %p153 = por %p151, %p152
      %s155 = sadd.s32 %s154, 1
      %p158 = scmp.eq.s32.totalorder %s36, 1
      %p159 = scmp.ne.s32.totalorder %s154, %s156
      %p160 = scmp.eq.s32.totalorder %s36, 0
      %p161 = por %p159, %p160
      %p162 = scmp.ne.s32.totalorder %s154, %s156
      %p163 = scmp.eq.s32.totalorder %s41, 1
      %p164 = por %p162, %p163
      %p165 = scmp.ne.s32.totalorder %s156, %s157
      %p166 = scmp.eq.s32.totalorder %s41, 0
      %p167 = por %p165, %p166
      %p168 = scmp.ne.s32.totalorder %s156, %s157
      %p169 = scmp.eq.s32.totalorder %s42, 1
      %p170 = por %p168, %p169
      %p172 = scmp.ne.s32.totalorder %s157, %s171
      %p173 = scmp.eq.s32.totalorder %s42, 0
      %p174 = por %p172, %p173
      %s176 = sadd.s32 %s175, 1
      %p179 = scmp.eq.s32.totalorder %s36, 1
      %p180 = scmp.ne.s32.totalorder %s175, %s177
      %p181 = scmp.eq.s32.totalorder %s36, 0
      %p182 = por %p180, %p181
      %p183 = scmp.ne.s32.totalorder %s175, %s177
      %p184 = scmp.eq.s32.totalorder %s41, 1
      %p185 = por %p183, %p184
      %p186 = scmp.ne.s32.totalorder %s177, %s178
      %p187 = scmp.eq.s32.totalorder %s41, 0
      %p188 = por %p186, %p187
      %p189 = scmp.ne.s32.totalorder %s177, %s178
      %p190 = scmp.eq.s32.totalorder %s42, 1
      %p191 = por %p189, %p190
      %p193 = scmp.ne.s32.totalorder %s178, %s192
      %p194 = scmp.eq.s32.totalorder %s42, 0
      %p195 = por %p193, %p194
      %s197 = sadd.s32 %s196, 1
      %p200 = scmp.eq.s32.totalorder %s36, 1
      %p201 = scmp.ne.s32.totalorder %s196, %s198
      %p202 = scmp.eq.s32.totalorder %s36, 0
      %p203 = por %p201, %p202
      %p204 = scmp.ne.s32.totalorder %s196, %s198
      %p205 = scmp.eq.s32.totalorder %s41, 1
      %p206 = por %p204, %p205
      %p207 = scmp.ne.s32.totalorder %s198, %s199
      %p208 = scmp.eq.s32.totalorder %s41, 0
      %p209 = por %p207, %p208
      %p210 = scmp.ne.s32.totalorder %s198, %s199
      %p211 = scmp.eq.s32.totalorder %s42, 1
      %p212 = por %p210, %p211
      %p214 = scmp.ne.s32.totalorder %s199, %s213
      %p215 = scmp.eq.s32.totalorder %s42, 0
      %p216 = por %p214, %p215
      %s218 = sadd.s32 %s217, 1
      %p221 = scmp.eq.s32.totalorder %s36, 1
      %p222 = scmp.ne.s32.totalorder %s217, %s219
      %p223 = scmp.eq.s32.totalorder %s36, 0
      %p224 = por %p222, %p223
      %p225 = scmp.ne.s32.totalorder %s217, %s219
      %p226 = scmp.eq.s32.totalorder %s41, 1
      %p227 = por %p225, %p226
      %p228 = scmp.ne.s32.totalorder %s219, %s220
      %p229 = scmp.eq.s32.totalorder %s41, 0
      %p230 = por %p228, %p229
      %p231 = scmp.ne.s32.totalorder %s219, %s220
      %p232 = scmp.eq.s32.totalorder %s42, 1
      %p233 = por %p231, %p232
      %p235 = scmp.ne.s32.totalorder %s220, %s234
      %p236 = scmp.eq.s32.totalorder %s42, 0
      %p237 = por %p235, %p236
      %s239 = sadd.s32 %s238, 1
      %p242 = scmp.eq.s32.totalorder %s36, 1
      %p243 = scmp.ne.s32.totalorder %s238, %s240
      %p244 = scmp.eq.s32.totalorder %s36, 0
      %p245 = por %p243, %p244
      %p246 = scmp.ne.s32.totalorder %s238, %s240
      %p247 = scmp.eq.s32.totalorder %s41, 1
      %p248 = por %p246, %p247
      %p249 = scmp.ne.s32.totalorder %s240, %s241
      %p250 = scmp.eq.s32.totalorder %s41, 0
      %p251 = por %p249, %p250
      %p252 = scmp.ne.s32.totalorder %s240, %s241
      %p253 = scmp.eq.s32.totalorder %s42, 1
      %p254 = por %p252, %p253
      %p256 = scmp.ne.s32.totalorder %s241, %s255
      %p257 = scmp.eq.s32.totalorder %s42, 0
      %p258 = por %p256, %p257
      %s260 = sadd.s32 %s259, 1
      %p263 = scmp.eq.s32.totalorder %s36, 1
      %p264 = scmp.ne.s32.totalorder %s259, %s261
      %p265 = scmp.eq.s32.totalorder %s36, 0
      %p266 = por %p264, %p265
      %p267 = scmp.ne.s32.totalorder %s259, %s261
      %p268 = scmp.eq.s32.totalorder %s41, 1
      %p269 = por %p267, %p268
      %p270 = scmp.ne.s32.totalorder %s261, %s262
      %p271 = scmp.eq.s32.totalorder %s41, 0
      %p272 = por %p270, %p271
      %p273 = scmp.ne.s32.totalorder %s261, %s262
      %p274 = scmp.eq.s32.totalorder %s42, 1
      %p275 = por %p273, %p274
      %p277 = scmp.ne.s32.totalorder %s262, %s276
      %p278 = scmp.eq.s32.totalorder %s42, 0
      %p279 = por %p277, %p278
      %s281 = sadd.s32 %s280, 1
      %p284 = scmp.eq.s32.totalorder %s36, 1
      %p285 = scmp.ne.s32.totalorder %s280, %s282
      %p286 = scmp.eq.s32.totalorder %s36, 0
      %p287 = por %p285, %p286
      %p288 = scmp.ne.s32.totalorder %s280, %s282
      %p289 = scmp.eq.s32.totalorder %s41, 1
      %p290 = por %p288, %p289
      %p291 = scmp.ne.s32.totalorder %s282, %s283
      %p292 = scmp.eq.s32.totalorder %s41, 0
      %p293 = por %p291, %p292
      %p294 = scmp.ne.s32.totalorder %s282, %s283
      %p295 = scmp.eq.s32.totalorder %s42, 1
      %p296 = por %p294, %p295
      %p298 = scmp.ne.s32.totalorder %s283, %s297
      %p299 = scmp.eq.s32.totalorder %s42, 0
      %p300 = por %p298, %p299
      %s302 = sadd.s32 %s301, 1
      %p305 = scmp.eq.s32.totalorder %s36, 1
      %p306 = scmp.ne.s32.totalorder %s301, %s303
      %p307 = scmp.eq.s32.totalorder %s36, 0
      %p308 = por %p306, %p307
      %p309 = scmp.ne.s32.totalorder %s301, %s303
      %p310 = scmp.eq.s32.totalorder %s41, 1
      %p311 = por %p309, %p310
      %p312 = scmp.ne.s32.totalorder %s303, %s304
      %p313 = scmp.eq.s32.totalorder %s41, 0
      %p314 = por %p312, %p313
      %p315 = scmp.ne.s32.totalorder %s303, %s304
      %p316 = scmp.eq.s32.totalorder %s42, 1
      %p317 = por %p315, %p316
      %p319 = scmp.ne.s32.totalorder %s304, %s318
      %p320 = scmp.eq.s32.totalorder %s42, 0
      %p321 = por %p319, %p320
      %s323 = sadd.s32 %s322, 1
      %p326 = scmp.eq.s32.totalorder %s36, 1
      %p327 = scmp.ne.s32.totalorder %s322, %s324
      %p328 = scmp.eq.s32.totalorder %s36, 0
      %p329 = por %p327, %p328
      %p330 = scmp.ne.s32.totalorder %s322, %s324
      %p331 = scmp.eq.s32.totalorder %s41, 1
      %p332 = por %p330, %p331
      %p333 = scmp.ne.s32.totalorder %s324, %s325
      %p334 = scmp.eq.s32.totalorder %s41, 0
      %p335 = por %p333, %p334
      %p336 = scmp.ne.s32.totalorder %s324, %s325
      %p337 = scmp.eq.s32.totalorder %s42, 1
      %p338 = por %p336, %p337
      %p340 = scmp.ne.s32.totalorder %s325, %s339
      %p341 = scmp.eq.s32.totalorder %s42, 0
      %p342 = por %p340, %p341
      %s344 = sadd.s32 %s343, 1
      %p347 = scmp.eq.s32.totalorder %s36, 1
      %p348 = scmp.ne.s32.totalorder %s343, %s345
      %p349 = scmp.eq.s32.totalorder %s36, 0
      %p350 = por %p348, %p349
      %p351 = scmp.ne.s32.totalorder %s343, %s345
      %p352 = scmp.eq.s32.totalorder %s41, 1
      %p353 = por %p351, %p352
      %p354 = scmp.ne.s32.totalorder %s345, %s346
      %p355 = scmp.eq.s32.totalorder %s41, 0
      %p356 = por %p354, %p355
      %p357 = scmp.ne.s32.totalorder %s345, %s346
      %p358 = scmp.eq.s32.totalorder %s42, 1
      %p359 = por %p357, %p358
      %p361 = scmp.ne.s32.totalorder %s346, %s360
      %p362 = scmp.eq.s32.totalorder %s42, 0
      %p363 = por %p361, %p362
      %s365 = sadd.s32 %s364, 1
      %p368 = scmp.eq.s32.totalorder %s36, 1
      %p369 = scmp.ne.s32.totalorder %s364, %s366
      %p370 = scmp.eq.s32.totalorder %s36, 0
      %p371 = por %p369, %p370
      %p372 = scmp.ne.s32.totalorder %s364, %s366
      %p373 = scmp.eq.s32.totalorder %s41, 1
      %p374 = por %p372, %p373
      %p375 = scmp.ne.s32.totalorder %s366, %s367
      %p376 = scmp.eq.s32.totalorder %s41, 0
      %p377 = por %p375, %p376
      %p378 = scmp.ne.s32.totalorder %s366, %s367
      %p379 = scmp.eq.s32.totalorder %s42, 1
      %p380 = por %p378, %p379
      %p382 = scmp.ne.s32.totalorder %s367, %s381
      %p383 = scmp.eq.s32.totalorder %s42, 0
      %p384 = por %p382, %p383
      %s386 = sadd.s32 %s385, 1
      %p389 = scmp.eq.s32.totalorder %s36, 1
      %p390 = scmp.ne.s32.totalorder %s385, %s387
      %p391 = scmp.eq.s32.totalorder %s36, 0
      %p392 = por %p390, %p391
      %p393 = scmp.ne.s32.totalorder %s385, %s387
      %p394 = scmp.eq.s32.totalorder %s41, 1
      %p395 = por %p393, %p394
      %p396 = scmp.ne.s32.totalorder %s387, %s388
      %p397 = scmp.eq.s32.totalorder %s41, 0
      %p398 = por %p396, %p397
      %p399 = scmp.ne.s32.totalorder %s387, %s388
      %p400 = scmp.eq.s32.totalorder %s42, 1
      %p401 = por %p399, %p400
      %p403 = scmp.ne.s32.totalorder %s388, %s402
      %p404 = scmp.eq.s32.totalorder %s42, 0
      %p405 = por %p403, %p404
      %s407 = sadd.s32 %s406, 1
      %p410 = scmp.eq.s32.totalorder %s36, 1
      %p411 = scmp.ne.s32.totalorder %s406, %s408
      %p412 = scmp.eq.s32.totalorder %s36, 0
      %p413 = por %p411, %p412
      %p414 = scmp.ne.s32.totalorder %s406, %s408
      %p415 = scmp.eq.s32.totalorder %s41, 1
      %p416 = por %p414, %p415
      %p417 = scmp.ne.s32.totalorder %s408, %s409
      %p418 = scmp.eq.s32.totalorder %s41, 0
      %p419 = por %p417, %p418
      %p420 = scmp.ne.s32.totalorder %s408, %s409
      %p421 = scmp.eq.s32.totalorder %s42, 1
      %p422 = por %p420, %p421
      %p424 = scmp.ne.s32.totalorder %s409, %s423
      %p425 = scmp.eq.s32.totalorder %s42, 0
      %p426 = por %p424, %p425
      %s428 = sadd.s32 %s427, 1
      %p431 = scmp.eq.s32.totalorder %s36, 1
      %p432 = scmp.ne.s32.totalorder %s427, %s429
      %p433 = scmp.eq.s32.totalorder %s36, 0
      %p434 = por %p432, %p433
      %p435 = scmp.ne.s32.totalorder %s427, %s429
      %p436 = scmp.eq.s32.totalorder %s41, 1
      %p437 = por %p435, %p436
      %p438 = scmp.ne.s32.totalorder %s429, %s430
      %p439 = scmp.eq.s32.totalorder %s41, 0
      %p440 = por %p438, %p439
      %p441 = scmp.ne.s32.totalorder %s429, %s430
      %p442 = scmp.eq.s32.totalorder %s42, 1
      %p443 = por %p441, %p442
      %p445 = scmp.ne.s32.totalorder %s430, %s444
      %p446 = scmp.eq.s32.totalorder %s42, 0
      %p447 = por %p445, %p446
      %s449 = sadd.s32 %s448, 1
      %p452 = scmp.eq.s32.totalorder %s36, 1
      %p453 = scmp.ne.s32.totalorder %s448, %s450
      %p454 = scmp.eq.s32.totalorder %s36, 0
      %p455 = por %p453, %p454
      %p456 = scmp.ne.s32.totalorder %s448, %s450
      %p457 = scmp.eq.s32.totalorder %s41, 1
      %p458 = por %p456, %p457
      %p459 = scmp.ne.s32.totalorder %s450, %s451
      %p460 = scmp.eq.s32.totalorder %s41, 0
      %p461 = por %p459, %p460
      %p462 = scmp.ne.s32.totalorder %s450, %s451
      %p463 = scmp.eq.s32.totalorder %s42, 1
      %p464 = por %p462, %p463
      %p466 = scmp.ne.s32.totalorder %s451, %s465
      %p467 = scmp.eq.s32.totalorder %s42, 0
      %p468 = por %p466, %p467
      %s470 = sadd.s32 %s469, 1
      %p473 = scmp.eq.s32.totalorder %s36, 1
      %p474 = scmp.ne.s32.totalorder %s469, %s471
      %p475 = scmp.eq.s32.totalorder %s36, 0
      %p476 = por %p474, %p475
      %p477 = scmp.ne.s32.totalorder %s469, %s471
      %p478 = scmp.eq.s32.totalorder %s41, 1
      %p479 = por %p477, %p478
      %p480 = scmp.ne.s32.totalorder %s471, %s472
      %p481 = scmp.eq.s32.totalorder %s41, 0
      %p482 = por %p480, %p481
      %p483 = scmp.ne.s32.totalorder %s471, %s472
      %p484 = scmp.eq.s32.totalorder %s42, 1
      %p485 = por %p483, %p484
      %p487 = scmp.ne.s32.totalorder %s472, %s486
      %p488 = scmp.eq.s32.totalorder %s42, 0
      %p489 = por %p487, %p488
      %s491 = sadd.s32 %s490, 1
      %p494 = scmp.eq.s32.totalorder %s36, 1
      %p495 = scmp.ne.s32.totalorder %s490, %s492
      %p496 = scmp.eq.s32.totalorder %s36, 0
      %p497 = por %p495, %p496
      %p498 = scmp.ne.s32.totalorder %s490, %s492
      %p499 = scmp.eq.s32.totalorder %s41, 1
      %p500 = por %p498, %p499
      %p501 = scmp.ne.s32.totalorder %s492, %s493
      %p502 = scmp.eq.s32.totalorder %s41, 0
      %p503 = por %p501, %p502
      %p504 = scmp.ne.s32.totalorder %s492, %s493
      %p505 = scmp.eq.s32.totalorder %s42, 1
      %p506 = por %p504, %p505
      %p508 = scmp.ne.s32.totalorder %s493, %s507
      %p509 = scmp.eq.s32.totalorder %s42, 0
      %p510 = por %p508, %p509
      %s512 = sadd.s32 %s511, 1
      %p515 = scmp.eq.s32.totalorder %s36, 1
      %p516 = scmp.ne.s32.totalorder %s511, %s513
      %p517 = scmp.eq.s32.totalorder %s36, 0
      %p518 = por %p516, %p517
      %p519 = scmp.ne.s32.totalorder %s511, %s513
      %p520 = scmp.eq.s32.totalorder %s41, 1
      %p521 = por %p519, %p520
      %p522 = scmp.ne.s32.totalorder %s513, %s514
      %p523 = scmp.eq.s32.totalorder %s41, 0
      %p524 = por %p522, %p523
      %p525 = scmp.ne.s32.totalorder %s513, %s514
      %p526 = scmp.eq.s32.totalorder %s42, 1
      %p527 = por %p525, %p526
      %p529 = scmp.ne.s32.totalorder %s514, %s528
      %p530 = scmp.eq.s32.totalorder %s42, 0
      %p531 = por %p529, %p530
      %s533 = sadd.s32 %s532, 1
      %p536 = scmp.eq.s32.totalorder %s36, 1
      %p537 = scmp.ne.s32.totalorder %s532, %s534
      %p538 = scmp.eq.s32.totalorder %s36, 0
      %p539 = por %p537, %p538
      %p540 = scmp.ne.s32.totalorder %s532, %s534
      %p541 = scmp.eq.s32.totalorder %s41, 1
      %p542 = por %p540, %p541
      %p543 = scmp.ne.s32.totalorder %s534, %s535
      %p544 = scmp.eq.s32.totalorder %s41, 0
      %p545 = por %p543, %p544
      %p546 = scmp.ne.s32.totalorder %s534, %s535
      %p547 = scmp.eq.s32.totalorder %s42, 1
      %p548 = por %p546, %p547
      %p550 = scmp.ne.s32.totalorder %s535, %s549
      %p551 = scmp.eq.s32.totalorder %s42, 0
      %p552 = por %p550, %p551
      %s554 = sadd.s32 %s553, 1
      %p557 = scmp.eq.s32.totalorder %s36, 1
      %p558 = scmp.ne.s32.totalorder %s553, %s555
      %p559 = scmp.eq.s32.totalorder %s36, 0
      %p560 = por %p558, %p559
      %p561 = scmp.ne.s32.totalorder %s553, %s555
      %p562 = scmp.eq.s32.totalorder %s41, 1
      %p563 = por %p561, %p562
      %p564 = scmp.ne.s32.totalorder %s555, %s556
      %p565 = scmp.eq.s32.totalorder %s41, 0
      %p566 = por %p564, %p565
      %p567 = scmp.ne.s32.totalorder %s555, %s556
      %p568 = scmp.eq.s32.totalorder %s42, 1
      %p569 = por %p567, %p568
      %p571 = scmp.ne.s32.totalorder %s556, %s570
      %p572 = scmp.eq.s32.totalorder %s42, 0
      %p573 = por %p571, %p572
      %s575 = sadd.s32 %s574, 1
      %p578 = scmp.eq.s32.totalorder %s36, 1
      %p579 = scmp.ne.s32.totalorder %s574, %s576
      %p580 = scmp.eq.s32.totalorder %s36, 0
      %p581 = por %p579, %p580
      %p582 = scmp.ne.s32.totalorder %s574, %s576
      %p583 = scmp.eq.s32.totalorder %s41, 1
      %p584 = por %p582, %p583
      %p585 = scmp.ne.s32.totalorder %s576, %s577
      %p586 = scmp.eq.s32.totalorder %s41, 0
      %p587 = por %p585, %p586
      %p588 = scmp.ne.s32.totalorder %s576, %s577
      %p589 = scmp.eq.s32.totalorder %s42, 1
      %p590 = por %p588, %p589
      %p592 = scmp.ne.s32.totalorder %s577, %s591
      %p593 = scmp.eq.s32.totalorder %s42, 0
      %p594 = por %p592, %p593
      %s596 = sadd.s32 %s595, 1
      %p599 = scmp.eq.s32.totalorder %s36, 1
      %p600 = scmp.ne.s32.totalorder %s595, %s597
      %p601 = scmp.eq.s32.totalorder %s36, 0
      %p602 = por %p600, %p601
      %p603 = scmp.ne.s32.totalorder %s595, %s597
      %p604 = scmp.eq.s32.totalorder %s41, 1
      %p605 = por %p603, %p604
      %p606 = scmp.ne.s32.totalorder %s597, %s598
      %p607 = scmp.eq.s32.totalorder %s41, 0
      %p608 = por %p606, %p607
      %p609 = scmp.ne.s32.totalorder %s597, %s598
      %p610 = scmp.eq.s32.totalorder %s42, 1
      %p611 = por %p609, %p610
      %p613 = scmp.ne.s32.totalorder %s598, %s612
      %p614 = scmp.eq.s32.totalorder %s42, 0
      %p615 = por %p613, %p614
      %s616 = ssub.s32 %s36, %s43
      %p617 = scmp.eq.s32.totalorder %s616, 0
      %s619 = sadd.s32 %s618, 1
      %s620 = scalar_select %p617, %s618, %s619
      %p623 = pneg %p617
      %p624 = scmp.eq.s32.totalorder %s36, 1
      %p625 = por %p623, %p624
      %p626 = scmp.ne.s32.totalorder %s618, %s621
      %p627 = scmp.eq.s32.totalorder %s36, 0
      %p628 = por %p626, %p627
      %p629 = scmp.ne.s32.totalorder %s618, %s621
      %p630 = scmp.eq.s32.totalorder %s41, 1
      %p631 = por %p629, %p630
      %p632 = scmp.ne.s32.totalorder %s621, %s622
      %p633 = scmp.eq.s32.totalorder %s41, 0
      %p634 = por %p632, %p633
      %p635 = scmp.ne.s32.totalorder %s621, %s622
      %p636 = scmp.eq.s32.totalorder %s42, 1
      %p637 = por %p635, %p636
      %p639 = scmp.ne.s32.totalorder %s622, %s638
      %p640 = scmp.eq.s32.totalorder %s42, 0
      %p641 = por %p639, %p640
      %p642 = scmp.le.s32.totalorder 1, %s36
      %p643 = scmp.lt.s32.totalorder %s36, 3
      %p644 = pnand %p642, %p643
      %p645 = pneg %p644
      // Predicated region
      $region9: #{_lambda_.1} parent=5 // pred_check
        _
      $region10: #{_lambda_.1} parent=5 // pred_check_branch
        %647 = sbr.rel (%p644) target = $region12
      $region11: #{_lambda_.1} parent=5 // pred_region
        %s648 = ssub.s32 %s36, 1
        // Predicated region
        $region13: #{_lambda_.1} parent=11 // pred_check
          %p649 = pneg %p83
        $region14: #{_lambda_.1} parent=11 // pred_check_branch
          %651 = sbr.rel (%p649) target = $region16
        $region15: #{_lambda_.1} parent=11 // pred_region
          _
        $region16: #{_lambda_.1} parent=11 // pred_fallthru
          _
        // Predicated region
        $region17: #{_lambda_.1} parent=11 // pred_check
          %p652 = pneg %p104
        $region18: #{_lambda_.1} parent=11 // pred_check_branch
          %654 = sbr.rel (%p652) target = $region20
        $region19: #{_lambda_.1} parent=11 // pred_region
          _
        $region20: #{_lambda_.1} parent=11 // pred_fallthru
          _
        // Predicated region
        $region21: #{_lambda_.1} parent=11 // pred_check
          %p655 = pneg %p125
        $region22: #{_lambda_.1} parent=11 // pred_check_branch
          %657 = sbr.rel (%p655) target = $region24
        $region23: #{_lambda_.1} parent=11 // pred_region
          _
        $region24: #{_lambda_.1} parent=11 // pred_fallthru
          _
        // Predicated region
        $region25: #{_lambda_.1} parent=11 // pred_check
          %p658 = pneg %p146
        $region26: #{_lambda_.1} parent=11 // pred_check_branch
          %660 = sbr.rel (%p658) target = $region28
        $region27: #{_lambda_.1} parent=11 // pred_region
          _
        $region28: #{_lambda_.1} parent=11 // pred_fallthru
          _
        // Predicated region
        $region29: #{_lambda_.1} parent=11 // pred_check
          %p661 = pneg %p167
        $region30: #{_lambda_.1} parent=11 // pred_check_branch
          %663 = sbr.rel (%p661) target = $region32
        $region31: #{_lambda_.1} parent=11 // pred_region
          _
        $region32: #{_lambda_.1} parent=11 // pred_fallthru
          _
        // Predicated region
        $region33: #{_lambda_.1} parent=11 // pred_check
          %p664 = pneg %p188
        $region34: #{_lambda_.1} parent=11 // pred_check_branch
          %666 = sbr.rel (%p664) target = $region36
        $region35: #{_lambda_.1} parent=11 // pred_region
          _
        $region36: #{_lambda_.1} parent=11 // pred_fallthru
          _
        // Predicated region
        $region37: #{_lambda_.1} parent=11 // pred_check
          %p667 = pneg %p209
        $region38: #{_lambda_.1} parent=11 // pred_check_branch
          %669 = sbr.rel (%p667) target = $region40
        $region39: #{_lambda_.1} parent=11 // pred_region
          _
        $region40: #{_lambda_.1} parent=11 // pred_fallthru
          _
        // Predicated region
        $region41: #{_lambda_.1} parent=11 // pred_check
          %p670 = pneg %p230
        $region42: #{_lambda_.1} parent=11 // pred_check_branch
          %672 = sbr.rel (%p670) target = $region44
        $region43: #{_lambda_.1} parent=11 // pred_region
          _
        $region44: #{_lambda_.1} parent=11 // pred_fallthru
          _
        // Predicated region
        $region45: #{_lambda_.1} parent=11 // pred_check
          %p673 = pneg %p251
        $region46: #{_lambda_.1} parent=11 // pred_check_branch
          %675 = sbr.rel (%p673) target = $region48
        $region47: #{_lambda_.1} parent=11 // pred_region
          _
        $region48: #{_lambda_.1} parent=11 // pred_fallthru
          _
        // Predicated region
        $region49: #{_lambda_.1} parent=11 // pred_check
          %p676 = pneg %p272
        $region50: #{_lambda_.1} parent=11 // pred_check_branch
          %678 = sbr.rel (%p676) target = $region52
        $region51: #{_lambda_.1} parent=11 // pred_region
          _
        $region52: #{_lambda_.1} parent=11 // pred_fallthru
          _
        // Predicated region
        $region53: #{_lambda_.1} parent=11 // pred_check
          %p679 = pneg %p293
        $region54: #{_lambda_.1} parent=11 // pred_check_branch
          %681 = sbr.rel (%p679) target = $region56
        $region55: #{_lambda_.1} parent=11 // pred_region
          _
        $region56: #{_lambda_.1} parent=11 // pred_fallthru
          _
        // Predicated region
        $region57: #{_lambda_.1} parent=11 // pred_check
          %p682 = pneg %p314
        $region58: #{_lambda_.1} parent=11 // pred_check_branch
          %684 = sbr.rel (%p682) target = $region60
        $region59: #{_lambda_.1} parent=11 // pred_region
          _
        $region60: #{_lambda_.1} parent=11 // pred_fallthru
          _
        // Predicated region
        $region61: #{_lambda_.1} parent=11 // pred_check
          %p685 = pneg %p335
        $region62: #{_lambda_.1} parent=11 // pred_check_branch
          %687 = sbr.rel (%p685) target = $region64
        $region63: #{_lambda_.1} parent=11 // pred_region
          _
        $region64: #{_lambda_.1} parent=11 // pred_fallthru
          _
        // Predicated region
        $region65: #{_lambda_.1} parent=11 // pred_check
          %p688 = pneg %p356
        $region66: #{_lambda_.1} parent=11 // pred_check_branch
          %690 = sbr.rel (%p688) target = $region68
        $region67: #{_lambda_.1} parent=11 // pred_region
          _
        $region68: #{_lambda_.1} parent=11 // pred_fallthru
          _
        // Predicated region
        $region69: #{_lambda_.1} parent=11 // pred_check
          %p691 = pneg %p377
        $region70: #{_lambda_.1} parent=11 // pred_check_branch
          %693 = sbr.rel (%p691) target = $region72
        $region71: #{_lambda_.1} parent=11 // pred_region
          _
        $region72: #{_lambda_.1} parent=11 // pred_fallthru
          _
        // Predicated region
        $region73: #{_lambda_.1} parent=11 // pred_check
          %p694 = pneg %p398
        $region74: #{_lambda_.1} parent=11 // pred_check_branch
          %696 = sbr.rel (%p694) target = $region76
        $region75: #{_lambda_.1} parent=11 // pred_region
          _
        $region76: #{_lambda_.1} parent=11 // pred_fallthru
          _
        // Predicated region
        $region77: #{_lambda_.1} parent=11 // pred_check
          %p697 = pneg %p419
        $region78: #{_lambda_.1} parent=11 // pred_check_branch
          %699 = sbr.rel (%p697) target = $region80
        $region79: #{_lambda_.1} parent=11 // pred_region
          _
        $region80: #{_lambda_.1} parent=11 // pred_fallthru
          _
        // Predicated region
        $region81: #{_lambda_.1} parent=11 // pred_check
          %p700 = pneg %p440
        $region82: #{_lambda_.1} parent=11 // pred_check_branch
          %702 = sbr.rel (%p700) target = $region84
        $region83: #{_lambda_.1} parent=11 // pred_region
          _
        $region84: #{_lambda_.1} parent=11 // pred_fallthru
          _
        // Predicated region
        $region85: #{_lambda_.1} parent=11 // pred_check
          %p703 = pneg %p461
        $region86: #{_lambda_.1} parent=11 // pred_check_branch
          %705 = sbr.rel (%p703) target = $region88
        $region87: #{_lambda_.1} parent=11 // pred_region
          _
        $region88: #{_lambda_.1} parent=11 // pred_fallthru
          _
        // Predicated region
        $region89: #{_lambda_.1} parent=11 // pred_check
          %p706 = pneg %p482
        $region90: #{_lambda_.1} parent=11 // pred_check_branch
          %708 = sbr.rel (%p706) target = $region92
        $region91: #{_lambda_.1} parent=11 // pred_region
          _
        $region92: #{_lambda_.1} parent=11 // pred_fallthru
          _
        // Predicated region
        $region93: #{_lambda_.1} parent=11 // pred_check
          %p709 = pneg %p503
        $region94: #{_lambda_.1} parent=11 // pred_check_branch
          %711 = sbr.rel (%p709) target = $region96
        $region95: #{_lambda_.1} parent=11 // pred_region
          _
        $region96: #{_lambda_.1} parent=11 // pred_fallthru
          _
        // Predicated region
        $region97: #{_lambda_.1} parent=11 // pred_check
          %p712 = pneg %p524
        $region98: #{_lambda_.1} parent=11 // pred_check_branch
          %714 = sbr.rel (%p712) target = $region100
        $region99: #{_lambda_.1} parent=11 // pred_region
          _
        $region100: #{_lambda_.1} parent=11 // pred_fallthru
          _
        // Predicated region
        $region101: #{_lambda_.1} parent=11 // pred_check
          %p715 = pneg %p545
        $region102: #{_lambda_.1} parent=11 // pred_check_branch
          %717 = sbr.rel (%p715) target = $region104
        $region103: #{_lambda_.1} parent=11 // pred_region
          _
        $region104: #{_lambda_.1} parent=11 // pred_fallthru
          _
        // Predicated region
        $region105: #{_lambda_.1} parent=11 // pred_check
          %p718 = pneg %p566
        $region106: #{_lambda_.1} parent=11 // pred_check_branch
          %720 = sbr.rel (%p718) target = $region108
        $region107: #{_lambda_.1} parent=11 // pred_region
          _
        $region108: #{_lambda_.1} parent=11 // pred_fallthru
          _
        // Predicated region
        $region109: #{_lambda_.1} parent=11 // pred_check
          %p721 = pneg %p587
        $region110: #{_lambda_.1} parent=11 // pred_check_branch
          %723 = sbr.rel (%p721) target = $region112
        $region111: #{_lambda_.1} parent=11 // pred_region
          _
        $region112: #{_lambda_.1} parent=11 // pred_fallthru
          _
        // Predicated region
        $region113: #{_lambda_.1} parent=11 // pred_check
          %p724 = pneg %p608
        $region114: #{_lambda_.1} parent=11 // pred_check_branch
          %726 = sbr.rel (%p724) target = $region116
        $region115: #{_lambda_.1} parent=11 // pred_region
          _
        $region116: #{_lambda_.1} parent=11 // pred_fallthru
          _
      $region12: #{_lambda_.1} parent=5 // pred_fallthru
        _
      %p727 = scmp.lt.s32.totalorder %s36, 2
      // Predicated region
      $region117: #{_lambda_.1} parent=5 // pred_check
        %p728 = pneg %p727
      $region118: #{_lambda_.1} parent=5 // pred_check_branch
        %730 = sbr.rel (%p728) target = $region120
      $region119: #{_lambda_.1} parent=5 // pred_region
        // Predicated region
        $region121: #{_lambda_.1} parent=119 // pred_check
          %p731 = pneg %p56
        $region122: #{_lambda_.1} parent=119 // pred_check_branch
          %733 = sbr.rel (%p731) target = $region124
        $region123: #{_lambda_.1} parent=119 // pred_region
          %p734 = scmp.lt.s32.totalorder %s36, 1
          %s735 = scalar_select %p734, %s36, 1
          %s736 = smul.addr %s735, 8
          %s737 = smul.addr %s736, 4
          %s738 = scalar_lea.vmem %s0, %s737
        $region124: #{_lambda_.1} parent=119 // pred_fallthru
          _
      $region120: #{_lambda_.1} parent=5 // pred_fallthru
        _
      %p739 = scmp.le.s32.totalorder 1, %s36
      %p740 = scmp.lt.s32.totalorder %s36, 3
      %p741 = pnand %p739, %p740
      %p742 = pneg %p741
      // Predicated region
      $region125: #{_lambda_.1} parent=5 // pred_check
        _
      $region126: #{_lambda_.1} parent=5 // pred_check_branch
        %744 = sbr.rel (%p741) target = $region128
      $region127: #{_lambda_.1} parent=5 // pred_region
        %s745 = ssub.s32 %s36, 1
        %p746 = scmp.lt.s32.totalorder %s41, 1
        %s747 = scalar_select %p746, %s41, 1
        %s748 = smul.addr %s747, 8
        %s749 = smul.addr %s748, 4
        %s750 = scalar_lea.vmem %s0, %s749
        %p751 = pneg %p62
        %p752 = pneg %p59
        %p753 = pneg %p83
        %p754 = pneg %p80
        %p755 = pneg %p104
        %p756 = pneg %p101
        %p757 = pneg %p125
        %p758 = pneg %p122
        %p759 = pneg %p146
        %p760 = pneg %p143
        %p761 = pneg %p167
        %p762 = pneg %p164
        %p763 = pneg %p188
        %p764 = pneg %p185
        %p765 = pneg %p209
        %p766 = pneg %p206
        %p767 = pneg %p230
        %p768 = pneg %p227
        %p769 = pneg %p251
        %p770 = pneg %p248
        %p771 = pneg %p272
        %p772 = pneg %p269
        %p773 = pneg %p293
        %p774 = pneg %p290
        %p775 = pneg %p314
        %p776 = pneg %p311
        %p777 = pneg %p335
        %p778 = pneg %p332
        %p779 = pneg %p356
        %p780 = pneg %p353
        %p781 = pneg %p377
        %p782 = pneg %p374
        %p783 = pneg %p398
        %p784 = pneg %p395
        %p785 = pneg %p419
        %p786 = pneg %p416
        %p787 = pneg %p440
        %p788 = pneg %p437
        %p789 = pneg %p461
        %p790 = pneg %p458
        %p791 = pneg %p482
        %p792 = pneg %p479
        %p793 = pneg %p503
        %p794 = pneg %p500
        %p795 = pneg %p524
        %p796 = pneg %p521
        %p797 = pneg %p545
        %p798 = pneg %p542
        %p799 = pneg %p566
        %p800 = pneg %p563
        %p801 = pneg %p587
        %p802 = pneg %p584
        %p803 = pneg %p608
        %p804 = pneg %p605
        %p805 = pneg %p634
        %p806 = pneg %p631
        %s807 = sand.u32 %s621, 1
        %s808 = scalar_lea.sflag [#allocation4], %s807
        %s809 = sand.u32 %s621, 1
        %s810 = scalar_lea.vmem [#allocation3], %s809
        %p811 = scmp.lt.s32.totalorder %s41, 1
        %s812 = scalar_select %p811, %s41, 1
        %s813 = smul.addr %s812, 8
        %s814 = smul.addr %s813, 4
        %s815 = scalar_lea.vmem %s0, %s814
        %v816 = vld [vmem:[%s815] sm:$0xf]
        %v817 = vld [vmem:[%s815 + $0x4] sm:$0xf]
        %v818 = vld [vmem:[%s815 + $0x8] sm:$0xf]
        %v819 = vld [vmem:[%s815 + $0xc] sm:$0xf]
        %v820 = vld [vmem:[%s815 + $0x10] sm:$0xf]
        %v821 = vld [vmem:[%s815 + $0x14] sm:$0xf]
        %v822 = vld [vmem:[%s815 + $0x18] sm:$0xf]
        %v823 = vld [vmem:[%s815 + $0x1c] sm:$0xf]
        %v824 = vld [vmem:[%s1] sm:$0xf]
        %v825 = vld [vmem:[%s1 + $0x4] sm:$0xf]
        %v826 = vld [vmem:[%s1 + $0x8] sm:$0xf]
        %v827 = vld [vmem:[%s1 + $0xc] sm:$0xf]
        %v828 = vld [vmem:[%s1 + $0x10] sm:$0xf]
        %v829 = vld [vmem:[%s1 + $0x14] sm:$0xf]
        %v830 = vld [vmem:[%s1 + $0x18] sm:$0xf]
        %v831 = vld [vmem:[%s1 + $0x1c] sm:$0xf]
        %v832 = vld [vmem:[%s1 + $0x20] sm:$0xf]
        %v833 = vld [vmem:[%s1 + $0x24] sm:$0xf]
        %v834 = vld [vmem:[%s1 + $0x28] sm:$0xf]
        %v835 = vld [vmem:[%s1 + $0x2c] sm:$0xf]
        %v836 = vld [vmem:[%s1 + $0x30] sm:$0xf]
        %v837 = vld [vmem:[%s1 + $0x34] sm:$0xf]
        %v838 = vld [vmem:[%s1 + $0x38] sm:$0xf]
        %v839 = vld [vmem:[%s1 + $0x3c] sm:$0xf]
        %v840 = vld [vmem:[%s2] sm:$0x1]
        %v842 = vperm.slane %v840, 0
        %v852 = vunpack.c.l.b16 %v816
        %v853 = vunpack.c.l.b16 %v817
        %v854 = vunpack.c.l.b16 %v818
        %v855 = vunpack.c.l.b16 %v819
        %v856 = vunpack.c.l.b16 %v820
        %v857 = vunpack.c.l.b16 %v821
        %v858 = vunpack.c.l.b16 %v822
        %v859 = vunpack.c.l.b16 %v823
        %v860 = vpack.c.b16 %v853, %v852
        %v861 = vpack.c.b16 %v855, %v854
        %v862 = vpack.c.b16 %v857, %v856
        %v863 = vpack.c.b16 %v859, %v858
        %v884 = vunpack.c.l.b16 %v824
        %v885 = vunpack.c.l.b16 %v825
        %v886 = vunpack.c.l.b16 %v826
        %v887 = vunpack.c.l.b16 %v827
        %v888 = vunpack.c.l.b16 %v828
        %v889 = vunpack.c.l.b16 %v829
        %v890 = vunpack.c.l.b16 %v830
        %v891 = vunpack.c.l.b16 %v831
        %v892 = vunpack.c.l.b16 %v832
        %v893 = vunpack.c.l.b16 %v833
        %v894 = vunpack.c.l.b16 %v834
        %v895 = vunpack.c.l.b16 %v835
        %v896 = vunpack.c.l.b16 %v836
        %v897 = vunpack.c.l.b16 %v837
        %v898 = vunpack.c.l.b16 %v838
        %v899 = vunpack.c.l.b16 %v839
        %v900 = vpack.c.b16 %v885, %v884
        %v901 = vpack.c.b16 %v887, %v886
        %v902 = vpack.c.b16 %v889, %v888
        %v903 = vpack.c.b16 %v891, %v890
        %v904 = vpack.c.b16 %v893, %v892
        %v905 = vpack.c.b16 %v895, %v894
        %v906 = vpack.c.b16 %v897, %v896
        %v907 = vpack.c.b16 %v899, %v898
        %916 = vmatpush.bf16.msra.mxu0 %v907
        %917 = vmatpush.bf16.msra.mxu0 %v906
        %918 = vmatpush.bf16.msra.mxu0 %v905
        %919 = vmatpush.bf16.msra.mxu0 %v904
        %920 = vmatpush.bf16.msra.mxu0 %v903
        %921 = vmatpush.bf16.msra.mxu0 %v902
        %922 = vmatpush.bf16.msra.mxu0 %v901
        %923 = vmatpush.bf16.msra.mxu0 %v900
        %924 = vmatmul.bf16.gmra.mxu0 %v860
        %v925 = vpop.f32.mrf.mxu0
        %v926 = vadd.f32 %v842, %v925
        %v927 = vpop.f32.mrf.mxu0
        %v928 = vadd.f32 %v842, %v927
        %929 = vmatmul.bf16.gmra.mxu0 %v861
        %v930 = vpop.f32.mrf.mxu0
        %v931 = vadd.f32 %v842, %v930
        %v932 = vpop.f32.mrf.mxu0
        %v933 = vadd.f32 %v842, %v932
        %934 = vmatmul.bf16.gmra.mxu0 %v862
        %v935 = vpop.f32.mrf.mxu0
        %v936 = vadd.f32 %v842, %v935
        %v937 = vpop.f32.mrf.mxu0
        %v938 = vadd.f32 %v842, %v937
        %939 = vmatmul.bf16.gmra.mxu0 %v863
        %v940 = vpop.f32.mrf.mxu0
        %v941 = vadd.f32 %v842, %v940
        %v942 = vpop.f32.mrf.mxu0
        %v943 = vadd.f32 %v842, %v942
        %944 = vdwg.mxu0
        %v945 = vxor.u32 %v926, 2147483648
        %v946 = vxor.u32 %v928, 2147483648
        %v947 = vxor.u32 %v931, 2147483648
        %v948 = vxor.u32 %v933, 2147483648
        %v949 = vxor.u32 %v936, 2147483648
        %v950 = vxor.u32 %v938, 2147483648
        %v951 = vxor.u32 %v941, 2147483648
        %v952 = vxor.u32 %v943, 2147483648
        %v953 = vmul.f32 %v945, 1.442695
        %v954 = vpow.pop %v953
        %v955 = vmul.f32 %v946, 1.442695
        %v956 = vpow.pop %v955
        %v957 = vmul.f32 %v947, 1.442695
        %v958 = vpow.pop %v957
        %v959 = vmul.f32 %v948, 1.442695
        %v960 = vpow.pop %v959
        %v961 = vmul.f32 %v949, 1.442695
        %v962 = vpow.pop %v961
        %v963 = vmul.f32 %v950, 1.442695
        %v964 = vpow.pop %v963
        %v965 = vmul.f32 %v951, 1.442695
        %v966 = vpow.pop %v965
        %v967 = vmul.f32 %v952, 1.442695
        %v968 = vpow.pop %v967
        %v969 = vadd.f32 %v954, 1.0
        %v970 = vadd.f32 %v956, 1.0
        %v971 = vadd.f32 %v958, 1.0
        %v972 = vadd.f32 %v960, 1.0
        %v973 = vadd.f32 %v962, 1.0
        %v974 = vadd.f32 %v964, 1.0
        %v975 = vadd.f32 %v966, 1.0
        %v976 = vadd.f32 %v968, 1.0
        %v977 = vrcp.pop %v969
        %v978 = vmul.f32 %v969, %v977
        %v979 = vsub.f32 1.0, %v978
        %v980 = vmul.f32 %v977, %v979
        %v981 = vadd.f32 %v977, %v980
        %vm982 = vweird.f32 %v969
        %vm983 = vweird.f32 %v977
        %vm984 = vmor %vm982, %vm983
        %v985 = vsel %vm984, %v977, %v981
        %v986 = vand.u32 2147483647, %v969
        %vm987 = vcmp.eq.f32.partialorder %v986, 8.507059e+37
        %v988 = vand.u32 %v969, 2147483648
        %v989 = vor.u32 1.1754944e-38, %v988
        %v990 = vsel %vm987, %v989, %v985
        %v991 = vmul.f32 1.0, %v990
        %v992 = vrcp.pop %v970
        %v993 = vmul.f32 %v970, %v992
        %v994 = vsub.f32 1.0, %v993
        %v995 = vmul.f32 %v992, %v994
        %v996 = vadd.f32 %v992, %v995
        %vm997 = vweird.f32 %v970
        %vm998 = vweird.f32 %v992
        %vm999 = vmor %vm997, %vm998
        %v1000 = vsel %vm999, %v992, %v996
        %v1001 = vand.u32 2147483647, %v970
        %vm1002 = vcmp.eq.f32.partialorder %v1001, 8.507059e+37
        %v1003 = vand.u32 %v970, 2147483648
        %v1004 = vor.u32 1.1754944e-38, %v1003
        %v1005 = vsel %vm1002, %v1004, %v1000
        %v1006 = vmul.f32 1.0, %v1005
        %v1007 = vrcp.pop %v971
        %v1008 = vmul.f32 %v971, %v1007
        %v1009 = vsub.f32 1.0, %v1008
        %v1010 = vmul.f32 %v1007, %v1009
        %v1011 = vadd.f32 %v1007, %v1010
        %vm1012 = vweird.f32 %v971
        %vm1013 = vweird.f32 %v1007
        %vm1014 = vmor %vm1012, %vm1013
        %v1015 = vsel %vm1014, %v1007, %v1011
        %v1016 = vand.u32 2147483647, %v971
        %vm1017 = vcmp.eq.f32.partialorder %v1016, 8.507059e+37
        %v1018 = vand.u32 %v971, 2147483648
        %v1019 = vor.u32 1.1754944e-38, %v1018
        %v1020 = vsel %vm1017, %v1019, %v1015
        %v1021 = vmul.f32 1.0, %v1020
        %v1022 = vrcp.pop %v972
        %v1023 = vmul.f32 %v972, %v1022
        %v1024 = vsub.f32 1.0, %v1023
        %v1025 = vmul.f32 %v1022, %v1024
        %v1026 = vadd.f32 %v1022, %v1025
        %vm1027 = vweird.f32 %v972
        %vm1028 = vweird.f32 %v1022
        %vm1029 = vmor %vm1027, %vm1028
        %v1030 = vsel %vm1029, %v1022, %v1026
        %v1031 = vand.u32 2147483647, %v972
        %vm1032 = vcmp.eq.f32.partialorder %v1031, 8.507059e+37
        %v1033 = vand.u32 %v972, 2147483648
        %v1034 = vor.u32 1.1754944e-38, %v1033
        %v1035 = vsel %vm1032, %v1034, %v1030
        %v1036 = vmul.f32 1.0, %v1035
        %v1037 = vrcp.pop %v973
        %v1038 = vmul.f32 %v973, %v1037
        %v1039 = vsub.f32 1.0, %v1038
        %v1040 = vmul.f32 %v1037, %v1039
        %v1041 = vadd.f32 %v1037, %v1040
        %vm1042 = vweird.f32 %v973
        %vm1043 = vweird.f32 %v1037
        %vm1044 = vmor %vm1042, %vm1043
        %v1045 = vsel %vm1044, %v1037, %v1041
        %v1046 = vand.u32 2147483647, %v973
        %vm1047 = vcmp.eq.f32.partialorder %v1046, 8.507059e+37
        %v1048 = vand.u32 %v973, 2147483648
        %v1049 = vor.u32 1.1754944e-38, %v1048
        %v1050 = vsel %vm1047, %v1049, %v1045
        %v1051 = vmul.f32 1.0, %v1050
        %v1052 = vrcp.pop %v974
        %v1053 = vmul.f32 %v974, %v1052
        %v1054 = vsub.f32 1.0, %v1053
        %v1055 = vmul.f32 %v1052, %v1054
        %v1056 = vadd.f32 %v1052, %v1055
        %vm1057 = vweird.f32 %v974
        %vm1058 = vweird.f32 %v1052
        %vm1059 = vmor %vm1057, %vm1058
        %v1060 = vsel %vm1059, %v1052, %v1056
        %v1061 = vand.u32 2147483647, %v974
        %vm1062 = vcmp.eq.f32.partialorder %v1061, 8.507059e+37
        %v1063 = vand.u32 %v974, 2147483648
        %v1064 = vor.u32 1.1754944e-38, %v1063
        %v1065 = vsel %vm1062, %v1064, %v1060
        %v1066 = vmul.f32 1.0, %v1065
        %v1067 = vrcp.pop %v975
        %v1068 = vmul.f32 %v975, %v1067
        %v1069 = vsub.f32 1.0, %v1068
        %v1070 = vmul.f32 %v1067, %v1069
        %v1071 = vadd.f32 %v1067, %v1070
        %vm1072 = vweird.f32 %v975
        %vm1073 = vweird.f32 %v1067
        %vm1074 = vmor %vm1072, %vm1073
        %v1075 = vsel %vm1074, %v1067, %v1071
        %v1076 = vand.u32 2147483647, %v975
        %vm1077 = vcmp.eq.f32.partialorder %v1076, 8.507059e+37
        %v1078 = vand.u32 %v975, 2147483648
        %v1079 = vor.u32 1.1754944e-38, %v1078
        %v1080 = vsel %vm1077, %v1079, %v1075
        %v1081 = vmul.f32 1.0, %v1080
        %v1082 = vrcp.pop %v976
        %v1083 = vmul.f32 %v976, %v1082
        %v1084 = vsub.f32 1.0, %v1083
        %v1085 = vmul.f32 %v1082, %v1084
        %v1086 = vadd.f32 %v1082, %v1085
        %vm1087 = vweird.f32 %v976
        %vm1088 = vweird.f32 %v1082
        %vm1089 = vmor %vm1087, %vm1088
        %v1090 = vsel %vm1089, %v1082, %v1086
        %v1091 = vand.u32 2147483647, %v976
        %vm1092 = vcmp.eq.f32.partialorder %v1091, 8.507059e+37
        %v1093 = vand.u32 %v976, 2147483648
        %v1094 = vor.u32 1.1754944e-38, %v1093
        %v1095 = vsel %vm1092, %v1094, %v1090
        %v1096 = vmul.f32 1.0, %v1095
        %v1097 = vmul.f32 %v926, %v991
        %v1098 = vmul.f32 %v928, %v1006
        %v1099 = vmul.f32 %v931, %v1021
        %v1100 = vmul.f32 %v933, %v1036
        %v1101 = vmul.f32 %v936, %v1051
        %v1102 = vmul.f32 %v938, %v1066
        %v1103 = vmul.f32 %v941, %v1081
        %v1104 = vmul.f32 %v943, %v1096
        %1105 = vst [vmem:[#allocation2] sm:$0xff] 0.0
        %1106 = vst [vmem:[#allocation2 + $0x8] sm:$0x3] 0.0
        %1107 = vst [vmem:[#allocation2 + $0x10] sm:$0xff] 0.0
        %1108 = vst [vmem:[#allocation2 + $0x18] sm:$0x3] 0.0
        %1109 = vst [vmem:[#allocation2 + $0x20] sm:$0xff] 0.0
        %1110 = vst [vmem:[#allocation2 + $0x28] sm:$0x3] 0.0
        %1111 = vst [vmem:[#allocation2 + $0x30] sm:$0xff] 0.0
        %1112 = vst [vmem:[#allocation2 + $0x38] sm:$0x3] 0.0
        %1113 = vst [vmem:[#allocation2 + $0x40] sm:$0xff] 0.0
        %1114 = vst [vmem:[#allocation2 + $0x48] sm:$0x3] 0.0
        %1115 = vst [vmem:[#allocation2 + $0x50] sm:$0xff] 0.0
        %1116 = vst [vmem:[#allocation2 + $0x58] sm:$0x3] 0.0
        %1117 = vst [vmem:[#allocation2 + $0x60] sm:$0xff] 0.0
        %1118 = vst [vmem:[#allocation2 + $0x68] sm:$0x3] 0.0
        %1119 = vst [vmem:[#allocation2 + $0x70] sm:$0xff] 0.0
        %1120 = vst [vmem:[#allocation2 + $0x78] sm:$0x3] 0.0
        %1121 = vst [vmem:[#allocation2 + $0x80] sm:$0xff] 0.0
        %1122 = vst [vmem:[#allocation2 + $0x88] sm:$0x3] 0.0
        %1123 = vst [vmem:[#allocation2 + $0x90] sm:$0xff] 0.0
        %1124 = vst [vmem:[#allocation2 + $0x98] sm:$0x3] 0.0
        %s1125 = scalar_lea.vmem [#allocation2], 16
        %1126 = vst [vmem:[%s1125 + $0x1] sm:$0xff] %v1097
        %1127 = vst [vmem:[%s1125 + $0x11] sm:$0xff] %v1098
        %1128 = vst [vmem:[%s1125 + $0x21] sm:$0xff] %v1099
        %1129 = vst [vmem:[%s1125 + $0x31] sm:$0xff] %v1100
        %1130 = vst [vmem:[%s1125 + $0x41] sm:$0xff] %v1101
        %1131 = vst [vmem:[%s1125 + $0x51] sm:$0xff] %v1102
        %1132 = vst [vmem:[%s1125 + $0x61] sm:$0xff] %v1103
        %1133 = vst [vmem:[%s1125 + $0x71] sm:$0xff] %v1104
        %v1134 = vld [vmem:[%s3] sm:$0xff]
        %v1135 = vld [vmem:[%s3 + $0x8] sm:$0x1]
        %v1136 = vld [vmem:[#allocation2] sm:$0xff]
        %v1137 = vld [vmem:[#allocation2 + $0x10] sm:$0xff]
        %v1138 = vld [vmem:[#allocation2 + $0x20] sm:$0xff]
        %v1139 = vld [vmem:[#allocation2 + $0x30] sm:$0xff]
        %v1140 = vld [vmem:[#allocation2 + $0x40] sm:$0xff]
        %v1141 = vld [vmem:[#allocation2 + $0x50] sm:$0xff]
        %v1142 = vld [vmem:[#allocation2 + $0x60] sm:$0xff]
        %v1143 = vld [vmem:[#allocation2 + $0x70] sm:$0xff]
        %v1144 = vperm.slane %v1134, 0
        %v1145 = vmul.f32 %v1136, %v1144
        %v1146 = vmul.f32 %v1137, %v1144
        %v1147 = vmul.f32 %v1138, %v1144
        %v1148 = vmul.f32 %v1139, %v1144
        %v1149 = vmul.f32 %v1140, %v1144
        %v1150 = vmul.f32 %v1141, %v1144
        %v1151 = vmul.f32 %v1142, %v1144
        %v1152 = vmul.f32 %v1143, %v1144
        %v1153 = vadd.f32 %v1145, 0.0
        %v1154 = vadd.f32 %v1146, 0.0
        %v1155 = vadd.f32 %v1147, 0.0
        %v1156 = vadd.f32 %v1148, 0.0
        %v1157 = vadd.f32 %v1149, 0.0
        %v1158 = vadd.f32 %v1150, 0.0
        %v1159 = vadd.f32 %v1151, 0.0
        %v1160 = vadd.f32 %v1152, 0.0
        %v1161 = vld [vmem:[#allocation2 + $0x1] sm:$0xff]
        %v1162 = vld [vmem:[#allocation2 + $0x11] sm:$0xff]
        %v1163 = vld [vmem:[#allocation2 + $0x21] sm:$0xff]
        %v1164 = vld [vmem:[#allocation2 + $0x31] sm:$0xff]
        %v1165 = vld [vmem:[#allocation2 + $0x41] sm:$0xff]
        %v1166 = vld [vmem:[#allocation2 + $0x51] sm:$0xff]
        %v1167 = vld [vmem:[#allocation2 + $0x61] sm:$0xff]
        %v1168 = vld [vmem:[#allocation2 + $0x71] sm:$0xff]
        %v1169 = vperm.slane %v1134, 1
        %v1170 = vmul.f32 %v1161, %v1169
        %v1171 = vmul.f32 %v1162, %v1169
        %v1172 = vmul.f32 %v1163, %v1169
        %v1173 = vmul.f32 %v1164, %v1169
        %v1174 = vmul.f32 %v1165, %v1169
        %v1175 = vmul.f32 %v1166, %v1169
        %v1176 = vmul.f32 %v1167, %v1169
        %v1177 = vmul.f32 %v1168, %v1169
        %v1178 = vadd.f32 %v1153, %v1170
        %v1179 = vadd.f32 %v1154, %v1171
        %v1180 = vadd.f32 %v1155, %v1172
        %v1181 = vadd.f32 %v1156, %v1173
        %v1182 = vadd.f32 %v1157, %v1174
        %v1183 = vadd.f32 %v1158, %v1175
        %v1184 = vadd.f32 %v1159, %v1176
        %v1185 = vadd.f32 %v1160, %v1177
        %v1186 = vld [vmem:[#allocation2 + $0x2] sm:$0xff]
        %v1187 = vld [vmem:[#allocation2 + $0x12] sm:$0xff]
        %v1188 = vld [vmem:[#allocation2 + $0x22] sm:$0xff]
        %v1189 = vld [vmem:[#allocation2 + $0x32] sm:$0xff]
        %v1190 = vld [vmem:[#allocation2 + $0x42] sm:$0xff]
        %v1191 = vld [vmem:[#allocation2 + $0x52] sm:$0xff]
        %v1192 = vld [vmem:[#allocation2 + $0x62] sm:$0xff]
        %v1193 = vld [vmem:[#allocation2 + $0x72] sm:$0xff]
        %v1194 = vperm.slane %v1134, 2
        %v1195 = vmul.f32 %v1186, %v1194
        %v1196 = vmul.f32 %v1187, %v1194
        %v1197 = vmul.f32 %v1188, %v1194
        %v1198 = vmul.f32 %v1189, %v1194
        %v1199 = vmul.f32 %v1190, %v1194
        %v1200 = vmul.f32 %v1191, %v1194
        %v1201 = vmul.f32 %v1192, %v1194
        %v1202 = vmul.f32 %v1193, %v1194
        %v1203 = vadd.f32 %v1178, %v1195
        %v1204 = vadd.f32 %v1179, %v1196
        %v1205 = vadd.f32 %v1180, %v1197
        %v1206 = vadd.f32 %v1181, %v1198
        %v1207 = vadd.f32 %v1182, %v1199
        %v1208 = vadd.f32 %v1183, %v1200
        %v1209 = vadd.f32 %v1184, %v1201
        %v1210 = vadd.f32 %v1185, %v1202
        %v1211 = vld [vmem:[%s1125] sm:$0xff]
        %v1212 = vld [vmem:[%s1125 + $0x10] sm:$0xff]
        %v1213 = vld [vmem:[%s1125 + $0x20] sm:$0xff]
        %v1214 = vld [vmem:[%s1125 + $0x30] sm:$0xff]
        %v1215 = vld [vmem:[%s1125 + $0x40] sm:$0xff]
        %v1216 = vld [vmem:[%s1125 + $0x50] sm:$0xff]
        %v1217 = vld [vmem:[%s1125 + $0x60] sm:$0xff]
        %v1218 = vld [vmem:[%s1125 + $0x70] sm:$0xff]
        %v1219 = vperm.slane %v1134, 3
        %v1220 = vmul.f32 %v1211, %v1219
        %v1221 = vmul.f32 %v1212, %v1219
        %v1222 = vmul.f32 %v1213, %v1219
        %v1223 = vmul.f32 %v1214, %v1219
        %v1224 = vmul.f32 %v1215, %v1219
        %v1225 = vmul.f32 %v1216, %v1219
        %v1226 = vmul.f32 %v1217, %v1219
        %v1227 = vmul.f32 %v1218, %v1219
        %v1228 = vadd.f32 %v1203, %v1220
        %v1229 = vadd.f32 %v1204, %v1221
        %v1230 = vadd.f32 %v1205, %v1222
        %v1231 = vadd.f32 %v1206, %v1223
        %v1232 = vadd.f32 %v1207, %v1224
        %v1233 = vadd.f32 %v1208, %v1225
        %v1234 = vadd.f32 %v1209, %v1226
        %v1235 = vadd.f32 %v1210, %v1227
        %v1236 = vld [vmem:[%s1125 + $0x1] sm:$0xff]
        %v1237 = vld [vmem:[%s1125 + $0x11] sm:$0xff]
        %v1238 = vld [vmem:[%s1125 + $0x21] sm:$0xff]
        %v1239 = vld [vmem:[%s1125 + $0x31] sm:$0xff]
        %v1240 = vld [vmem:[%s1125 + $0x41] sm:$0xff]
        %v1241 = vld [vmem:[%s1125 + $0x51] sm:$0xff]
        %v1242 = vld [vmem:[%s1125 + $0x61] sm:$0xff]
        %v1243 = vld [vmem:[%s1125 + $0x71] sm:$0xff]
        %v1244 = vperm.slane %v1134, 4
        %v1245 = vmul.f32 %v1236, %v1244
        %v1246 = vmul.f32 %v1237, %v1244
        %v1247 = vmul.f32 %v1238, %v1244
        %v1248 = vmul.f32 %v1239, %v1244
        %v1249 = vmul.f32 %v1240, %v1244
        %v1250 = vmul.f32 %v1241, %v1244
        %v1251 = vmul.f32 %v1242, %v1244
        %v1252 = vmul.f32 %v1243, %v1244
        %v1253 = vadd.f32 %v1228, %v1245
        %v1254 = vadd.f32 %v1229, %v1246
        %v1255 = vadd.f32 %v1230, %v1247
        %v1256 = vadd.f32 %v1231, %v1248
        %v1257 = vadd.f32 %v1232, %v1249
        %v1258 = vadd.f32 %v1233, %v1250
        %v1259 = vadd.f32 %v1234, %v1251
        %v1260 = vadd.f32 %v1235, %v1252
        %v1261 = vld [vmem:[%s1125 + $0x2] sm:$0xff]
        %v1262 = vld [vmem:[%s1125 + $0x12] sm:$0xff]
        %v1263 = vld [vmem:[%s1125 + $0x22] sm:$0xff]
        %v1264 = vld [vmem:[%s1125 + $0x32] sm:$0xff]
        %v1265 = vld [vmem:[%s1125 + $0x42] sm:$0xff]
        %v1266 = vld [vmem:[%s1125 + $0x52] sm:$0xff]
        %v1267 = vld [vmem:[%s1125 + $0x62] sm:$0xff]
        %v1268 = vld [vmem:[%s1125 + $0x72] sm:$0xff]
        %v1269 = vperm.slane %v1134, 5
        %v1270 = vmul.f32 %v1261, %v1269
        %v1271 = vmul.f32 %v1262, %v1269
        %v1272 = vmul.f32 %v1263, %v1269
        %v1273 = vmul.f32 %v1264, %v1269
        %v1274 = vmul.f32 %v1265, %v1269
        %v1275 = vmul.f32 %v1266, %v1269
        %v1276 = vmul.f32 %v1267, %v1269
        %v1277 = vmul.f32 %v1268, %v1269
        %v1278 = vadd.f32 %v1253, %v1270
        %v1279 = vadd.f32 %v1254, %v1271
        %v1280 = vadd.f32 %v1255, %v1272
        %v1281 = vadd.f32 %v1256, %v1273
        %v1282 = vadd.f32 %v1257, %v1274
        %v1283 = vadd.f32 %v1258, %v1275
        %v1284 = vadd.f32 %v1259, %v1276
        %v1285 = vadd.f32 %v1260, %v1277
        %s1286 = scalar_lea.vmem [#allocation2], 32
        %v1287 = vld [vmem:[%s1286] sm:$0xff]
        %v1288 = vld [vmem:[%s1286 + $0x10] sm:$0xff]
        %v1289 = vld [vmem:[%s1286 + $0x20] sm:$0xff]
        %v1290 = vld [vmem:[%s1286 + $0x30] sm:$0xff]
        %v1291 = vld [vmem:[%s1286 + $0x40] sm:$0xff]
        %v1292 = vld [vmem:[%s1286 + $0x50] sm:$0xff]
        %v1293 = vld [vmem:[%s1286 + $0x60] sm:$0xff]
        %v1294 = vld [vmem:[%s1286 + $0x70] sm:$0xff]
        %v1295 = vperm.slane %v1134, 6
        %v1296 = vmul.f32 %v1287, %v1295
        %v1297 = vmul.f32 %v1288, %v1295
        %v1298 = vmul.f32 %v1289, %v1295
        %v1299 = vmul.f32 %v1290, %v1295
        %v1300 = vmul.f32 %v1291, %v1295
        %v1301 = vmul.f32 %v1292, %v1295
        %v1302 = vmul.f32 %v1293, %v1295
        %v1303 = vmul.f32 %v1294, %v1295
        %v1304 = vadd.f32 %v1278, %v1296
        %v1305 = vadd.f32 %v1279, %v1297
        %v1306 = vadd.f32 %v1280, %v1298
        %v1307 = vadd.f32 %v1281, %v1299
        %v1308 = vadd.f32 %v1282, %v1300
        %v1309 = vadd.f32 %v1283, %v1301
        %v1310 = vadd.f32 %v1284, %v1302
        %v1311 = vadd.f32 %v1285, %v1303
        %v1312 = vld [vmem:[%s1286 + $0x1] sm:$0xff]
        %v1313 = vld [vmem:[%s1286 + $0x11] sm:$0xff]
        %v1314 = vld [vmem:[%s1286 + $0x21] sm:$0xff]
        %v1315 = vld [vmem:[%s1286 + $0x31] sm:$0xff]
        %v1316 = vld [vmem:[%s1286 + $0x41] sm:$0xff]
        %v1317 = vld [vmem:[%s1286 + $0x51] sm:$0xff]
        %v1318 = vld [vmem:[%s1286 + $0x61] sm:$0xff]
        %v1319 = vld [vmem:[%s1286 + $0x71] sm:$0xff]
        %v1320 = vperm.slane %v1134, 7
        %v1321 = vmul.f32 %v1312, %v1320
        %v1322 = vmul.f32 %v1313, %v1320
        %v1323 = vmul.f32 %v1314, %v1320
        %v1324 = vmul.f32 %v1315, %v1320
        %v1325 = vmul.f32 %v1316, %v1320
        %v1326 = vmul.f32 %v1317, %v1320
        %v1327 = vmul.f32 %v1318, %v1320
        %v1328 = vmul.f32 %v1319, %v1320
        %v1329 = vadd.f32 %v1304, %v1321
        %v1330 = vadd.f32 %v1305, %v1322
        %v1331 = vadd.f32 %v1306, %v1323
        %v1332 = vadd.f32 %v1307, %v1324
        %v1333 = vadd.f32 %v1308, %v1325
        %v1334 = vadd.f32 %v1309, %v1326
        %v1335 = vadd.f32 %v1310, %v1327
        %v1336 = vadd.f32 %v1311, %v1328
        %v1337 = vld [vmem:[%s1286 + $0x2] sm:$0xff]
        %v1338 = vld [vmem:[%s1286 + $0x12] sm:$0xff]
        %v1339 = vld [vmem:[%s1286 + $0x22] sm:$0xff]
        %v1340 = vld [vmem:[%s1286 + $0x32] sm:$0xff]
        %v1341 = vld [vmem:[%s1286 + $0x42] sm:$0xff]
        %v1342 = vld [vmem:[%s1286 + $0x52] sm:$0xff]
        %v1343 = vld [vmem:[%s1286 + $0x62] sm:$0xff]
        %v1344 = vld [vmem:[%s1286 + $0x72] sm:$0xff]
        %v1345 = vperm.slane %v1135, 0
        %v1346 = vmul.f32 %v1337, %v1345
        %v1347 = vmul.f32 %v1338, %v1345
        %v1348 = vmul.f32 %v1339, %v1345
        %v1349 = vmul.f32 %v1340, %v1345
        %v1350 = vmul.f32 %v1341, %v1345
        %v1351 = vmul.f32 %v1342, %v1345
        %v1352 = vmul.f32 %v1343, %v1345
        %v1353 = vmul.f32 %v1344, %v1345
        %v1354 = vadd.f32 %v1329, %v1346
        %v1355 = vadd.f32 %v1330, %v1347
        %v1356 = vadd.f32 %v1331, %v1348
        %v1357 = vadd.f32 %v1332, %v1349
        %v1358 = vadd.f32 %v1333, %v1350
        %v1359 = vadd.f32 %v1334, %v1351
        %v1360 = vadd.f32 %v1335, %v1352
        %v1361 = vadd.f32 %v1336, %v1353
        %v1362 = vld [vmem:[%s4] sm:$0x1]
        %v1364 = vperm.slane %v1362, 0
        %v1366 = vmul.f32 %v1354, %v1364
        %v1367 = vmul.f32 %v1355, %v1364
        %v1368 = vmul.f32 %v1356, %v1364
        %v1369 = vmul.f32 %v1357, %v1364
        %v1370 = vmul.f32 %v1358, %v1364
        %v1371 = vmul.f32 %v1359, %v1364
        %v1372 = vmul.f32 %v1360, %v1364
        %v1373 = vmul.f32 %v1361, %v1364
        %v1374 = vld [vmem:[%s5] sm:$0x1]
        %v1376 = vperm.slane %v1374, 0
        %v1378 = vadd.f32 %v1366, %v1376
        %v1379 = vadd.f32 %v1367, %v1376
        %v1380 = vadd.f32 %v1368, %v1376
        %v1381 = vadd.f32 %v1369, %v1376
        %v1382 = vadd.f32 %v1370, %v1376
        %v1383 = vadd.f32 %v1371, %v1376
        %v1384 = vadd.f32 %v1372, %v1376
        %v1385 = vadd.f32 %v1373, %v1376
        %v1386 = vxor.u32 %v1378, 2147483648
        %v1387 = vxor.u32 %v1379, 2147483648
        %v1388 = vxor.u32 %v1380, 2147483648
        %v1389 = vxor.u32 %v1381, 2147483648
        %v1390 = vxor.u32 %v1382, 2147483648
        %v1391 = vxor.u32 %v1383, 2147483648
        %v1392 = vxor.u32 %v1384, 2147483648
        %v1393 = vxor.u32 %v1385, 2147483648
        %v1394 = vmul.f32 %v1386, 1.442695
        %v1395 = vpow.pop %v1394
        %v1396 = vmul.f32 %v1387, 1.442695
        %v1397 = vpow.pop %v1396
        %v1398 = vmul.f32 %v1388, 1.442695
        %v1399 = vpow.pop %v1398
        %v1400 = vmul.f32 %v1389, 1.442695
        %v1401 = vpow.pop %v1400
        %v1402 = vmul.f32 %v1390, 1.442695
        %v1403 = vpow.pop %v1402
        %v1404 = vmul.f32 %v1391, 1.442695
        %v1405 = vpow.pop %v1404
        %v1406 = vmul.f32 %v1392, 1.442695
        %v1407 = vpow.pop %v1406
        %v1408 = vmul.f32 %v1393, 1.442695
        %v1409 = vpow.pop %v1408
        %v1410 = vadd.f32 %v1395, 1.0
        %v1411 = vadd.f32 %v1397, 1.0
        %v1412 = vadd.f32 %v1399, 1.0
        %v1413 = vadd.f32 %v1401, 1.0
        %v1414 = vadd.f32 %v1403, 1.0
        %v1415 = vadd.f32 %v1405, 1.0
        %v1416 = vadd.f32 %v1407, 1.0
        %v1417 = vadd.f32 %v1409, 1.0
        %v1418 = vrcp.pop %v1410
        %v1419 = vmul.f32 %v1410, %v1418
        %v1420 = vsub.f32 1.0, %v1419
        %v1421 = vmul.f32 %v1418, %v1420
        %v1422 = vadd.f32 %v1418, %v1421
        %vm1423 = vweird.f32 %v1410
        %vm1424 = vweird.f32 %v1418
        %vm1425 = vmor %vm1423, %vm1424
        %v1426 = vsel %vm1425, %v1418, %v1422
        %v1427 = vand.u32 2147483647, %v1410
        %vm1428 = vcmp.eq.f32.partialorder %v1427, 8.507059e+37
        %v1429 = vand.u32 %v1410, 2147483648
        %v1430 = vor.u32 1.1754944e-38, %v1429
        %v1431 = vsel %vm1428, %v1430, %v1426
        %v1432 = vmul.f32 1.0, %v1431
        %v1433 = vrcp.pop %v1411
        %v1434 = vmul.f32 %v1411, %v1433
        %v1435 = vsub.f32 1.0, %v1434
        %v1436 = vmul.f32 %v1433, %v1435
        %v1437 = vadd.f32 %v1433, %v1436
        %vm1438 = vweird.f32 %v1411
        %vm1439 = vweird.f32 %v1433
        %vm1440 = vmor %vm1438, %vm1439
        %v1441 = vsel %vm1440, %v1433, %v1437
        %v1442 = vand.u32 2147483647, %v1411
        %vm1443 = vcmp.eq.f32.partialorder %v1442, 8.507059e+37
        %v1444 = vand.u32 %v1411, 2147483648
        %v1445 = vor.u32 1.1754944e-38, %v1444
        %v1446 = vsel %vm1443, %v1445, %v1441
        %v1447 = vmul.f32 1.0, %v1446
        %v1448 = vrcp.pop %v1412
        %v1449 = vmul.f32 %v1412, %v1448
        %v1450 = vsub.f32 1.0, %v1449
        %v1451 = vmul.f32 %v1448, %v1450
        %v1452 = vadd.f32 %v1448, %v1451
        %vm1453 = vweird.f32 %v1412
        %vm1454 = vweird.f32 %v1448
        %vm1455 = vmor %vm1453, %vm1454
        %v1456 = vsel %vm1455, %v1448, %v1452
        %v1457 = vand.u32 2147483647, %v1412
        %vm1458 = vcmp.eq.f32.partialorder %v1457, 8.507059e+37
        %v1459 = vand.u32 %v1412, 2147483648
        %v1460 = vor.u32 1.1754944e-38, %v1459
        %v1461 = vsel %vm1458, %v1460, %v1456
        %v1462 = vmul.f32 1.0, %v1461
        %v1463 = vrcp.pop %v1413
        %v1464 = vmul.f32 %v1413, %v1463
        %v1465 = vsub.f32 1.0, %v1464
        %v1466 = vmul.f32 %v1463, %v1465
        %v1467 = vadd.f32 %v1463, %v1466
        %vm1468 = vweird.f32 %v1413
        %vm1469 = vweird.f32 %v1463
        %vm1470 = vmor %vm1468, %vm1469
        %v1471 = vsel %vm1470, %v1463, %v1467
        %v1472 = vand.u32 2147483647, %v1413
        %vm1473 = vcmp.eq.f32.partialorder %v1472, 8.507059e+37
        %v1474 = vand.u32 %v1413, 2147483648
        %v1475 = vor.u32 1.1754944e-38, %v1474
        %v1476 = vsel %vm1473, %v1475, %v1471
        %v1477 = vmul.f32 1.0, %v1476
        %v1478 = vrcp.pop %v1414
        %v1479 = vmul.f32 %v1414, %v1478
        %v1480 = vsub.f32 1.0, %v1479
        %v1481 = vmul.f32 %v1478, %v1480
        %v1482 = vadd.f32 %v1478, %v1481
        %vm1483 = vweird.f32 %v1414
        %vm1484 = vweird.f32 %v1478
        %vm1485 = vmor %vm1483, %vm1484
        %v1486 = vsel %vm1485, %v1478, %v1482
        %v1487 = vand.u32 2147483647, %v1414
        %vm1488 = vcmp.eq.f32.partialorder %v1487, 8.507059e+37
        %v1489 = vand.u32 %v1414, 2147483648
        %v1490 = vor.u32 1.1754944e-38, %v1489
        %v1491 = vsel %vm1488, %v1490, %v1486
        %v1492 = vmul.f32 1.0, %v1491
        %v1493 = vrcp.pop %v1415
        %v1494 = vmul.f32 %v1415, %v1493
        %v1495 = vsub.f32 1.0, %v1494
        %v1496 = vmul.f32 %v1493, %v1495
        %v1497 = vadd.f32 %v1493, %v1496
        %vm1498 = vweird.f32 %v1415
        %vm1499 = vweird.f32 %v1493
        %vm1500 = vmor %vm1498, %vm1499
        %v1501 = vsel %vm1500, %v1493, %v1497
        %v1502 = vand.u32 2147483647, %v1415
        %vm1503 = vcmp.eq.f32.partialorder %v1502, 8.507059e+37
        %v1504 = vand.u32 %v1415, 2147483648
        %v1505 = vor.u32 1.1754944e-38, %v1504
        %v1506 = vsel %vm1503, %v1505, %v1501
        %v1507 = vmul.f32 1.0, %v1506
        %v1508 = vrcp.pop %v1416
        %v1509 = vmul.f32 %v1416, %v1508
        %v1510 = vsub.f32 1.0, %v1509
        %v1511 = vmul.f32 %v1508, %v1510
        %v1512 = vadd.f32 %v1508, %v1511
        %vm1513 = vweird.f32 %v1416
        %vm1514 = vweird.f32 %v1508
        %vm1515 = vmor %vm1513, %vm1514
        %v1516 = vsel %vm1515, %v1508, %v1512
        %v1517 = vand.u32 2147483647, %v1416
        %vm1518 = vcmp.eq.f32.partialorder %v1517, 8.507059e+37
        %v1519 = vand.u32 %v1416, 2147483648
        %v1520 = vor.u32 1.1754944e-38, %v1519
        %v1521 = vsel %vm1518, %v1520, %v1516
        %v1522 = vmul.f32 1.0, %v1521
        %v1523 = vrcp.pop %v1417
        %v1524 = vmul.f32 %v1417, %v1523
        %v1525 = vsub.f32 1.0, %v1524
        %v1526 = vmul.f32 %v1523, %v1525
        %v1527 = vadd.f32 %v1523, %v1526
        %vm1528 = vweird.f32 %v1417
        %vm1529 = vweird.f32 %v1523
        %vm1530 = vmor %vm1528, %vm1529
        %v1531 = vsel %vm1530, %v1523, %v1527
        %v1532 = vand.u32 2147483647, %v1417
        %vm1533 = vcmp.eq.f32.partialorder %v1532, 8.507059e+37
        %v1534 = vand.u32 %v1417, 2147483648
        %v1535 = vor.u32 1.1754944e-38, %v1534
        %v1536 = vsel %vm1533, %v1535, %v1531
        %v1537 = vmul.f32 1.0, %v1536
        %v1538 = vmul.f32 %v1378, %v1432
        %v1539 = vmul.f32 %v1379, %v1447
        %v1540 = vmul.f32 %v1380, %v1462
        %v1541 = vmul.f32 %v1381, %v1477
        %v1542 = vmul.f32 %v1382, %v1492
        %v1543 = vmul.f32 %v1383, %v1507
        %v1544 = vmul.f32 %v1384, %v1522
        %v1545 = vmul.f32 %v1385, %v1537
        %v1546 = vld [vmem:[%s6] sm:$0xff]
        %v1547 = vld [vmem:[%s7] sm:$0xff]
        %v1548 = vld [vmem:[%s8] sm:$0xff]
        %v1549 = vld [vmem:[%s9] sm:$0x1]
        %v1550 = vadd.f32 %v1538, %v1539
        %v1551 = vadd.f32 %v1550, %v1540
        %v1552 = vadd.f32 %v1551, %v1541
        %v1553 = vadd.f32 %v1552, %v1542
        %v1554 = vadd.f32 %v1553, %v1543
        %v1555 = vadd.f32 %v1554, %v1544
        %v1556 = vadd.f32 %v1555, %v1545
        %v1557 = vrot.slane %v1556, 4
        %v1558 = vadd.f32 %v1556, %v1557
        %v1559 = vrot.slane %v1558, 2
        %v1560 = vadd.f32 %v1558, %v1559
        %v1561 = vrot.slane %v1560, 1
        %v1562 = vadd.f32 %v1560, %v1561
        %v1563 = vrcp.pop 64.0
        %v1564 = vmul.f32 64.0, %v1563
        %v1565 = vsub.f32 1.0, %v1564
        %v1566 = vmul.f32 %v1563, %v1565
        %v1567 = vadd.f32 %v1563, %v1566
        %vm1568 = vweird.f32 %v1563
        %v1569 = vsel %vm1568, %v1563, %v1567
        %v1570 = vmul.f32 %v1562, %v1569
        %v1571 = vmul.f32 %v1546, %v1570
        %1572 = vadd.xlane.f32.xlu0 %v1571
        %v1573 = vpop.xlane.xlu0 %1572
        %v1574 = vadd.f32 %v1573, %v1547
        %v1575 = vxor.u32 %v1574, 2147483648
        %v1576 = vmul.f32 %v1575, 1.442695
        %v1577 = vpow.pop %v1576
        %v1578 = vadd.f32 %v1577, 1.0
        %v1579 = vrcp.pop %v1578
        %v1580 = vmul.f32 %v1578, %v1579
        %v1581 = vsub.f32 1.0, %v1580
        %v1582 = vmul.f32 %v1579, %v1581
        %v1583 = vadd.f32 %v1579, %v1582
        %vm1584 = vweird.f32 %v1578
        %vm1585 = vweird.f32 %v1579
        %vm1586 = vmor %vm1584, %vm1585
        %v1587 = vsel %vm1586, %v1579, %v1583
        %v1588 = vand.u32 2147483647, %v1578
        %vm1589 = vcmp.eq.f32.partialorder %v1588, 8.507059e+37
        %v1590 = vand.u32 %v1578, 2147483648
        %v1591 = vor.u32 1.1754944e-38, %v1590
        %v1592 = vsel %vm1589, %v1591, %v1587
        %v1593 = vmul.f32 1.0, %v1592
        %v1594 = vmul.f32 %v1574, %v1593
        %1596 = vset.pattern.permute.xlu0 0
        %1597 = vperm.xlu0 %1596, %v1594
        %v1598 = vpop.permute.xlu0 %1597
        %v1600 = vmul.f32 %v1548, %v1598
        %v1601 = vrot.slane %v1600, 4
        %v1602 = vadd.f32 %v1600, %v1601
        %v1603 = vrot.slane %v1602, 2
        %v1604 = vadd.f32 %v1602, %v1603
        %v1605 = vrot.slane %v1604, 1
        %v1606 = vadd.f32 %v1604, %v1605
        %v1607 = vadd.f32 %v1606, %v1549
        %v1608 = vxor.u32 %v1607, 2147483648
        %v1609 = vmul.f32 %v1608, 1.442695
        %v1610 = vpow.pop %v1609
        %v1611 = vadd.f32 %v1610, 1.0
        %v1612 = vrcp.pop %v1611
        %v1613 = vmul.f32 %v1611, %v1612
        %v1614 = vsub.f32 1.0, %v1613
        %v1615 = vmul.f32 %v1612, %v1614
        %v1616 = vadd.f32 %v1612, %v1615
        %vm1617 = vweird.f32 %v1611
        %vm1618 = vweird.f32 %v1612
        %vm1619 = vmor %vm1617, %vm1618
        %v1620 = vsel %vm1619, %v1612, %v1616
        %v1621 = vand.u32 2147483647, %v1611
        %vm1622 = vcmp.eq.f32.partialorder %v1621, 8.507059e+37
        %v1623 = vand.u32 %v1611, 2147483648
        %v1624 = vor.u32 1.1754944e-38, %v1623
        %v1625 = vsel %vm1622, %v1624, %v1620
        %v1626 = vmul.f32 1.0, %v1625
        %v1627 = vperm.slane %v1626, 0
        %v1628 = vmul.f32 %v1538, %v1627
        %v1629 = vmul.f32 %v1539, %v1627
        %v1630 = vmul.f32 %v1540, %v1627
        %v1631 = vmul.f32 %v1541, %v1627
        %v1632 = vmul.f32 %v1542, %v1627
        %v1633 = vmul.f32 %v1543, %v1627
        %v1634 = vmul.f32 %v1544, %v1627
        %v1635 = vmul.f32 %v1545, %v1627
        %v1636 = vpack.c.bf16 %v1629, %v1628
        %v1637 = vpack.c.bf16 %v1631, %v1630
        %v1638 = vpack.c.bf16 %v1633, %v1632
        %v1639 = vpack.c.bf16 %v1635, %v1634
        %v1640 = vld [vmem:[%s10] sm:$0xf]
        %v1641 = vld [vmem:[%s10 + $0x4] sm:$0xf]
        %v1642 = vld [vmem:[%s10 + $0x8] sm:$0xf]
        %v1643 = vld [vmem:[%s10 + $0xc] sm:$0xf]
        %v1644 = vld [vmem:[%s10 + $0x10] sm:$0xf]
        %v1645 = vld [vmem:[%s10 + $0x14] sm:$0xf]
        %v1646 = vld [vmem:[%s10 + $0x18] sm:$0xf]
        %v1647 = vld [vmem:[%s10 + $0x1c] sm:$0xf]
        %v1648 = vld [vmem:[%s10 + $0x20] sm:$0xf]
        %v1649 = vld [vmem:[%s10 + $0x24] sm:$0xf]
        %v1650 = vld [vmem:[%s10 + $0x28] sm:$0xf]
        %v1651 = vld [vmem:[%s10 + $0x2c] sm:$0xf]
        %v1652 = vld [vmem:[%s10 + $0x30] sm:$0xf]
        %v1653 = vld [vmem:[%s10 + $0x34] sm:$0xf]
        %v1654 = vld [vmem:[%s10 + $0x38] sm:$0xf]
        %v1655 = vld [vmem:[%s10 + $0x3c] sm:$0xf]
        %v1656 = vld [vmem:[%s11] sm:$0x1]
        %v1658 = vperm.slane %v1656, 0
        %v1676 = vunpack.c.l.b16 %v1640
        %v1677 = vunpack.c.l.b16 %v1641
        %v1678 = vunpack.c.l.b16 %v1642
        %v1679 = vunpack.c.l.b16 %v1643
        %v1680 = vunpack.c.l.b16 %v1644
        %v1681 = vunpack.c.l.b16 %v1645
        %v1682 = vunpack.c.l.b16 %v1646
        %v1683 = vunpack.c.l.b16 %v1647
        %v1684 = vunpack.c.l.b16 %v1648
        %v1685 = vunpack.c.l.b16 %v1649
        %v1686 = vunpack.c.l.b16 %v1650
        %v1687 = vunpack.c.l.b16 %v1651
        %v1688 = vunpack.c.l.b16 %v1652
        %v1689 = vunpack.c.l.b16 %v1653
        %v1690 = vunpack.c.l.b16 %v1654
        %v1691 = vunpack.c.l.b16 %v1655
        %v1692 = vpack.c.b16 %v1677, %v1676
        %v1693 = vpack.c.b16 %v1679, %v1678
        %v1694 = vpack.c.b16 %v1681, %v1680
        %v1695 = vpack.c.b16 %v1683, %v1682
        %v1696 = vpack.c.b16 %v1685, %v1684
        %v1697 = vpack.c.b16 %v1687, %v1686
        %v1698 = vpack.c.b16 %v1689, %v1688
        %v1699 = vpack.c.b16 %v1691, %v1690
        %1708 = vmatpush.bf16.msra.mxu0 %v1699
        %1709 = vmatpush.bf16.msra.mxu0 %v1698
        %1710 = vmatpush.bf16.msra.mxu0 %v1697
        %1711 = vmatpush.bf16.msra.mxu0 %v1696
        %1712 = vmatpush.bf16.msra.mxu0 %v1695
        %1713 = vmatpush.bf16.msra.mxu0 %v1694
        %1714 = vmatpush.bf16.msra.mxu0 %v1693
        %1715 = vmatpush.bf16.msra.mxu0 %v1692
        %1716 = vmatmul.bf16.gmra.mxu0 %v1636
        %v1717 = vpop.f32.mrf.mxu0
        %v1718 = vadd.f32 %v1658, %v1717
        %v1719 = vpop.f32.mrf.mxu0
        %v1720 = vadd.f32 %v1658, %v1719
        %1721 = vmatmul.bf16.gmra.mxu0 %v1637
        %v1722 = vpop.f32.mrf.mxu0
        %v1723 = vadd.f32 %v1658, %v1722
        %v1724 = vpop.f32.mrf.mxu0
        %v1725 = vadd.f32 %v1658, %v1724
        %1726 = vmatmul.bf16.gmra.mxu0 %v1638
        %v1727 = vpop.f32.mrf.mxu0
        %v1728 = vadd.f32 %v1658, %v1727
        %v1729 = vpop.f32.mrf.mxu0
        %v1730 = vadd.f32 %v1658, %v1729
        %1731 = vmatmul.bf16.gmra.mxu0 %v1639
        %v1732 = vpop.f32.mrf.mxu0
        %v1733 = vadd.f32 %v1658, %v1732
        %v1734 = vpop.f32.mrf.mxu0
        %v1735 = vadd.f32 %v1658, %v1734
        %1736 = vdwg.mxu0
        %v1737 = vadd.f32 %v1718, %v1097
        %v1738 = vadd.f32 %v1720, %v1098
        %v1739 = vadd.f32 %v1723, %v1099
        %v1740 = vadd.f32 %v1725, %v1100
        %v1741 = vadd.f32 %v1728, %v1101
        %v1742 = vadd.f32 %v1730, %v1102
        %v1743 = vadd.f32 %v1733, %v1103
        %v1744 = vadd.f32 %v1735, %v1104
        %v1745 = vpack.c.bf16 %v1738, %v1737
        %v1746 = vpack.c.bf16 %v1740, %v1739
        %v1747 = vpack.c.bf16 %v1742, %v1741
        %v1748 = vpack.c.bf16 %v1744, %v1743
        %v1749 = vld [vmem:[%s12] sm:$0xf]
        %v1750 = vld [vmem:[%s12 + $0x4] sm:$0xf]
        %v1751 = vld [vmem:[%s12 + $0x8] sm:$0xf]
        %v1752 = vld [vmem:[%s12 + $0xc] sm:$0xf]
        %v1753 = vld [vmem:[%s12 + $0x10] sm:$0xf]
        %v1754 = vld [vmem:[%s12 + $0x14] sm:$0xf]
        %v1755 = vld [vmem:[%s12 + $0x18] sm:$0xf]
        %v1756 = vld [vmem:[%s12 + $0x1c] sm:$0xf]
        %v1757 = vld [vmem:[%s12 + $0x20] sm:$0xf]
        %v1758 = vld [vmem:[%s12 + $0x24] sm:$0xf]
        %v1759 = vld [vmem:[%s12 + $0x28] sm:$0xf]
        %v1760 = vld [vmem:[%s12 + $0x2c] sm:$0xf]
        %v1761 = vld [vmem:[%s12 + $0x30] sm:$0xf]
        %v1762 = vld [vmem:[%s12 + $0x34] sm:$0xf]
        %v1763 = vld [vmem:[%s12 + $0x38] sm:$0xf]
        %v1764 = vld [vmem:[%s12 + $0x3c] sm:$0xf]
        %v1765 = vld [vmem:[%s13] sm:$0x1]
        %v1767 = vperm.slane %v1765, 0
        %v1785 = vunpack.c.l.b16 %v1749
        %v1786 = vunpack.c.l.b16 %v1750
        %v1787 = vunpack.c.l.b16 %v1751
        %v1788 = vunpack.c.l.b16 %v1752
        %v1789 = vunpack.c.l.b16 %v1753
        %v1790 = vunpack.c.l.b16 %v1754
        %v1791 = vunpack.c.l.b16 %v1755
        %v1792 = vunpack.c.l.b16 %v1756
        %v1793 = vunpack.c.l.b16 %v1757
        %v1794 = vunpack.c.l.b16 %v1758
        %v1795 = vunpack.c.l.b16 %v1759
        %v1796 = vunpack.c.l.b16 %v1760
        %v1797 = vunpack.c.l.b16 %v1761
        %v1798 = vunpack.c.l.b16 %v1762
        %v1799 = vunpack.c.l.b16 %v1763
        %v1800 = vunpack.c.l.b16 %v1764
        %v1801 = vpack.c.b16 %v1786, %v1785
        %v1802 = vpack.c.b16 %v1788, %v1787
        %v1803 = vpack.c.b16 %v1790, %v1789
        %v1804 = vpack.c.b16 %v1792, %v1791
        %v1805 = vpack.c.b16 %v1794, %v1793
        %v1806 = vpack.c.b16 %v1796, %v1795
        %v1807 = vpack.c.b16 %v1798, %v1797
        %v1808 = vpack.c.b16 %v1800, %v1799
        %1817 = vmatpush.bf16.msra.mxu0 %v1808
        %1818 = vmatpush.bf16.msra.mxu0 %v1807
        %1819 = vmatpush.bf16.msra.mxu0 %v1806
        %1820 = vmatpush.bf16.msra.mxu0 %v1805
        %1821 = vmatpush.bf16.msra.mxu0 %v1804
        %1822 = vmatpush.bf16.msra.mxu0 %v1803
        %1823 = vmatpush.bf16.msra.mxu0 %v1802
        %1824 = vmatpush.bf16.msra.mxu0 %v1801
        %1825 = vmatmul.bf16.gmra.mxu0 %v1745
        %v1826 = vpop.f32.mrf.mxu0
        %v1827 = vadd.f32 %v1767, %v1826
        %v1828 = vpop.f32.mrf.mxu0
        %v1829 = vadd.f32 %v1767, %v1828
        %1830 = vmatmul.bf16.gmra.mxu0 %v1746
        %v1831 = vpop.f32.mrf.mxu0
        %v1832 = vadd.f32 %v1767, %v1831
        %v1833 = vpop.f32.mrf.mxu0
        %v1834 = vadd.f32 %v1767, %v1833
        %1835 = vmatmul.bf16.gmra.mxu0 %v1747
        %v1836 = vpop.f32.mrf.mxu0
        %v1837 = vadd.f32 %v1767, %v1836
        %v1838 = vpop.f32.mrf.mxu0
        %v1839 = vadd.f32 %v1767, %v1838
        %1840 = vmatmul.bf16.gmra.mxu0 %v1748
        %v1841 = vpop.f32.mrf.mxu0
        %v1842 = vadd.f32 %v1767, %v1841
        %v1843 = vpop.f32.mrf.mxu0
        %v1844 = vadd.f32 %v1767, %v1843
        %1845 = vdwg.mxu0
        %v1846 = vxor.u32 %v1827, 2147483648
        %v1847 = vxor.u32 %v1829, 2147483648
        %v1848 = vxor.u32 %v1832, 2147483648
        %v1849 = vxor.u32 %v1834, 2147483648
        %v1850 = vxor.u32 %v1837, 2147483648
        %v1851 = vxor.u32 %v1839, 2147483648
        %v1852 = vxor.u32 %v1842, 2147483648
        %v1853 = vxor.u32 %v1844, 2147483648
        %v1854 = vmul.f32 %v1846, 1.442695
        %v1855 = vpow.pop %v1854
        %v1856 = vmul.f32 %v1847, 1.442695
        %v1857 = vpow.pop %v1856
        %v1858 = vmul.f32 %v1848, 1.442695
        %v1859 = vpow.pop %v1858
        %v1860 = vmul.f32 %v1849, 1.442695
        %v1861 = vpow.pop %v1860
        %v1862 = vmul.f32 %v1850, 1.442695
        %v1863 = vpow.pop %v1862
        %v1864 = vmul.f32 %v1851, 1.442695
        %v1865 = vpow.pop %v1864
        %v1866 = vmul.f32 %v1852, 1.442695
        %v1867 = vpow.pop %v1866
        %v1868 = vmul.f32 %v1853, 1.442695
        %v1869 = vpow.pop %v1868
        %v1870 = vadd.f32 %v1855, 1.0
        %v1871 = vadd.f32 %v1857, 1.0
        %v1872 = vadd.f32 %v1859, 1.0
        %v1873 = vadd.f32 %v1861, 1.0
        %v1874 = vadd.f32 %v1863, 1.0
        %v1875 = vadd.f32 %v1865, 1.0
        %v1876 = vadd.f32 %v1867, 1.0
        %v1877 = vadd.f32 %v1869, 1.0
        %v1878 = vrcp.pop %v1870
        %v1879 = vmul.f32 %v1870, %v1878
        %v1880 = vsub.f32 1.0, %v1879
        %v1881 = vmul.f32 %v1878, %v1880
        %v1882 = vadd.f32 %v1878, %v1881
        %vm1883 = vweird.f32 %v1870
        %vm1884 = vweird.f32 %v1878
        %vm1885 = vmor %vm1883, %vm1884
        %v1886 = vsel %vm1885, %v1878, %v1882
        %v1887 = vand.u32 2147483647, %v1870
        %vm1888 = vcmp.eq.f32.partialorder %v1887, 8.507059e+37
        %v1889 = vand.u32 %v1870, 2147483648
        %v1890 = vor.u32 1.1754944e-38, %v1889
        %v1891 = vsel %vm1888, %v1890, %v1886
        %v1892 = vmul.f32 1.0, %v1891
        %v1893 = vrcp.pop %v1871
        %v1894 = vmul.f32 %v1871, %v1893
        %v1895 = vsub.f32 1.0, %v1894
        %v1896 = vmul.f32 %v1893, %v1895
        %v1897 = vadd.f32 %v1893, %v1896
        %vm1898 = vweird.f32 %v1871
        %vm1899 = vweird.f32 %v1893
        %vm1900 = vmor %vm1898, %vm1899
        %v1901 = vsel %vm1900, %v1893, %v1897
        %v1902 = vand.u32 2147483647, %v1871
        %vm1903 = vcmp.eq.f32.partialorder %v1902, 8.507059e+37
        %v1904 = vand.u32 %v1871, 2147483648
        %v1905 = vor.u32 1.1754944e-38, %v1904
        %v1906 = vsel %vm1903, %v1905, %v1901
        %v1907 = vmul.f32 1.0, %v1906
        %v1908 = vrcp.pop %v1872
        %v1909 = vmul.f32 %v1872, %v1908
        %v1910 = vsub.f32 1.0, %v1909
        %v1911 = vmul.f32 %v1908, %v1910
        %v1912 = vadd.f32 %v1908, %v1911
        %vm1913 = vweird.f32 %v1872
        %vm1914 = vweird.f32 %v1908
        %vm1915 = vmor %vm1913, %vm1914
        %v1916 = vsel %vm1915, %v1908, %v1912
        %v1917 = vand.u32 2147483647, %v1872
        %vm1918 = vcmp.eq.f32.partialorder %v1917, 8.507059e+37
        %v1919 = vand.u32 %v1872, 2147483648
        %v1920 = vor.u32 1.1754944e-38, %v1919
        %v1921 = vsel %vm1918, %v1920, %v1916
        %v1922 = vmul.f32 1.0, %v1921
        %v1923 = vrcp.pop %v1873
        %v1924 = vmul.f32 %v1873, %v1923
        %v1925 = vsub.f32 1.0, %v1924
        %v1926 = vmul.f32 %v1923, %v1925
        %v1927 = vadd.f32 %v1923, %v1926
        %vm1928 = vweird.f32 %v1873
        %vm1929 = vweird.f32 %v1923
        %vm1930 = vmor %vm1928, %vm1929
        %v1931 = vsel %vm1930, %v1923, %v1927
        %v1932 = vand.u32 2147483647, %v1873
        %vm1933 = vcmp.eq.f32.partialorder %v1932, 8.507059e+37
        %v1934 = vand.u32 %v1873, 2147483648
        %v1935 = vor.u32 1.1754944e-38, %v1934
        %v1936 = vsel %vm1933, %v1935, %v1931
        %v1937 = vmul.f32 1.0, %v1936
        %v1938 = vrcp.pop %v1874
        %v1939 = vmul.f32 %v1874, %v1938
        %v1940 = vsub.f32 1.0, %v1939
        %v1941 = vmul.f32 %v1938, %v1940
        %v1942 = vadd.f32 %v1938, %v1941
        %vm1943 = vweird.f32 %v1874
        %vm1944 = vweird.f32 %v1938
        %vm1945 = vmor %vm1943, %vm1944
        %v1946 = vsel %vm1945, %v1938, %v1942
        %v1947 = vand.u32 2147483647, %v1874
        %vm1948 = vcmp.eq.f32.partialorder %v1947, 8.507059e+37
        %v1949 = vand.u32 %v1874, 2147483648
        %v1950 = vor.u32 1.1754944e-38, %v1949
        %v1951 = vsel %vm1948, %v1950, %v1946
        %v1952 = vmul.f32 1.0, %v1951
        %v1953 = vrcp.pop %v1875
        %v1954 = vmul.f32 %v1875, %v1953
        %v1955 = vsub.f32 1.0, %v1954
        %v1956 = vmul.f32 %v1953, %v1955
        %v1957 = vadd.f32 %v1953, %v1956
        %vm1958 = vweird.f32 %v1875
        %vm1959 = vweird.f32 %v1953
        %vm1960 = vmor %vm1958, %vm1959
        %v1961 = vsel %vm1960, %v1953, %v1957
        %v1962 = vand.u32 2147483647, %v1875
        %vm1963 = vcmp.eq.f32.partialorder %v1962, 8.507059e+37
        %v1964 = vand.u32 %v1875, 2147483648
        %v1965 = vor.u32 1.1754944e-38, %v1964
        %v1966 = vsel %vm1963, %v1965, %v1961
        %v1967 = vmul.f32 1.0, %v1966
        %v1968 = vrcp.pop %v1876
        %v1969 = vmul.f32 %v1876, %v1968
        %v1970 = vsub.f32 1.0, %v1969
        %v1971 = vmul.f32 %v1968, %v1970
        %v1972 = vadd.f32 %v1968, %v1971
        %vm1973 = vweird.f32 %v1876
        %vm1974 = vweird.f32 %v1968
        %vm1975 = vmor %vm1973, %vm1974
        %v1976 = vsel %vm1975, %v1968, %v1972
        %v1977 = vand.u32 2147483647, %v1876
        %vm1978 = vcmp.eq.f32.partialorder %v1977, 8.507059e+37
        %v1979 = vand.u32 %v1876, 2147483648
        %v1980 = vor.u32 1.1754944e-38, %v1979
        %v1981 = vsel %vm1978, %v1980, %v1976
        %v1982 = vmul.f32 1.0, %v1981
        %v1983 = vrcp.pop %v1877
        %v1984 = vmul.f32 %v1877, %v1983
        %v1985 = vsub.f32 1.0, %v1984
        %v1986 = vmul.f32 %v1983, %v1985
        %v1987 = vadd.f32 %v1983, %v1986
        %vm1988 = vweird.f32 %v1877
        %vm1989 = vweird.f32 %v1983
        %vm1990 = vmor %vm1988, %vm1989
        %v1991 = vsel %vm1990, %v1983, %v1987
        %v1992 = vand.u32 2147483647, %v1877
        %vm1993 = vcmp.eq.f32.partialorder %v1992, 8.507059e+37
        %v1994 = vand.u32 %v1877, 2147483648
        %v1995 = vor.u32 1.1754944e-38, %v1994
        %v1996 = vsel %vm1993, %v1995, %v1991
        %v1997 = vmul.f32 1.0, %v1996
        %v1998 = vmul.f32 %v1827, %v1892
        %v1999 = vmul.f32 %v1829, %v1907
        %v2000 = vmul.f32 %v1832, %v1922
        %v2001 = vmul.f32 %v1834, %v1937
        %v2002 = vmul.f32 %v1837, %v1952
        %v2003 = vmul.f32 %v1839, %v1967
        %v2004 = vmul.f32 %v1842, %v1982
        %v2005 = vmul.f32 %v1844, %v1997
        %2006 = vst [vmem:[%s1125 + $0x1] sm:$0xff] %v1998
        %2007 = vst [vmem:[%s1125 + $0x11] sm:$0xff] %v1999
        %2008 = vst [vmem:[%s1125 + $0x21] sm:$0xff] %v2000
        %2009 = vst [vmem:[%s1125 + $0x31] sm:$0xff] %v2001
        %2010 = vst [vmem:[%s1125 + $0x41] sm:$0xff] %v2002
        %2011 = vst [vmem:[%s1125 + $0x51] sm:$0xff] %v2003
        %2012 = vst [vmem:[%s1125 + $0x61] sm:$0xff] %v2004
        %2013 = vst [vmem:[%s1125 + $0x71] sm:$0xff] %v2005
        %v2014 = vld [vmem:[%s14] sm:$0xff]
        %v2015 = vld [vmem:[%s14 + $0x8] sm:$0x1]
        %v2016 = vld [vmem:[#allocation2] ss:$2 sm:$0xf]
        %v2017 = vperm.slane %v2014, 0
        %v2018 = vmul.f32 %v2016, %v2017
        %v2019 = vadd.f32 %v2018, 0.0
        %s2020 = scalar_lea.vmem [#allocation2], 1
        %v2021 = vld [vmem:[%s2020] ss:$2 sm:$0xf]
        %v2022 = vperm.slane %v2014, 1
        %v2023 = vmul.f32 %v2021, %v2022
        %v2024 = vadd.f32 %v2019, %v2023
        %s2025 = scalar_lea.vmem [#allocation2], 2
        %v2026 = vld [vmem:[%s2025] ss:$2 sm:$0xf]
        %v2027 = vperm.slane %v2014, 2
        %v2028 = vmul.f32 %v2026, %v2027
        %v2029 = vadd.f32 %v2024, %v2028
        %v2030 = vld [vmem:[%s1125] ss:$2 sm:$0xf]
        %v2031 = vperm.slane %v2014, 3
        %v2032 = vmul.f32 %v2030, %v2031
        %v2033 = vadd.f32 %v2029, %v2032
        %s2034 = scalar_lea.vmem %s1125, 1 [#allocation2]
        %v2035 = vld [vmem:[%s2034] ss:$2 sm:$0xf]
        %v2036 = vperm.slane %v2014, 4
        %v2037 = vmul.f32 %v2035, %v2036
        %v2038 = vadd.f32 %v2033, %v2037
        %s2039 = scalar_lea.vmem %s1125, 2 [#allocation2]
        %v2040 = vld [vmem:[%s2039] ss:$2 sm:$0xf]
        %v2041 = vperm.slane %v2014, 5
        %v2042 = vmul.f32 %v2040, %v2041
        %v2043 = vadd.f32 %v2038, %v2042
        %v2044 = vld [vmem:[%s1286] ss:$2 sm:$0xf]
        %v2045 = vperm.slane %v2014, 6
        %v2046 = vmul.f32 %v2044, %v2045
        %v2047 = vadd.f32 %v2043, %v2046
        %s2048 = scalar_lea.vmem %s1286, 1 [#allocation2]
        %v2049 = vld [vmem:[%s2048] ss:$2 sm:$0xf]
        %v2050 = vperm.slane %v2014, 7
        %v2051 = vmul.f32 %v2049, %v2050
        %v2052 = vadd.f32 %v2047, %v2051
        %s2053 = scalar_lea.vmem %s1286, 2 [#allocation2]
        %v2054 = vld [vmem:[%s2053] ss:$2 sm:$0xf]
        %v2055 = vperm.slane %v2015, 0
        %v2056 = vmul.f32 %v2054, %v2055
        %v2057 = vadd.f32 %v2052, %v2056
        %v2058 = vmul.f32 %v2044, %v2017
        %v2059 = vadd.f32 %v2058, 0.0
        %v2060 = vmul.f32 %v2049, %v2022
        %v2061 = vadd.f32 %v2059, %v2060
        %v2062 = vmul.f32 %v2054, %v2027
        %v2063 = vadd.f32 %v2061, %v2062
        %s2064 = scalar_lea.vmem [#allocation2], 48
        %v2065 = vld [vmem:[%s2064] ss:$2 sm:$0xf]
        %v2066 = vmul.f32 %v2065, %v2031
        %v2067 = vadd.f32 %v2063, %v2066
        %s2068 = scalar_lea.vmem %s2064, 1 [#allocation2]
        %v2069 = vld [vmem:[%s2068] ss:$2 sm:$0xf]
        %v2070 = vmul.f32 %v2069, %v2036
        %v2071 = vadd.f32 %v2067, %v2070
        %s2072 = scalar_lea.vmem %s2064, 2 [#allocation2]
        %v2073 = vld [vmem:[%s2072] ss:$2 sm:$0xf]
        %v2074 = vmul.f32 %v2073, %v2041
        %v2075 = vadd.f32 %v2071, %v2074
        %s2076 = scalar_lea.vmem [#allocation2], 64
        %v2077 = vld [vmem:[%s2076] ss:$2 sm:$0xf]
        %v2078 = vmul.f32 %v2077, %v2045
        %v2079 = vadd.f32 %v2075, %v2078
        %s2080 = scalar_lea.vmem %s2076, 1 [#allocation2]
        %v2081 = vld [vmem:[%s2080] ss:$2 sm:$0xf]
        %v2082 = vmul.f32 %v2081, %v2050
        %v2083 = vadd.f32 %v2079, %v2082
        %s2084 = scalar_lea.vmem %s2076, 2 [#allocation2]
        %v2085 = vld [vmem:[%s2084] ss:$2 sm:$0xf]
        %v2086 = vmul.f32 %v2085, %v2055
        %v2087 = vadd.f32 %v2083, %v2086
        %v2088 = vmul.f32 %v2077, %v2017
        %v2089 = vadd.f32 %v2088, 0.0
        %v2090 = vmul.f32 %v2081, %v2022
        %v2091 = vadd.f32 %v2089, %v2090
        %v2092 = vmul.f32 %v2085, %v2027
        %v2093 = vadd.f32 %v2091, %v2092
        %s2094 = scalar_lea.vmem [#allocation2], 80
        %v2095 = vld [vmem:[%s2094] ss:$2 sm:$0xf]
        %v2096 = vmul.f32 %v2095, %v2031
        %v2097 = vadd.f32 %v2093, %v2096
        %s2098 = scalar_lea.vmem %s2094, 1 [#allocation2]
        %v2099 = vld [vmem:[%s2098] ss:$2 sm:$0xf]
        %v2100 = vmul.f32 %v2099, %v2036
        %v2101 = vadd.f32 %v2097, %v2100
        %s2102 = scalar_lea.vmem %s2094, 2 [#allocation2]
        %v2103 = vld [vmem:[%s2102] ss:$2 sm:$0xf]
        %v2104 = vmul.f32 %v2103, %v2041
        %v2105 = vadd.f32 %v2101, %v2104
        %s2106 = scalar_lea.vmem [#allocation2], 96
        %v2107 = vld [vmem:[%s2106] ss:$2 sm:$0xf]
        %v2108 = vmul.f32 %v2107, %v2045
        %v2109 = vadd.f32 %v2105, %v2108
        %s2110 = scalar_lea.vmem %s2106, 1 [#allocation2]
        %v2111 = vld [vmem:[%s2110] ss:$2 sm:$0xf]
        %v2112 = vmul.f32 %v2111, %v2050
        %v2113 = vadd.f32 %v2109, %v2112
        %s2114 = scalar_lea.vmem %s2106, 2 [#allocation2]
        %v2115 = vld [vmem:[%s2114] ss:$2 sm:$0xf]
        %v2116 = vmul.f32 %v2115, %v2055
        %v2117 = vadd.f32 %v2113, %v2116
        %v2118 = vmul.f32 %v2107, %v2017
        %v2119 = vadd.f32 %v2118, 0.0
        %v2120 = vmul.f32 %v2111, %v2022
        %v2121 = vadd.f32 %v2119, %v2120
        %v2122 = vmul.f32 %v2115, %v2027
        %v2123 = vadd.f32 %v2121, %v2122
        %s2124 = scalar_lea.vmem [#allocation2], 112
        %v2125 = vld [vmem:[%s2124] ss:$2 sm:$0xf]
        %v2126 = vmul.f32 %v2125, %v2031
        %v2127 = vadd.f32 %v2123, %v2126
        %s2128 = scalar_lea.vmem %s2124, 1 [#allocation2]
        %v2129 = vld [vmem:[%s2128] ss:$2 sm:$0xf]
        %v2130 = vmul.f32 %v2129, %v2036
        %v2131 = vadd.f32 %v2127, %v2130
        %s2132 = scalar_lea.vmem %s2124, 2 [#allocation2]
        %v2133 = vld [vmem:[%s2132] ss:$2 sm:$0xf]
        %v2134 = vmul.f32 %v2133, %v2041
        %v2135 = vadd.f32 %v2131, %v2134
        %s2136 = scalar_lea.vmem [#allocation2], 128
        %v2137 = vld [vmem:[%s2136] ss:$2 sm:$0xf]
        %v2138 = vmul.f32 %v2137, %v2045
        %v2139 = vadd.f32 %v2135, %v2138
        %s2140 = scalar_lea.vmem %s2136, 1 [#allocation2]
        %v2141 = vld [vmem:[%s2140] ss:$2 sm:$0xf]
        %v2142 = vmul.f32 %v2141, %v2050
        %v2143 = vadd.f32 %v2139, %v2142
        %s2144 = scalar_lea.vmem %s2136, 2 [#allocation2]
        %v2145 = vld [vmem:[%s2144] ss:$2 sm:$0xf]
        %v2146 = vmul.f32 %v2145, %v2055
        %v2147 = vadd.f32 %v2143, %v2146
        %v2148 = vld [vmem:[%s15] sm:$0x1]
        %v2150 = vperm.slane %v2148, 0
        %v2152 = vrot.slane %v2150, 4
        %v2154 = vmul.f32 %v2057, %v2150
        %v2155 = vmul.f32 %v2087, %v2152
        %v2156 = vmul.f32 %v2117, %v2150
        %v2157 = vmul.f32 %v2147, %v2152
        %v2158 = vld [vmem:[%s16] sm:$0x1]
        %v2160 = vperm.slane %v2158, 0
        %v2162 = vrot.slane %v2160, 4
        %v2164 = vadd.f32 %v2154, %v2160
        %v2165 = vadd.f32 %v2155, %v2162
        %v2166 = vadd.f32 %v2156, %v2160
        %v2167 = vadd.f32 %v2157, %v2162
        %v2168 = vxor.u32 %v2164, 2147483648
        %v2169 = vxor.u32 %v2165, 2147483648
        %v2170 = vxor.u32 %v2166, 2147483648
        %v2171 = vxor.u32 %v2167, 2147483648
        %v2172 = vmul.f32 %v2168, 1.442695
        %v2173 = vpow.pop %v2172
        %v2174 = vmul.f32 %v2169, 1.442695
        %v2175 = vpow.pop %v2174
        %v2176 = vmul.f32 %v2170, 1.442695
        %v2177 = vpow.pop %v2176
        %v2178 = vmul.f32 %v2171, 1.442695
        %v2179 = vpow.pop %v2178
        %v2180 = vadd.f32 %v2173, 1.0
        %v2181 = vadd.f32 %v2175, 1.0
        %v2182 = vadd.f32 %v2177, 1.0
        %v2183 = vadd.f32 %v2179, 1.0
        %v2184 = vrcp.pop %v2180
        %v2185 = vmul.f32 %v2180, %v2184
        %v2186 = vsub.f32 1.0, %v2185
        %v2187 = vmul.f32 %v2184, %v2186
        %v2188 = vadd.f32 %v2184, %v2187
        %vm2189 = vweird.f32 %v2180
        %vm2190 = vweird.f32 %v2184
        %vm2191 = vmor %vm2189, %vm2190
        %v2192 = vsel %vm2191, %v2184, %v2188
        %v2193 = vand.u32 2147483647, %v2180
        %vm2194 = vcmp.eq.f32.partialorder %v2193, 8.507059e+37
        %v2195 = vand.u32 %v2180, 2147483648
        %v2196 = vor.u32 1.1754944e-38, %v2195
        %v2197 = vsel %vm2194, %v2196, %v2192
        %v2198 = vmul.f32 1.0, %v2197
        %v2199 = vrcp.pop %v2181
        %v2200 = vmul.f32 %v2181, %v2199
        %v2201 = vsub.f32 1.0, %v2200
        %v2202 = vmul.f32 %v2199, %v2201
        %v2203 = vadd.f32 %v2199, %v2202
        %vm2204 = vweird.f32 %v2181
        %vm2205 = vweird.f32 %v2199
        %vm2206 = vmor %vm2204, %vm2205
        %v2207 = vsel %vm2206, %v2199, %v2203
        %v2208 = vand.u32 2147483647, %v2181
        %vm2209 = vcmp.eq.f32.partialorder %v2208, 8.507059e+37
        %v2210 = vand.u32 %v2181, 2147483648
        %v2211 = vor.u32 1.1754944e-38, %v2210
        %v2212 = vsel %vm2209, %v2211, %v2207
        %v2213 = vmul.f32 1.0, %v2212
        %v2214 = vrcp.pop %v2182
        %v2215 = vmul.f32 %v2182, %v2214
        %v2216 = vsub.f32 1.0, %v2215
        %v2217 = vmul.f32 %v2214, %v2216
        %v2218 = vadd.f32 %v2214, %v2217
        %vm2219 = vweird.f32 %v2182
        %vm2220 = vweird.f32 %v2214
        %vm2221 = vmor %vm2219, %vm2220
        %v2222 = vsel %vm2221, %v2214, %v2218
        %v2223 = vand.u32 2147483647, %v2182
        %vm2224 = vcmp.eq.f32.partialorder %v2223, 8.507059e+37
        %v2225 = vand.u32 %v2182, 2147483648
        %v2226 = vor.u32 1.1754944e-38, %v2225
        %v2227 = vsel %vm2224, %v2226, %v2222
        %v2228 = vmul.f32 1.0, %v2227
        %v2229 = vrcp.pop %v2183
        %v2230 = vmul.f32 %v2183, %v2229
        %v2231 = vsub.f32 1.0, %v2230
        %v2232 = vmul.f32 %v2229, %v2231
        %v2233 = vadd.f32 %v2229, %v2232
        %vm2234 = vweird.f32 %v2183
        %vm2235 = vweird.f32 %v2229
        %vm2236 = vmor %vm2234, %vm2235
        %v2237 = vsel %vm2236, %v2229, %v2233
        %v2238 = vand.u32 2147483647, %v2183
        %vm2239 = vcmp.eq.f32.partialorder %v2238, 8.507059e+37
        %v2240 = vand.u32 %v2183, 2147483648
        %v2241 = vor.u32 1.1754944e-38, %v2240
        %v2242 = vsel %vm2239, %v2241, %v2237
        %v2243 = vmul.f32 1.0, %v2242
        %v2244 = vmul.f32 %v2164, %v2198
        %v2245 = vmul.f32 %v2165, %v2213
        %v2246 = vmul.f32 %v2166, %v2228
        %v2247 = vmul.f32 %v2167, %v2243
        %v2248 = vld [vmem:[%s17] sm:$0xff]
        %v2249 = vld [vmem:[%s18] sm:$0xff]
        %v2250 = vld [vmem:[%s19] sm:$0xff]
        %v2251 = vld [vmem:[%s20] sm:$0x1]
        %2256 = vst [vmem:[#allocation1] ss:$2 sm:$0xff] %v2244
        %s2257 = scalar_lea.vmem [#allocation1], 1
        %2258 = vst [vmem:[%s2257] ss:$2 sm:$0xff] %v2245
        %s2259 = scalar_lea.vmem [#allocation1], 16
        %2260 = vst [vmem:[%s2259] ss:$2 sm:$0xff] %v2246
        %s2261 = scalar_lea.vmem [#allocation1], 17
        %2262 = vst [vmem:[%s2261] ss:$2 sm:$0xff] %v2247
        %v2263 = vld.sshfl [vmem:[#allocation1] sm:$0xff pattern:$0x75316420]
        %v2264 = vld.sshfl [vmem:[#allocation1 + $0x10] sm:$0xff pattern:$0x75316420]
        %v2267 = vadd.f32 %v2263, %v2264
        %v2268 = vrot.slane %v2267, 4
        %v2269 = vadd.f32 %v2267, %v2268
        %v2270 = vrot.slane %v2269, 2
        %v2271 = vadd.f32 %v2269, %v2270
        %v2272 = vrot.slane %v2271, 1
        %v2273 = vadd.f32 %v2271, %v2272
        %v2274 = vrcp.pop 16.0
        %v2275 = vmul.f32 16.0, %v2274
        %v2276 = vsub.f32 1.0, %v2275
        %v2277 = vmul.f32 %v2274, %v2276
        %v2278 = vadd.f32 %v2274, %v2277
        %vm2279 = vweird.f32 %v2274
        %v2280 = vsel %vm2279, %v2274, %v2278
        %v2281 = vmul.f32 %v2273, %v2280
        %v2282 = vmul.f32 %v2248, %v2281
        %2283 = vadd.xlane.f32.xlu0 %v2282
        %v2284 = vpop.xlane.xlu0 %2283
        %v2285 = vadd.f32 %v2284, %v2249
        %v2286 = vxor.u32 %v2285, 2147483648
        %v2287 = vmul.f32 %v2286, 1.442695
        %v2288 = vpow.pop %v2287
        %v2289 = vadd.f32 %v2288, 1.0
        %v2290 = vrcp.pop %v2289
        %v2291 = vmul.f32 %v2289, %v2290
        %v2292 = vsub.f32 1.0, %v2291
        %v2293 = vmul.f32 %v2290, %v2292
        %v2294 = vadd.f32 %v2290, %v2293
        %vm2295 = vweird.f32 %v2289
        %vm2296 = vweird.f32 %v2290
        %vm2297 = vmor %vm2295, %vm2296
        %v2298 = vsel %vm2297, %v2290, %v2294
        %v2299 = vand.u32 2147483647, %v2289
        %vm2300 = vcmp.eq.f32.partialorder %v2299, 8.507059e+37
        %v2301 = vand.u32 %v2289, 2147483648
        %v2302 = vor.u32 1.1754944e-38, %v2301
        %v2303 = vsel %vm2300, %v2302, %v2298
        %v2304 = vmul.f32 1.0, %v2303
        %v2305 = vmul.f32 %v2285, %v2304
        %2307 = vset.pattern.permute.xlu0 0
        %2308 = vperm.xlu0 %2307, %v2305
        %v2309 = vpop.permute.xlu0 %2308
        %v2311 = vmul.f32 %v2250, %v2309
        %v2312 = vrot.slane %v2311, 4
        %v2313 = vadd.f32 %v2311, %v2312
        %v2314 = vrot.slane %v2313, 2
        %v2315 = vadd.f32 %v2313, %v2314
        %v2316 = vrot.slane %v2315, 1
        %v2317 = vadd.f32 %v2315, %v2316
        %v2318 = vadd.f32 %v2317, %v2251
        %v2319 = vxor.u32 %v2318, 2147483648
        %v2320 = vmul.f32 %v2319, 1.442695
        %v2321 = vpow.pop %v2320
        %v2322 = vadd.f32 %v2321, 1.0
        %v2323 = vrcp.pop %v2322
        %v2324 = vmul.f32 %v2322, %v2323
        %v2325 = vsub.f32 1.0, %v2324
        %v2326 = vmul.f32 %v2323, %v2325
        %v2327 = vadd.f32 %v2323, %v2326
        %vm2328 = vweird.f32 %v2322
        %vm2329 = vweird.f32 %v2323
        %vm2330 = vmor %vm2328, %vm2329
        %v2331 = vsel %vm2330, %v2323, %v2327
        %v2332 = vand.u32 2147483647, %v2322
        %vm2333 = vcmp.eq.f32.partialorder %v2332, 8.507059e+37
        %v2334 = vand.u32 %v2322, 2147483648
        %v2335 = vor.u32 1.1754944e-38, %v2334
        %v2336 = vsel %vm2333, %v2335, %v2331
        %v2337 = vmul.f32 1.0, %v2336
        %v2338 = vperm.slane %v2337, 0
        %v2340 = vrot.slane %v2338, 4
        %v2342 = vmul.f32 %v2244, %v2338
        %v2343 = vmul.f32 %v2245, %v2340
        %v2344 = vmul.f32 %v2246, %v2338
        %v2345 = vmul.f32 %v2247, %v2340
        %2350 = vst [vmem:[#allocation1] ss:$2 sm:$0xff] %v2342
        %s2351 = scalar_lea.vmem [#allocation1], 1
        %2352 = vst [vmem:[%s2351] ss:$2 sm:$0xff] %v2343
        %s2353 = scalar_lea.vmem [#allocation1], 16
        %2354 = vst [vmem:[%s2353] ss:$2 sm:$0xff] %v2344
        %s2355 = scalar_lea.vmem [#allocation1], 17
        %2356 = vst [vmem:[%s2355] ss:$2 sm:$0xff] %v2345
        %v2357 = vld.sshfl [vmem:[#allocation1] sm:$0xff pattern:$0x75316420]
        %v2358 = vld.sshfl [vmem:[#allocation1 + $0x10] sm:$0xff pattern:$0x75316420]
        %v2361 = vpack.c.bf16 %v2358, %v2357
        %v2362 = vld [vmem:[%s21] sm:$0xf]
        %v2363 = vld [vmem:[%s21 + $0x4] sm:$0xf]
        %v2364 = vld [vmem:[%s21 + $0x8] sm:$0xf]
        %v2365 = vld [vmem:[%s21 + $0xc] sm:$0xf]
        %v2366 = vld [vmem:[%s21 + $0x10] sm:$0xf]
        %v2367 = vld [vmem:[%s21 + $0x14] sm:$0xf]
        %v2368 = vld [vmem:[%s21 + $0x18] sm:$0xf]
        %v2369 = vld [vmem:[%s21 + $0x1c] sm:$0xf]
        %v2370 = vld [vmem:[%s21 + $0x20] sm:$0xf]
        %v2371 = vld [vmem:[%s21 + $0x24] sm:$0xf]
        %v2372 = vld [vmem:[%s21 + $0x28] sm:$0xf]
        %v2373 = vld [vmem:[%s21 + $0x2c] sm:$0xf]
        %v2374 = vld [vmem:[%s21 + $0x30] sm:$0xf]
        %v2375 = vld [vmem:[%s21 + $0x34] sm:$0xf]
        %v2376 = vld [vmem:[%s21 + $0x38] sm:$0xf]
        %v2377 = vld [vmem:[%s21 + $0x3c] sm:$0xf]
        %v2378 = vld [vmem:[%s22] sm:$0x1]
        %v2380 = vperm.slane %v2378, 0
        %v2398 = vunpack.c.l.b16 %v2362
        %v2399 = vunpack.c.l.b16 %v2363
        %v2400 = vunpack.c.l.b16 %v2364
        %v2401 = vunpack.c.l.b16 %v2365
        %v2402 = vunpack.c.l.b16 %v2366
        %v2403 = vunpack.c.l.b16 %v2367
        %v2404 = vunpack.c.l.b16 %v2368
        %v2405 = vunpack.c.l.b16 %v2369
        %v2406 = vunpack.c.l.b16 %v2370
        %v2407 = vunpack.c.l.b16 %v2371
        %v2408 = vunpack.c.l.b16 %v2372
        %v2409 = vunpack.c.l.b16 %v2373
        %v2410 = vunpack.c.l.b16 %v2374
        %v2411 = vunpack.c.l.b16 %v2375
        %v2412 = vunpack.c.l.b16 %v2376
        %v2413 = vunpack.c.l.b16 %v2377
        %v2414 = vpack.c.b16 %v2399, %v2398
        %v2415 = vpack.c.b16 %v2401, %v2400
        %v2416 = vpack.c.b16 %v2403, %v2402
        %v2417 = vpack.c.b16 %v2405, %v2404
        %v2418 = vpack.c.b16 %v2407, %v2406
        %v2419 = vpack.c.b16 %v2409, %v2408
        %v2420 = vpack.c.b16 %v2411, %v2410
        %v2421 = vpack.c.b16 %v2413, %v2412
        %2430 = vmatpush.bf16.msra.mxu0 %v2421
        %2431 = vmatpush.bf16.msra.mxu0 %v2420
        %2432 = vmatpush.bf16.msra.mxu0 %v2419
        %2433 = vmatpush.bf16.msra.mxu0 %v2418
        %2434 = vmatpush.bf16.msra.mxu0 %v2417
        %2435 = vmatpush.bf16.msra.mxu0 %v2416
        %2436 = vmatpush.bf16.msra.mxu0 %v2415
        %2437 = vmatpush.bf16.msra.mxu0 %v2414
        %2438 = vmatmul.bf16.gmra.mxu0 %v2361
        %v2439 = vpop.f32.mrf.mxu0
        %v2440 = vadd.f32 %v2380, %v2439
        %v2441 = vpop.f32.mrf.mxu0
        %v2442 = vadd.f32 %v2380, %v2441
        %2443 = vdwg.mxu0
        %v2444 = vpack.c.bf16 %v2442, %v2440
        %v2445 = vld [vmem:[%s23] sm:$0xf]
        %v2446 = vld [vmem:[%s23 + $0x4] sm:$0xf]
        %v2447 = vld [vmem:[%s23 + $0x8] sm:$0xf]
        %v2448 = vld [vmem:[%s23 + $0xc] sm:$0xf]
        %v2449 = vld [vmem:[%s23 + $0x10] sm:$0xf]
        %v2450 = vld [vmem:[%s23 + $0x14] sm:$0xf]
        %v2451 = vld [vmem:[%s23 + $0x18] sm:$0xf]
        %v2452 = vld [vmem:[%s23 + $0x1c] sm:$0xf]
        %v2453 = vld [vmem:[%s23 + $0x20] sm:$0xf]
        %v2454 = vld [vmem:[%s23 + $0x24] sm:$0xf]
        %v2455 = vld [vmem:[%s23 + $0x28] sm:$0xf]
        %v2456 = vld [vmem:[%s23 + $0x2c] sm:$0xf]
        %v2457 = vld [vmem:[%s23 + $0x30] sm:$0xf]
        %v2458 = vld [vmem:[%s23 + $0x34] sm:$0xf]
        %v2459 = vld [vmem:[%s23 + $0x38] sm:$0xf]
        %v2460 = vld [vmem:[%s23 + $0x3c] sm:$0xf]
        %v2461 = vld [vmem:[%s24] sm:$0x1]
        %v2463 = vperm.slane %v2461, 0
        %v2481 = vunpack.c.l.b16 %v2445
        %v2482 = vunpack.c.l.b16 %v2446
        %v2483 = vunpack.c.l.b16 %v2447
        %v2484 = vunpack.c.l.b16 %v2448
        %v2485 = vunpack.c.l.b16 %v2449
        %v2486 = vunpack.c.l.b16 %v2450
        %v2487 = vunpack.c.l.b16 %v2451
        %v2488 = vunpack.c.l.b16 %v2452
        %v2489 = vunpack.c.l.b16 %v2453
        %v2490 = vunpack.c.l.b16 %v2454
        %v2491 = vunpack.c.l.b16 %v2455
        %v2492 = vunpack.c.l.b16 %v2456
        %v2493 = vunpack.c.l.b16 %v2457
        %v2494 = vunpack.c.l.b16 %v2458
        %v2495 = vunpack.c.l.b16 %v2459
        %v2496 = vunpack.c.l.b16 %v2460
        %v2497 = vpack.c.b16 %v2482, %v2481
        %v2498 = vpack.c.b16 %v2484, %v2483
        %v2499 = vpack.c.b16 %v2486, %v2485
        %v2500 = vpack.c.b16 %v2488, %v2487
        %v2501 = vpack.c.b16 %v2490, %v2489
        %v2502 = vpack.c.b16 %v2492, %v2491
        %v2503 = vpack.c.b16 %v2494, %v2493
        %v2504 = vpack.c.b16 %v2496, %v2495
        %2513 = vmatpush.bf16.msra.mxu0 %v2504
        %2514 = vmatpush.bf16.msra.mxu0 %v2503
        %2515 = vmatpush.bf16.msra.mxu0 %v2502
        %2516 = vmatpush.bf16.msra.mxu0 %v2501
        %2517 = vmatpush.bf16.msra.mxu0 %v2500
        %2518 = vmatpush.bf16.msra.mxu0 %v2499
        %2519 = vmatpush.bf16.msra.mxu0 %v2498
        %2520 = vmatpush.bf16.msra.mxu0 %v2497
        %2521 = vmatmul.bf16.gmra.mxu0 %v2444
        %v2522 = vpop.f32.mrf.mxu0
        %v2523 = vadd.f32 %v2463, %v2522
        %v2524 = vpop.f32.mrf.mxu0
        %v2525 = vadd.f32 %v2463, %v2524
        %2526 = vdwg.mxu0
        %v2527 = vxor.u32 %v2523, 2147483648
        %v2528 = vxor.u32 %v2525, 2147483648
        %v2529 = vmul.f32 %v2527, 1.442695
        %v2530 = vpow.pop %v2529
        %v2531 = vmul.f32 %v2528, 1.442695
        %v2532 = vpow.pop %v2531
        %v2533 = vadd.f32 %v2530, 1.0
        %v2534 = vadd.f32 %v2532, 1.0
        %v2535 = vrcp.pop %v2533
        %v2536 = vmul.f32 %v2533, %v2535
        %v2537 = vsub.f32 1.0, %v2536
        %v2538 = vmul.f32 %v2535, %v2537
        %v2539 = vadd.f32 %v2535, %v2538
        %vm2540 = vweird.f32 %v2533
        %vm2541 = vweird.f32 %v2535
        %vm2542 = vmor %vm2540, %vm2541
        %v2543 = vsel %vm2542, %v2535, %v2539
        %v2544 = vand.u32 2147483647, %v2533
        %vm2545 = vcmp.eq.f32.partialorder %v2544, 8.507059e+37
        %v2546 = vand.u32 %v2533, 2147483648
        %v2547 = vor.u32 1.1754944e-38, %v2546
        %v2548 = vsel %vm2545, %v2547, %v2543
        %v2549 = vmul.f32 1.0, %v2548
        %v2550 = vrcp.pop %v2534
        %v2551 = vmul.f32 %v2534, %v2550
        %v2552 = vsub.f32 1.0, %v2551
        %v2553 = vmul.f32 %v2550, %v2552
        %v2554 = vadd.f32 %v2550, %v2553
        %vm2555 = vweird.f32 %v2534
        %vm2556 = vweird.f32 %v2550
        %vm2557 = vmor %vm2555, %vm2556
        %v2558 = vsel %vm2557, %v2550, %v2554
        %v2559 = vand.u32 2147483647, %v2534
        %vm2560 = vcmp.eq.f32.partialorder %v2559, 8.507059e+37
        %v2561 = vand.u32 %v2534, 2147483648
        %v2562 = vor.u32 1.1754944e-38, %v2561
        %v2563 = vsel %vm2560, %v2562, %v2558
        %v2564 = vmul.f32 1.0, %v2563
        %v2565 = vmul.f32 %v2523, %v2549
        %v2566 = vmul.f32 %v2525, %v2564
        %v2567 = vadd.f32 %v2565, %v2566
        %v2568 = vrot.slane %v2567, 4
        %v2569 = vadd.f32 %v2567, %v2568
        %v2570 = vrot.slane %v2569, 2
        %v2571 = vadd.f32 %v2569, %v2570
        %v2572 = vrot.slane %v2571, 1
        %v2573 = vadd.f32 %v2571, %v2572
        %v2574 = vmul.f32 %v2573, %v2280
        %v2575 = vpack.c.bf16 %v2574, %v2574
        %v2576 = vld [vmem:[%s25] sm:$0xf]
        %v2577 = vld [vmem:[%s25 + $0x4] sm:$0xf]
        %v2578 = vld [vmem:[%s25 + $0x8] sm:$0xf]
        %v2579 = vld [vmem:[%s25 + $0xc] sm:$0xf]
        %v2580 = vld [vmem:[%s25 + $0x10] sm:$0xf]
        %v2581 = vld [vmem:[%s25 + $0x14] sm:$0xf]
        %v2582 = vld [vmem:[%s25 + $0x18] sm:$0xf]
        %v2583 = vld [vmem:[%s25 + $0x1c] sm:$0xf]
        %v2584 = vld [vmem:[%s25 + $0x20] sm:$0xf]
        %v2585 = vld [vmem:[%s25 + $0x24] sm:$0xf]
        %v2586 = vld [vmem:[%s25 + $0x28] sm:$0xf]
        %v2587 = vld [vmem:[%s25 + $0x2c] sm:$0xf]
        %v2588 = vld [vmem:[%s25 + $0x30] sm:$0xf]
        %v2589 = vld [vmem:[%s25 + $0x34] sm:$0xf]
        %v2590 = vld [vmem:[%s25 + $0x38] sm:$0xf]
        %v2591 = vld [vmem:[%s25 + $0x3c] sm:$0xf]
        %v2592 = vld [vmem:[%s26] sm:$0x1]
        %v2609 = vunpack.c.l.b16 %v2576
        %v2610 = vunpack.c.l.b16 %v2577
        %v2611 = vunpack.c.l.b16 %v2578
        %v2612 = vunpack.c.l.b16 %v2579
        %v2613 = vunpack.c.l.b16 %v2580
        %v2614 = vunpack.c.l.b16 %v2581
        %v2615 = vunpack.c.l.b16 %v2582
        %v2616 = vunpack.c.l.b16 %v2583
        %v2617 = vunpack.c.l.b16 %v2584
        %v2618 = vunpack.c.l.b16 %v2585
        %v2619 = vunpack.c.l.b16 %v2586
        %v2620 = vunpack.c.l.b16 %v2587
        %v2621 = vunpack.c.l.b16 %v2588
        %v2622 = vunpack.c.l.b16 %v2589
        %v2623 = vunpack.c.l.b16 %v2590
        %v2624 = vunpack.c.l.b16 %v2591
        %v2625 = vpack.c.b16 %v2610, %v2609
        %v2626 = vpack.c.b16 %v2612, %v2611
        %v2627 = vpack.c.b16 %v2614, %v2613
        %v2628 = vpack.c.b16 %v2616, %v2615
        %v2629 = vpack.c.b16 %v2618, %v2617
        %v2630 = vpack.c.b16 %v2620, %v2619
        %v2631 = vpack.c.b16 %v2622, %v2621
        %v2632 = vpack.c.b16 %v2624, %v2623
        %2641 = vmatpush.bf16.msra.mxu0 %v2632
        %2642 = vmatpush.bf16.msra.mxu0 %v2631
        %2643 = vmatpush.bf16.msra.mxu0 %v2630
        %2644 = vmatpush.bf16.msra.mxu0 %v2629
        %2645 = vmatpush.bf16.msra.mxu0 %v2628
        %2646 = vmatpush.bf16.msra.mxu0 %v2627
        %2647 = vmatpush.bf16.msra.mxu0 %v2626
        %2648 = vmatpush.bf16.msra.mxu0 %v2625
        %2649 = vmatmul.bf16.gmra.mxu0 %v2575
        %v2650 = vpop.f32.mrf.mxu0
        %v2651 = vadd.f32 %v2592, %v2650
        %v2652 = vpop.f32.mrf.mxu0
        %2653 = vdwg.mxu0
        %2654 = vst [vmem:[%s810] sm:$0x1] %v2651
        %s2655 = sand.u32 %s621, 1
        %s2656 = scalar_lea.sflag [#allocation4], %s2655
        %s2657 = sand.u32 %s621, 1
        %s2658 = scalar_lea.vmem [#allocation3], %s2657
        // Predicated region
        $region129: #{_lambda_.1} parent=127 // pred_check
          %p2659 = pneg %p631
        $region130: #{_lambda_.1} parent=127 // pred_check_branch
          %2661 = sbr.rel (%p2659) target = $region132
        $region131: #{_lambda_.1} parent=127 // pred_region
          %2663 = vsyncadd %s2656, 0
          %s2664 = scalar_lea.hbm %s27, %s41
          %s2666 = sshll.u32 %s2658, 4
          %s2667 = int_to_ptr.vmem [resolvable:$true] %s2666
          %s2668 = sshll.u32 %s2664, 4
          %s2669 = int_to_ptr.hbm [resolvable:$true] %s2668
          %2671 = dma.vmem_to_hbm [thread:$0]  %s2667, 16, %s2669, %s2656
        $region132: #{_lambda_.1} parent=127 // pred_fallthru
          _
      $region128: #{_lambda_.1} parent=5 // pred_fallthru
        _
      %p2672 = scmp.le.s32.totalorder 2, %s36
      // Predicated region
      $region133: #{_lambda_.1} parent=5 // pred_check
        %p2673 = pneg %p2672
      $region134: #{_lambda_.1} parent=5 // pred_check_branch
        %2675 = sbr.rel (%p2673) target = $region136
      $region135: #{_lambda_.1} parent=5 // pred_region
        %s2676 = ssub.s32 %s36, 2
        // Predicated region
        $region137: #{_lambda_.1} parent=135 // pred_check
          %p2677 = pneg %p637
        $region138: #{_lambda_.1} parent=135 // pred_check_branch
          %2679 = sbr.rel (%p2677) target = $region140
        $region139: #{_lambda_.1} parent=135 // pred_region
          %s2680 = sand.u32 %s622, 1
          %s2681 = scalar_lea.sflag [#allocation4], %s2680
          %s2682 = sand.u32 %s622, 1
          %s2683 = scalar_lea.vmem [#allocation3], %s2682
          %2685 = dma.done %s2681, 16
        $region140: #{_lambda_.1} parent=135 // pred_fallthru
          _
      $region136: #{_lambda_.1} parent=5 // pred_fallthru
        _
    $region6: #{_lambda_.1} parent=1 // loop_footer
      %s40 = sadd.s32 1, %s36
    $region7: #{_lambda_.1} parent=1 // loop_footer_branch
      %35 = sbr.rel target = $region3
    $region8: #{_lambda_.1} parent=1 // loop_exit
      _
    %2686 = vsyncpa [#allocation4], 1
    %s2687 = scalar_lea.sflag [#allocation4], 1
    %2688 = vsyncpa %s2687, 1

</llo_original>
